<compile_context>
chip_gen: v6e
topology: v6e:2x2x1
jax: 0.10.0
libtpu: 0.0.40
codegen_flags: <defaults>
</compile_context>

<pallas_src>
import jax
import jax.numpy as jnp
from jax import lax
from jax.experimental import pallas as pl
from jax.experimental.pallas import tpu as pltpu

# ---------------- dimensions (small, forward-consistent) ----------------
B = 2                            # true batch
BP = 8                           # batch padded to 8 sublanes inside the kernel
U, T, K = 4, 8, 8                # utterances, tokens/utterance, kb nodes
UT = U * T                       # flattened context positions per dialogue
H = 16                           # enc_hid_size
D2, D4 = 2 * H, 4 * H            # 2H / 4H
E = 2 * H                        # embedding / token-feature dim (stand-in encoder)
V = 32                           # max copy-vocab size (== max(vocab_size) here)
V_PAD = 128                      # lane-dense copy-vocab width inside the kernel
VOCAB_EMB = 50                   # embedding table rows
TC_HID, TC_PAD = 200, 256        # tok_copier hidden (true, lane-padded)
IP_HID, IP_PAD = 100, 128        # inter_prob hidden (true, lane-padded)
LN_EPS = 1e-5
BN_EPS = 1e-5
NEG_VAL = -99999.0

N_CTX = BP * UT                  # 256 context rows (padded batch)
N_KB = BP * K                    # 64 kb rows
N_ROWS = N_CTX + N_KB            # 320 rows in the fused tok_copier matmul

# slab row layouts (all row counts multiples of 8; slab-internal slices tile-aligned)
QT_ROWS = 3 * D4 + 8             # [w1 | w2 | w3(pad) | 8 bias rows]        -> (200, 64)
GR_ROWS = E + 2 * D2 + 8         # [node_w | g_wq | g_wn | 8 bias rows]     -> (104, 32)
TC_ROWS = E + 2 * D2 + 8         # [w1_feat | w1_state0 | w1_dlg | 8 rows]  -> (104, 256)
IP_ROWS = D2 + 8                 # [w1 | 8 rows (b1,gamma,beta,w2)]         -> (40, 128)

# advisory cost estimate for XLA scheduling around the custom call
_FLOPS = int(
    2 * (2 * BP * D4 * D4 + BP * D4 * D2)      # query_transform (3 residual linears)
    + 2 * N_KB * E * D2                        # graph node transform
    + 2 * 2 * BP * D2 * D2                     # state0
    + 2 * 2 * BP * D2 * TC_PAD                 # per-batch query projection
    + 2 * N_ROWS * E * TC_PAD                  # fused tok_copier feature matmul
    + 2 * BP * D2 * IP_PAD                     # inter_prob hidden
    + 8 * N_ROWS * TC_PAD                      # LayerNorm / ReLU / proj elementwise
    + 6 * BP * (UT + K) * V_PAD                # one-hot scatter + mix
)
_TRANS = int(3 * BP * D4 + N_KB * D2 + BP * D2 + BP * (UT + K) + N_ROWS + 2 * BP)
_BYTES = int(4 * (BP * D4 + BP * D2 + N_ROWS * E + 2 * BP * (UT + K)
                  + QT_ROWS * D4 + GR_ROWS * D2 + TC_ROWS * TC_PAD + IP_ROWS * IP_PAD
                  + BP * V_PAD))


# ---------------- fused Pallas kernel ----------------
def fused_reward_kernel(
    qcat_ref, dlg_ref, feat_ref,                 # activations
    cmask_ref, kmask_ref, cidx_ref, kidx_ref,    # masks + copy-vocab indices
    qt_ref, gr_ref, tc_ref, ip_ref,              # packed weight slabs
    o_ref,                                       # (BP, V_PAD) mixed copy distribution
):
    f32 = jnp.float32

    def ln_relu_proj(h, g, beta, w2, true_dim, keepdims):
        # LayerNorm(true_dim) + ReLU + Linear(true_dim, 1, bias=False) on lane-padded h.
        # Padded cols of h / g / beta / w2 are exactly zero, so a one-pass
        # E[x^2] - mu^2 variance over ALL columns with the true count is exact.
        # (Activations here are tanh-bounded/small; keep two-pass if scales change.)
        inv_n = 1.0 / float(true_dim)
        mu = jnp.sum(h, axis=-1, keepdims=True) * inv_n
        var = jnp.sum(h * h, axis=-1, keepdims=True) * inv_n - mu * mu
        hn = (h - mu) * lax.rsqrt(var + LN_EPS) * g + beta        # padded cols stay 0
        r = jnp.maximum(hn, 0.0)
        return jnp.sum(r * w2, axis=-1, keepdims=keepdims)

    def masked_softmax(lg, m):
        lg = jnp.where(m > 0.0, lg, NEG_VAL)
        mx = jnp.max(lg, axis=-1, keepdims=True)
        e = jnp.exp(lg - mx)
        d = jnp.sum(e, axis=-1, keepdims=True)
        r = pl.reciprocal(d, approx=True)
        r = r * (2.0 - d * r)            # one Newton step -> exact normalization
        return e * r

    # ---- unpack weight slabs (static, tile-aligned ref slices: free)
    qt_w1 = qt_ref[0:D4, :]
    qt_w2 = qt_ref[D4:2 * D4, :]
    qt_w3 = qt_ref[2 * D4:3 * D4, 0:D2]
    qt_v = qt_ref[3 * D4:3 * D4 + 8, :]
    qt_b1, qt_b2 = qt_v[0:1, :], qt_v[1:2, :]
    qt_b3 = qt_v[2:3, 0:D2]

    gr_nw = gr_ref[0:E, :]
    gr_wq = gr_ref[E:E + D2, :]
    gr_wn = gr_ref[E + D2:E + 2 * D2, :]
    gr_v = gr_ref[E + 2 * D2:E + 2 * D2 + 8, :]
    gr_nb, gr_b = gr_v[0:1, :], gr_v[1:2, :]

    tc_w1f = tc_ref[0:E, :]
    tc_w1s = tc_ref[E:E + D2, :]
    tc_w1d = tc_ref[E + D2:E + 2 * D2, :]
    tc_v = tc_ref[E + 2 * D2:E + 2 * D2 + 8, :]
    tc_b1, tc_g, tc_beta, tc_w2 = tc_v[0:1, :], tc_v[1:2, :], tc_v[2:3, :], tc_v[3:4, :]

    ip_w1 = ip_ref[0:D2, :]
    ip_v = ip_ref[D2:D2 + 8, :]
    ip_b1, ip_g, ip_beta, ip_w2 = ip_v[0:1, :], ip_v[1:2, :], ip_v[2:3, :], ip_v[3:4, :]

    # ---- query_transform: ResidualFF(4H, 2H); eval-mode BatchNorm folded into Linears
    x = qcat_ref[...]                                                       # (BP, 4H)
    z1 = jnp.tanh(jnp.dot(x, qt_w1, preferred_element_type=f32) + qt_b1) + x
    z2 = jnp.tanh(jnp.dot(z1, qt_w2, preferred_element_type=f32) + qt_b2) + z1
    query = jnp.tanh(jnp.dot(z2, qt_w3, preferred_element_type=f32) + qt_b3)  # (BP, 2H)

    dlg = dlg_ref[...]                                                      # (BP, 2H)

    # ---- graph reasoning stand-in
    # TODO(synk): GraphReasoning source not provided; deterministic stand-in
    # (node = tanh(Linear(tok_emb + type_emb)); state0 = tanh(Wq q + Wn mean(node))).
    ctx = feat_ref[0:N_CTX, :]                                              # (BP*UT, E)
    kbf = feat_ref[N_CTX:N_ROWS, :]                                         # (BP*K, E)
    node = jnp.tanh(jnp.dot(kbf, gr_nw, preferred_element_type=f32) + gr_nb)
    node_mean = jnp.mean(node.reshape(BP, K, D2), axis=1)                   # (BP, 2H)
    state0 = jnp.tanh(jnp.dot(query, gr_wq, preferred_element_type=f32)
                      + jnp.dot(node_mean, gr_wn, preferred_element_type=f32)
                      + gr_b)                                               # (BP, 2H)

    # ---- tok_copier
    # per-batch query projection: computed once per row and broadcast over token/node rows
    qh = (jnp.dot(state0, tc_w1s, preferred_element_type=f32)
          + jnp.dot(dlg, tc_w1d, preferred_element_type=f32)
          + tc_b1)                                                          # (BP, TC_PAD)
    # ctx token rows and KB node rows share a SINGLE (N_ROWS,E)@(E,TC_PAD) MXU matmul
    h = jnp.dot(jnp.concatenate([ctx, node], axis=0), tc_w1f,
                preferred_element_type=f32)                                 # (N_ROWS, TC_PAD)
    lg_ctx = ln_relu_proj(h[0:N_CTX].reshape(BP, UT, TC_PAD) + qh[:, None, :],
                          tc_g, tc_beta, tc_w2, TC_HID, keepdims=False)     # (BP, UT)
    lg_kb = ln_relu_proj(h[N_CTX:N_ROWS].reshape(BP, K, TC_PAD) + qh[:, None, :],
                         tc_g, tc_beta, tc_w2, TC_HID, keepdims=False)      # (BP, K)

    p_ctx = masked_softmax(lg_ctx, cmask_ref[...])                          # (BP, UT)
    p_kb = masked_softmax(lg_kb, kmask_ref[...])                            # (BP, K)

    # ---- inter_prob head
    hi = jnp.dot(state0, ip_w1, preferred_element_type=f32) + ip_b1         # (BP, IP_PAD)
    gate = jax.nn.sigmoid(
        ln_relu_proj(hi, ip_g, ip_beta, ip_w2, IP_HID, keepdims=True))      # (BP, 1)

    # ---- fused scatter + mix: one lane-iota, one-hot weighted by gate / (1-gate),
    # reduced over the row axis (no selector matmuls, no separate dist tensors).
    # TODO(synk): at real copy-vocab sizes, tile V across the grid instead of
    # materializing the full (rows, V_PAD) one-hot.
    lane = lax.broadcasted_iota(jnp.int32, (BP, UT, V_PAD), 2)
    oh_ctx = (lane == cidx_ref[...][:, :, None]).astype(f32)                # (BP, UT, V_PAD)
    oh_kb = (lane[:, 0:K, :] == kidx_ref[...][:, :, None]).astype(f32)      # (BP, K, V_PAD)
    o_ref[...] = (jnp.sum((gate * p_ctx)[:, :, None] * oh_ctx, axis=1)
                  + jnp.sum(((1.0 - gate) * p_kb)[:, :, None] * oh_kb, axis=1))


# ---------------- pallas_call wrapper (single fused launch, full-array blocks) ----------------
def _full_spec(shape):
    nd = len(shape)

    def idx(i):
        return (0,) * nd

    return pl.BlockSpec(shape, idx)


def fused_reward_call(p, qcat, dlg, feat_cat, cmask, kmask, cidx, kidx):
    args = (qcat, dlg, feat_cat, cmask, kmask, cidx, kidx,
            p['qt_slab'], p['gr_slab'], p['tc_slab'], p['ip_slab'])
    out_shape = (qcat.shape[0], V_PAD)
    return pl.pallas_call(
        fused_reward_kernel,
        grid=(1,),
        in_specs=[_full_spec(a.shape) for a in args],
        out_specs=_full_spec(out_shape),
        out_shape=jax.ShapeDtypeStruct(out_shape, jnp.float32),
        compiler_params=pltpu.CompilerParams(dimension_semantics=("arbitrary",)),
        cost_estimate=pl.CostEstimate(flops=_FLOPS, transcendentals=_TRANS,
                                      bytes_accessed=_BYTES),
    )(*args)


# ---------------- parameter init (deterministic, synthetic, pre-packed slabs) ----------------
def _normal(key, shape, scale=0.1):
    return scale * jax.random.normal(key, shape, dtype=jnp.float32)


def _fold_bn(w, b, gamma, beta, rm, rv):
    # eval-mode BatchNorm1d folded into the preceding Linear
    s = gamma / jnp.sqrt(rv + BN_EPS)
    return w * s[None, :], b * s + (beta - rm * s)


def init_params(key):
    ks = iter(jax.random.split(key, 64))
    p = {}
    p['embedding'] = _normal(next(ks), (VOCAB_EMB, E)).at[0].set(0.0)   # padding_idx = 0

    # stand-in encoder params (XLA glue)
    p['enc_w'] = _normal(next(ks), (E, D2));   p['enc_b'] = _normal(next(ks), (D2,))
    p['cls_w'] = _normal(next(ks), (D2, D2));  p['cls_b'] = _normal(next(ks), (D2,))

    # query_transform slab: 3x [Linear + folded eval-mode BN] -> (200, 64)
    qt = jnp.zeros((QT_ROWS, D4), jnp.float32)
    for li, outs in enumerate([D4, D4, D2]):
        w = _normal(next(ks), (D4, outs))
        b = _normal(next(ks), (outs,))
        gamma = 1.0 + _normal(next(ks), (outs,))
        beta = _normal(next(ks), (outs,))
        rm = _normal(next(ks), (outs,))
        rv = jnp.abs(_normal(next(ks), (outs,))) + 1.0
        wf, bf = _fold_bn(w, b, gamma, beta, rm, rv)
        qt = qt.at[li * D4:(li + 1) * D4, 0:outs].set(wf)
        qt = qt.at[3 * D4 + li, 0:outs].set(bf)
    p['qt_slab'] = qt

    # graph-reasoning stand-in slab: [node_w | g_wq | g_wn | bias rows] -> (104, 32)
    gr = jnp.zeros((GR_ROWS, D2), jnp.float32)
    gr = gr.at[0:E, :].set(_normal(next(ks), (E, D2)))
    gr = gr.at[E:E + D2, :].set(_normal(next(ks), (D2, D2)))
    gr = gr.at[E + D2:E + 2 * D2, :].set(_normal(next(ks), (D2, D2)))
    gr = gr.at[E + 2 * D2, :].set(_normal(next(ks), (D2,)))        # node bias
    gr = gr.at[E + 2 * D2 + 1, :].set(_normal(next(ks), (D2,)))    # state0 bias
    p['gr_slab'] = gr

    # tok_copier slab: Linear(6H,200)+LN(200)+ReLU+Linear(200,1,bias=False)
    # W1 split by input block (features | state0 | dlg_src); hidden zero-padded 200->256
    # so the in-kernel LayerNorm over 200 true elements is exact.
    w1 = _normal(next(ks), (6 * H, TC_HID))
    tc = jnp.zeros((TC_ROWS, TC_PAD), jnp.float32)
    tc = tc.at[0:E, 0:TC_HID].set(w1[0:2 * H])
    tc = tc.at[E:E + 2 * D2, 0:TC_HID].set(w1[2 * H:6 * H])
    tc = tc.at[E + 2 * D2 + 0, 0:TC_HID].set(_normal(next(ks), (TC_HID,)))         # b1
    tc = tc.at[E + 2 * D2 + 1, 0:TC_HID].set(1.0 + _normal(next(ks), (TC_HID,)))   # gamma
    tc = tc.at[E + 2 * D2 + 2, 0:TC_HID].set(_normal(next(ks), (TC_HID,)))         # beta
    tc = tc.at[E + 2 * D2 + 3, 0:TC_HID].set(_normal(next(ks), (TC_HID,)))         # w2
    p['tc_slab'] = tc

    # inter_prob slab: Linear(2H,100)+LN(100)+ReLU+Linear(100,1)+Sigmoid, padded 100->128
    ipw = jnp.zeros((IP_ROWS, IP_PAD), jnp.float32)
    ipw = ipw.at[0:D2, 0:IP_HID].set(_normal(next(ks), (D2, IP_HID)))
    ipw = ipw.at[D2 + 0, 0:IP_HID].set(_normal(next(ks), (IP_HID,)))                # b1
    ipw = ipw.at[D2 + 1, 0:IP_HID].set(1.0 + _normal(next(ks), (IP_HID,)))          # gamma
    ipw = ipw.at[D2 + 2, 0:IP_HID].set(_normal(next(ks), (IP_HID,)))                # beta
    ipw = ipw.at[D2 + 3, 0:IP_HID].set(_normal(next(ks), (IP_HID,)))                # w2
    p['ip_slab'] = ipw
    return p


# ---------------- plain-JAX glue ----------------
def sequence_mask(lens, maxlen):
    return (jnp.arange(maxlen)[None, :] < lens[..., None]).astype(jnp.float32)


# TODO(synk): HierarchicalAttentionEncoder source is not provided; deterministic
# stand-in (token + utterance-position embeddings -> linear+tanh token features,
# mean-pooled linear+tanh CLS feature of size 2H).  Kept in XLA glue.
def encoder_standin(p, features, dlg_pos_features):
    x = features + dlg_pos_features[:, :, None, :]
    ctx = jnp.tanh(x @ p['enc_w'] + p['enc_b'])                             # (B,U,T,2H)
    cls = jnp.tanh(jnp.mean(ctx, axis=(1, 2)) @ p['cls_w'] + p['cls_b'])    # (B,2H)
    return ctx, cls


def mem_reward_forward(p, tokens, token_tags, token_lens, dlg_lens, kb_tokens, kb_types,
                       kb_lens, adjacency, pos_tokens, ent_uttr_idx, ent_uttr_pos,
                       uttr_vocab_indices, kb_vocab_indices, vocab_size, targets):
    batch_idx = jnp.arange(tokens.shape[0])
    emb = p['embedding']
    features = emb[tokens]                      # use_ent_tags = False (default)
    dlg_pos_features = emb[pos_tokens]
    ctx_tok_features, cls_features = encoder_standin(p, features, dlg_pos_features)
    dlg_src_feats = ctx_tok_features[batch_idx, ent_uttr_idx, ent_uttr_pos, :]   # (B,2H)

    query_cat = jnp.concatenate([cls_features, dlg_src_feats], axis=1)           # (B,4H)
    kb_sum = emb[kb_tokens] + emb[kb_types]                                       # (B,K,E)

    Bx, Ux, Tx, F = ctx_tok_features.shape
    Kx = kb_sum.shape[1]
    mask1 = sequence_mask(token_lens, Tx)                 # (B,U,T)
    mask2 = sequence_mask(dlg_lens, Ux)[:, :, None]       # (B,U,1)
    ctx_mask = (mask1 * mask2).reshape(Bx, Ux * Tx)
    kb_mask = sequence_mask(kb_lens, Kx)

    # pad batch to BP rows (full sublane occupancy; padded rows are sliced off after)
    def padb(a):
        return jnp.pad(a, ((0, BP - Bx),) + ((0, 0),) * (a.ndim - 1))

    ctx_pad = padb(ctx_tok_features.reshape(Bx, Ux * Tx, F)).reshape(BP * Ux * Tx, F)
    kb_pad = padb(kb_sum).reshape(BP * Kx, kb_sum.shape[2])
    feat_cat = jnp.concatenate([ctx_pad, kb_pad], axis=0)                    # (N_ROWS, E)

    # single fused Pallas launch: query_transform -> graph reasoning -> tok_copier
    # (ctx + kb share one matmul) -> masked softmax -> one-hot scatter fused with the
    # inter_prob mix.  Output is lane-dense (BP, 128); slice back to (B, V).
    copy_prob_pad = fused_reward_call(
        p, padb(query_cat), padb(dlg_src_feats), feat_cat,
        padb(ctx_mask), padb(kb_mask),
        padb(uttr_vocab_indices.reshape(Bx, Ux * Tx).astype(jnp.int32)),
        padb(kb_vocab_indices.astype(jnp.int32)),
    )
    copy_prob = copy_prob_pad[:Bx, :V]         # max(vocab_size) is static (= V) here

    tprobs = copy_prob[batch_idx, targets]
    losses = -1.0 * jnp.log(tprobs)
    loss = jnp.mean(losses)
    return loss, copy_prob, losses


if __name__ == "__main__":
    key = jax.random.PRNGKey(0)
    kparams, kin = jax.random.split(key)
    params = init_params(kparams)

    ks = iter(jax.random.split(kin, 32))
    tokens = jax.random.randint(next(ks), (B, U, T), 1, VOCAB_EMB, dtype=jnp.int32)
    token_tags = jax.random.randint(next(ks), (B, U, T), 1, VOCAB_EMB, dtype=jnp.int32)
    token_lens = jax.random.randint(next(ks), (B, U), 1, T + 1, dtype=jnp.int32)
    dlg_lens = jax.random.randint(next(ks), (B,), 1, U + 1, dtype=jnp.int32)
    kb_tokens = jax.random.randint(next(ks), (B, K), 1, VOCAB_EMB, dtype=jnp.int32)
    kb_types = jax.random.randint(next(ks), (B, K), 1, VOCAB_EMB, dtype=jnp.int32)
    kb_lens = jax.random.randint(next(ks), (B,), 1, K + 1, dtype=jnp.int32)
    adjacency = jax.random.uniform(next(ks), (B, K, K), dtype=jnp.float32)
    pos_tokens = jax.random.randint(next(ks), (B, U), 1, VOCAB_EMB, dtype=jnp.int32)
    ent_uttr_idx = jax.random.randint(next(ks), (B,), 0, U, dtype=jnp.int32)
    ent_uttr_pos = jax.random.randint(next(ks), (B,), 0, T, dtype=jnp.int32)
    uttr_vocab_indices = jnp.tile(
        (jnp.arange(U * T, dtype=jnp.int32) % V).reshape(1, U, T), (B, 1, 1))
    kb_vocab_indices = jax.random.randint(next(ks), (B, K), 0, V, dtype=jnp.int32)
    vocab_size = jnp.full((B,), V, dtype=jnp.int32)
    targets = uttr_vocab_indices[:, 0, 0]   # always an unmasked source position

    fwd = jax.jit(mem_reward_forward)
    loss, copy_prob, losses = fwd(params, tokens, token_tags, token_lens, dlg_lens,
                                  kb_tokens, kb_types, kb_lens, adjacency, pos_tokens,
                                  ent_uttr_idx, ent_uttr_pos, uttr_vocab_indices,
                                  kb_vocab_indices, vocab_size, targets)
    jax.block_until_ready((loss, copy_prob, losses))
    print("KERNEL_OK")
</pallas_src>

<mosaic_0001>
module attributes {stable_mosaic.version = 11 : i64} {
  func.func @fused_reward_kernel(%arg0: i32, %arg1: memref<8x64xf32, #tpu.memory_space<vmem>>, %arg2: memref<8x32xf32, #tpu.memory_space<vmem>>, %arg3: memref<320x32xf32, #tpu.memory_space<vmem>>, %arg4: memref<8x32xf32, #tpu.memory_space<vmem>>, %arg5: memref<8x8xf32, #tpu.memory_space<vmem>>, %arg6: memref<8x32xi32, #tpu.memory_space<vmem>>, %arg7: memref<8x8xi32, #tpu.memory_space<vmem>>, %arg8: memref<200x64xf32, #tpu.memory_space<vmem>>, %arg9: memref<104x32xf32, #tpu.memory_space<vmem>>, %arg10: memref<104x256xf32, #tpu.memory_space<vmem>>, %arg11: memref<40x128xf32, #tpu.memory_space<vmem>>, %arg12: memref<8x128xf32, #tpu.memory_space<vmem>>) attributes {dimension_semantics = [#tpu.dimension_semantics<arbitrary>], iteration_bounds = array<i64: 1>, scalar_prefetch = 0 : i64, scratch_operands = 0 : i64, tpu.core_type = #tpu.core_type<tc>, window_params = [{pipeline_mode = #tpu.pipeline_mode<synchronous>, transform_indices = @transform_0, window_bounds = array<i64: 8, 64>}, {pipeline_mode = #tpu.pipeline_mode<synchronous>, transform_indices = @transform_1, window_bounds = array<i64: 8, 32>}, {pipeline_mode = #tpu.pipeline_mode<synchronous>, transform_indices = @transform_2, window_bounds = array<i64: 320, 32>}, {pipeline_mode = #tpu.pipeline_mode<synchronous>, transform_indices = @transform_3, window_bounds = array<i64: 8, 32>}, {pipeline_mode = #tpu.pipeline_mode<synchronous>, transform_indices = @transform_4, window_bounds = array<i64: 8, 8>}, {pipeline_mode = #tpu.pipeline_mode<synchronous>, transform_indices = @transform_5, window_bounds = array<i64: 8, 32>}, {pipeline_mode = #tpu.pipeline_mode<synchronous>, transform_indices = @transform_6, window_bounds = array<i64: 8, 8>}, {pipeline_mode = #tpu.pipeline_mode<synchronous>, transform_indices = @transform_7, window_bounds = array<i64: 200, 64>}, {pipeline_mode = #tpu.pipeline_mode<synchronous>, transform_indices = @transform_8, window_bounds = array<i64: 104, 32>}, {pipeline_mode = #tpu.pipeline_mode<synchronous>, transform_indices = @transform_9, window_bounds = array<i64: 104, 256>}, {pipeline_mode = #tpu.pipeline_mode<synchronous>, transform_indices = @transform_10, window_bounds = array<i64: 40, 128>}, {pipeline_mode = #tpu.pipeline_mode<synchronous>, transform_indices = @transform_11, window_bounds = array<i64: 8, 128>}]} {
    %c0 = arith.constant 0 : index
    %c0_0 = arith.constant 0 : index
    %0 = vector.load %arg8[%c0, %c0_0] : memref<200x64xf32, #tpu.memory_space<vmem>>, vector<64x64xf32>
    %c64 = arith.constant 64 : index
    %c0_1 = arith.constant 0 : index
    %1 = vector.load %arg8[%c64, %c0_1] : memref<200x64xf32, #tpu.memory_space<vmem>>, vector<64x64xf32>
    %c128 = arith.constant 128 : index
    %c0_2 = arith.constant 0 : index
    %2 = vector.load %arg8[%c128, %c0_2] : memref<200x64xf32, #tpu.memory_space<vmem>>, vector<64x32xf32>
    %c192 = arith.constant 192 : index
    %c0_3 = arith.constant 0 : index
    %3 = vector.load %arg8[%c192, %c0_3] : memref<200x64xf32, #tpu.memory_space<vmem>>, vector<8x64xf32>
    %4 = vector.extract_strided_slice %3 {offsets = [0, 0], sizes = [1, 64], strides = [1, 1]} : vector<8x64xf32> to vector<1x64xf32>
    %5 = vector.extract_strided_slice %3 {offsets = [1, 0], sizes = [1, 64], strides = [1, 1]} : vector<8x64xf32> to vector<1x64xf32>
    %6 = vector.extract_strided_slice %3 {offsets = [2, 0], sizes = [1, 32], strides = [1, 1]} : vector<8x64xf32> to vector<1x32xf32>
    %c0_4 = arith.constant 0 : index
    %c0_5 = arith.constant 0 : index
    %7 = vector.load %arg9[%c0_4, %c0_5] : memref<104x32xf32, #tpu.memory_space<vmem>>, vector<32x32xf32>
    %c32 = arith.constant 32 : index
    %c0_6 = arith.constant 0 : index
    %8 = vector.load %arg9[%c32, %c0_6] : memref<104x32xf32, #tpu.memory_space<vmem>>, vector<32x32xf32>
    %c64_7 = arith.constant 64 : index
    %c0_8 = arith.constant 0 : index
    %9 = vector.load %arg9[%c64_7, %c0_8] : memref<104x32xf32, #tpu.memory_space<vmem>>, vector<32x32xf32>
    %c96 = arith.constant 96 : index
    %c0_9 = arith.constant 0 : index
    %10 = vector.load %arg9[%c96, %c0_9] : memref<104x32xf32, #tpu.memory_space<vmem>>, vector<8x32xf32>
    %11 = vector.extract_strided_slice %10 {offsets = [0, 0], sizes = [1, 32], strides = [1, 1]} : vector<8x32xf32> to vector<1x32xf32>
    %12 = vector.extract_strided_slice %10 {offsets = [1, 0], sizes = [1, 32], strides = [1, 1]} : vector<8x32xf32> to vector<1x32xf32>
    %c0_10 = arith.constant 0 : index
    %c0_11 = arith.constant 0 : index
    %13 = vector.load %arg10[%c0_10, %c0_11] : memref<104x256xf32, #tpu.memory_space<vmem>>, vector<32x256xf32>
    %c32_12 = arith.constant 32 : index
    %c0_13 = arith.constant 0 : index
    %14 = vector.load %arg10[%c32_12, %c0_13] : memref<104x256xf32, #tpu.memory_space<vmem>>, vector<32x256xf32>
    %c64_14 = arith.constant 64 : index
    %c0_15 = arith.constant 0 : index
    %15 = vector.load %arg10[%c64_14, %c0_15] : memref<104x256xf32, #tpu.memory_space<vmem>>, vector<32x256xf32>
    %c96_16 = arith.constant 96 : index
    %c0_17 = arith.constant 0 : index
    %16 = vector.load %arg10[%c96_16, %c0_17] : memref<104x256xf32, #tpu.memory_space<vmem>>, vector<8x256xf32>
    %17 = vector.extract_strided_slice %16 {offsets = [0, 0], sizes = [1, 256], strides = [1, 1]} : vector<8x256xf32> to vector<1x256xf32>
    %18 = vector.extract_strided_slice %16 {offsets = [1, 0], sizes = [1, 256], strides = [1, 1]} : vector<8x256xf32> to vector<1x256xf32>
    %19 = vector.extract_strided_slice %16 {offsets = [2, 0], sizes = [1, 256], strides = [1, 1]} : vector<8x256xf32> to vector<1x256xf32>
    %20 = vector.extract_strided_slice %16 {offsets = [3, 0], sizes = [1, 256], strides = [1, 1]} : vector<8x256xf32> to vector<1x256xf32>
    %c0_18 = arith.constant 0 : index
    %c0_19 = arith.constant 0 : index
    %21 = vector.load %arg11[%c0_18, %c0_19] : memref<40x128xf32, #tpu.memory_space<vmem>>, vector<32x128xf32>
    %c32_20 = arith.constant 32 : index
    %c0_21 = arith.constant 0 : index
    %22 = vector.load %arg11[%c32_20, %c0_21] : memref<40x128xf32, #tpu.memory_space<vmem>>, vector<8x128xf32>
    %23 = vector.extract_strided_slice %22 {offsets = [0, 0], sizes = [1, 128], strides = [1, 1]} : vector<8x128xf32> to vector<1x128xf32>
    %24 = vector.extract_strided_slice %22 {offsets = [1, 0], sizes = [1, 128], strides = [1, 1]} : vector<8x128xf32> to vector<1x128xf32>
    %25 = vector.extract_strided_slice %22 {offsets = [2, 0], sizes = [1, 128], strides = [1, 1]} : vector<8x128xf32> to vector<1x128xf32>
    %26 = vector.extract_strided_slice %22 {offsets = [3, 0], sizes = [1, 128], strides = [1, 1]} : vector<8x128xf32> to vector<1x128xf32>
    %c0_22 = arith.constant 0 : index
    %c0_23 = arith.constant 0 : index
    %27 = vector.load %arg1[%c0_22, %c0_23] : memref<8x64xf32, #tpu.memory_space<vmem>>, vector<8x64xf32>
    %cst = arith.constant dense<0.000000e+00> : vector<8x64xf32>
    %28 = tpu.matmul %27, %0, %cst {dimension_numbers = #tpu.dot_dimension_numbers<[1], [0], [0], [1], [0, 0, 1, 1], [], []>} : vector<8x64xf32>, vector<64x64xf32>, vector<8x64xf32> -> vector<8x64xf32>
    %29 = vector.broadcast %4 : vector<1x64xf32> to vector<8x64xf32>
    %30 = arith.addf %28, %29 : vector<8x64xf32>
    %31 = math.tanh %30 : vector<8x64xf32>
    %32 = arith.addf %31, %27 : vector<8x64xf32>
    %cst_24 = arith.constant dense<0.000000e+00> : vector<8x64xf32>
    %33 = tpu.matmul %32, %1, %cst_24 {dimension_numbers = #tpu.dot_dimension_numbers<[1], [0], [0], [1], [0, 0, 1, 1], [], []>} : vector<8x64xf32>, vector<64x64xf32>, vector<8x64xf32> -> vector<8x64xf32>
    %34 = vector.broadcast %5 : vector<1x64xf32> to vector<8x64xf32>
    %35 = arith.addf %33, %34 : vector<8x64xf32>
    %36 = math.tanh %35 : vector<8x64xf32>
    %37 = arith.addf %36, %32 : vector<8x64xf32>
    %cst_25 = arith.constant dense<0.000000e+00> : vector<8x32xf32>
    %38 = tpu.matmul %37, %2, %cst_25 {dimension_numbers = #tpu.dot_dimension_numbers<[1], [0], [0], [1], [0, 0, 1, 1], [], []>} : vector<8x64xf32>, vector<64x32xf32>, vector<8x32xf32> -> vector<8x32xf32>
    %39 = vector.broadcast %6 : vector<1x32xf32> to vector<8x32xf32>
    %40 = arith.addf %38, %39 : vector<8x32xf32>
    %41 = math.tanh %40 : vector<8x32xf32>
    %c0_26 = arith.constant 0 : index
    %c0_27 = arith.constant 0 : index
    %42 = vector.load %arg2[%c0_26, %c0_27] : memref<8x32xf32, #tpu.memory_space<vmem>>, vector<8x32xf32>
    %c0_28 = arith.constant 0 : index
    %c0_29 = arith.constant 0 : index
    %43 = vector.load %arg3[%c0_28, %c0_29] : memref<320x32xf32, #tpu.memory_space<vmem>>, vector<256x32xf32>
    %c256 = arith.constant 256 : index
    %c0_30 = arith.constant 0 : index
    %44 = vector.load %arg3[%c256, %c0_30] : memref<320x32xf32, #tpu.memory_space<vmem>>, vector<64x32xf32>
    %cst_31 = arith.constant dense<0.000000e+00> : vector<64x32xf32>
    %45 = tpu.matmul %44, %7, %cst_31 {dimension_numbers = #tpu.dot_dimension_numbers<[1], [0], [0], [1], [0, 0, 1, 1], [], []>} : vector<64x32xf32>, vector<32x32xf32>, vector<64x32xf32> -> vector<64x32xf32>
    %46 = vector.broadcast %11 : vector<1x32xf32> to vector<64x32xf32>
    %47 = arith.addf %45, %46 : vector<64x32xf32>
    %48 = math.tanh %47 : vector<64x32xf32>
    %49 = vector.shape_cast %48 : vector<64x32xf32> to vector<8x8x32xf32>
    %cst_32 = arith.constant dense<0.000000e+00> : vector<8x32xf32>
    %50 = vector.multi_reduction <add>, %49, %cst_32 [1] : vector<8x8x32xf32> to vector<8x32xf32>
    %cst_33 = arith.constant 8.000000e+00 : f32
    %51 = vector.broadcast %cst_33 : f32 to vector<8x32xf32>
    %52 = arith.divf %50, %51 : vector<8x32xf32>
    %cst_34 = arith.constant dense<0.000000e+00> : vector<8x32xf32>
    %53 = tpu.matmul %41, %8, %cst_34 {dimension_numbers = #tpu.dot_dimension_numbers<[1], [0], [0], [1], [0, 0, 1, 1], [], []>} : vector<8x32xf32>, vector<32x32xf32>, vector<8x32xf32> -> vector<8x32xf32>
    %cst_35 = arith.constant dense<0.000000e+00> : vector<8x32xf32>
    %54 = tpu.matmul %52, %9, %cst_35 {dimension_numbers = #tpu.dot_dimension_numbers<[1], [0], [0], [1], [0, 0, 1, 1], [], []>} : vector<8x32xf32>, vector<32x32xf32>, vector<8x32xf32> -> vector<8x32xf32>
    %55 = arith.addf %53, %54 : vector<8x32xf32>
    %56 = vector.broadcast %12 : vector<1x32xf32> to vector<8x32xf32>
    %57 = arith.addf %55, %56 : vector<8x32xf32>
    %58 = math.tanh %57 : vector<8x32xf32>
    %cst_36 = arith.constant dense<0.000000e+00> : vector<8x256xf32>
    %59 = tpu.matmul %58, %14, %cst_36 {dimension_numbers = #tpu.dot_dimension_numbers<[1], [0], [0], [1], [0, 0, 1, 1], [], []>} : vector<8x32xf32>, vector<32x256xf32>, vector<8x256xf32> -> vector<8x256xf32>
    %cst_37 = arith.constant dense<0.000000e+00> : vector<8x256xf32>
    %60 = tpu.matmul %42, %15, %cst_37 {dimension_numbers = #tpu.dot_dimension_numbers<[1], [0], [0], [1], [0, 0, 1, 1], [], []>} : vector<8x32xf32>, vector<32x256xf32>, vector<8x256xf32> -> vector<8x256xf32>
    %61 = arith.addf %59, %60 : vector<8x256xf32>
    %62 = vector.broadcast %17 : vector<1x256xf32> to vector<8x256xf32>
    %63 = arith.addf %61, %62 : vector<8x256xf32>
    %64 = tpu.concatenate %43, %48 in 0 : vector<256x32xf32>, vector<64x32xf32> -> vector<320x32xf32>
    %cst_38 = arith.constant dense<0.000000e+00> : vector<320x256xf32>
    %65 = tpu.matmul %64, %13, %cst_38 {dimension_numbers = #tpu.dot_dimension_numbers<[1], [0], [0], [1], [0, 0, 1, 1], [], []>} : vector<320x32xf32>, vector<32x256xf32>, vector<320x256xf32> -> vector<320x256xf32>
    %66 = vector.extract_strided_slice %65 {offsets = [0, 0], sizes = [256, 256], strides = [1, 1]} : vector<320x256xf32> to vector<256x256xf32>
    %67 = vector.shape_cast %66 : vector<256x256xf32> to vector<8x32x256xf32>
    %68 = vector.shape_cast %63 : vector<8x256xf32> to vector<8x1x256xf32>
    %69 = vector.broadcast %68 : vector<8x1x256xf32> to vector<8x32x256xf32>
    %70 = arith.addf %67, %69 : vector<8x32x256xf32>
    %cst_39 = arith.constant dense<0.000000e+00> : vector<8x32xf32>
    %71 = vector.multi_reduction <add>, %70, %cst_39 [2] : vector<8x32x256xf32> to vector<8x32xf32>
    %72 = vector.shape_cast %71 : vector<8x32xf32> to vector<8x32x1xf32>
    %cst_40 = arith.constant 5.000000e-03 : f32
    %73 = vector.broadcast %cst_40 : f32 to vector<8x32x1xf32>
    %74 = arith.mulf %72, %73 : vector<8x32x1xf32>
    %75 = arith.mulf %70, %70 : vector<8x32x256xf32>
    %cst_41 = arith.constant dense<0.000000e+00> : vector<8x32xf32>
    %76 = vector.multi_reduction <add>, %75, %cst_41 [2] : vector<8x32x256xf32> to vector<8x32xf32>
    %77 = vector.shape_cast %76 : vector<8x32xf32> to vector<8x32x1xf32>
    %cst_42 = arith.constant 5.000000e-03 : f32
    %78 = vector.broadcast %cst_42 : f32 to vector<8x32x1xf32>
    %79 = arith.mulf %77, %78 : vector<8x32x1xf32>
    %80 = arith.mulf %74, %74 : vector<8x32x1xf32>
    %81 = arith.subf %79, %80 : vector<8x32x1xf32>
    %82 = vector.broadcast %74 : vector<8x32x1xf32> to vector<8x32x256xf32>
    %83 = arith.subf %70, %82 : vector<8x32x256xf32>
    %cst_43 = arith.constant 9.99999974E-6 : f32
    %84 = vector.broadcast %cst_43 : f32 to vector<8x32x1xf32>
    %85 = arith.addf %81, %84 : vector<8x32x1xf32>
    %86 = math.rsqrt %85 : vector<8x32x1xf32>
    %87 = vector.broadcast %86 : vector<8x32x1xf32> to vector<8x32x256xf32>
    %88 = arith.mulf %83, %87 : vector<8x32x256xf32>
    %89 = vector.shape_cast %18 : vector<1x256xf32> to vector<1x1x256xf32>
    %90 = vector.broadcast %89 : vector<1x1x256xf32> to vector<8x32x256xf32>
    %91 = arith.mulf %88, %90 : vector<8x32x256xf32>
    %92 = vector.shape_cast %19 : vector<1x256xf32> to vector<1x1x256xf32>
    %93 = vector.broadcast %92 : vector<1x1x256xf32> to vector<8x32x256xf32>
    %94 = arith.addf %91, %93 : vector<8x32x256xf32>
    %cst_44 = arith.constant 0.000000e+00 : f32
    %95 = vector.broadcast %cst_44 : f32 to vector<8x32x256xf32>
    %96 = arith.maximumf %94, %95 : vector<8x32x256xf32>
    %97 = vector.shape_cast %20 : vector<1x256xf32> to vector<1x1x256xf32>
    %98 = vector.broadcast %97 : vector<1x1x256xf32> to vector<8x32x256xf32>
    %99 = arith.mulf %96, %98 : vector<8x32x256xf32>
    %cst_45 = arith.constant dense<0.000000e+00> : vector<8x32xf32>
    %100 = vector.multi_reduction <add>, %99, %cst_45 [2] : vector<8x32x256xf32> to vector<8x32xf32>
    %101 = vector.extract_strided_slice %65 {offsets = [256, 0], sizes = [64, 256], strides = [1, 1]} : vector<320x256xf32> to vector<64x256xf32>
    %102 = vector.shape_cast %101 : vector<64x256xf32> to vector<8x8x256xf32>
    %103 = vector.shape_cast %63 : vector<8x256xf32> to vector<8x1x256xf32>
    %104 = vector.broadcast %103 : vector<8x1x256xf32> to vector<8x8x256xf32>
    %105 = arith.addf %102, %104 : vector<8x8x256xf32>
    %cst_46 = arith.constant dense<0.000000e+00> : vector<8x8xf32>
    %106 = vector.multi_reduction <add>, %105, %cst_46 [2] : vector<8x8x256xf32> to vector<8x8xf32>
    %107 = vector.shape_cast %106 : vector<8x8xf32> to vector<8x8x1xf32>
    %cst_47 = arith.constant 5.000000e-03 : f32
    %108 = vector.broadcast %cst_47 : f32 to vector<8x8x1xf32>
    %109 = arith.mulf %107, %108 : vector<8x8x1xf32>
    %110 = arith.mulf %105, %105 : vector<8x8x256xf32>
    %cst_48 = arith.constant dense<0.000000e+00> : vector<8x8xf32>
    %111 = vector.multi_reduction <add>, %110, %cst_48 [2] : vector<8x8x256xf32> to vector<8x8xf32>
    %112 = vector.shape_cast %111 : vector<8x8xf32> to vector<8x8x1xf32>
    %cst_49 = arith.constant 5.000000e-03 : f32
    %113 = vector.broadcast %cst_49 : f32 to vector<8x8x1xf32>
    %114 = arith.mulf %112, %113 : vector<8x8x1xf32>
    %115 = arith.mulf %109, %109 : vector<8x8x1xf32>
    %116 = arith.subf %114, %115 : vector<8x8x1xf32>
    %117 = vector.broadcast %109 : vector<8x8x1xf32> to vector<8x8x256xf32>
    %118 = arith.subf %105, %117 : vector<8x8x256xf32>
    %cst_50 = arith.constant 9.99999974E-6 : f32
    %119 = vector.broadcast %cst_50 : f32 to vector<8x8x1xf32>
    %120 = arith.addf %116, %119 : vector<8x8x1xf32>
    %121 = math.rsqrt %120 : vector<8x8x1xf32>
    %122 = vector.broadcast %121 : vector<8x8x1xf32> to vector<8x8x256xf32>
    %123 = arith.mulf %118, %122 : vector<8x8x256xf32>
    %124 = vector.shape_cast %18 : vector<1x256xf32> to vector<1x1x256xf32>
    %125 = vector.broadcast %124 : vector<1x1x256xf32> to vector<8x8x256xf32>
    %126 = arith.mulf %123, %125 : vector<8x8x256xf32>
    %127 = vector.shape_cast %19 : vector<1x256xf32> to vector<1x1x256xf32>
    %128 = vector.broadcast %127 : vector<1x1x256xf32> to vector<8x8x256xf32>
    %129 = arith.addf %126, %128 : vector<8x8x256xf32>
    %cst_51 = arith.constant 0.000000e+00 : f32
    %130 = vector.broadcast %cst_51 : f32 to vector<8x8x256xf32>
    %131 = arith.maximumf %129, %130 : vector<8x8x256xf32>
    %132 = vector.shape_cast %20 : vector<1x256xf32> to vector<1x1x256xf32>
    %133 = vector.broadcast %132 : vector<1x1x256xf32> to vector<8x8x256xf32>
    %134 = arith.mulf %131, %133 : vector<8x8x256xf32>
    %cst_52 = arith.constant dense<0.000000e+00> : vector<8x8xf32>
    %135 = vector.multi_reduction <add>, %134, %cst_52 [2] : vector<8x8x256xf32> to vector<8x8xf32>
    %c0_53 = arith.constant 0 : index
    %c0_54 = arith.constant 0 : index
    %136 = vector.load %arg4[%c0_53, %c0_54] : memref<8x32xf32, #tpu.memory_space<vmem>>, vector<8x32xf32>
    %cst_55 = arith.constant 0.000000e+00 : f32
    %137 = vector.broadcast %cst_55 : f32 to vector<8x32xf32>
    %138 = arith.cmpf ogt, %136, %137 : vector<8x32xf32>
    %cst_56 = arith.constant -9.999900e+04 : f32
    %139 = vector.broadcast %cst_56 : f32 to vector<8x32xf32>
    %140 = arith.select %138, %100, %139 : vector<8x32xi1>, vector<8x32xf32>
    %cst_57 = arith.constant dense<0xFF800000> : vector<8xf32>
    %141 = vector.multi_reduction <maximumf>, %140, %cst_57 [1] : vector<8x32xf32> to vector<8xf32>
    %142 = vector.shape_cast %141 : vector<8xf32> to vector<8x1xf32>
    %143 = vector.broadcast %142 : vector<8x1xf32> to vector<8x32xf32>
    %144 = arith.subf %140, %143 : vector<8x32xf32>
    %145 = math.exp %144 : vector<8x32xf32>
    %cst_58 = arith.constant dense<0.000000e+00> : vector<8xf32>
    %146 = vector.multi_reduction <add>, %145, %cst_58 [1] : vector<8x32xf32> to vector<8xf32>
    %147 = vector.shape_cast %146 : vector<8xf32> to vector<8x1xf32>
    %148 = tpu.reciprocal %147 {approx = true} : vector<8x1xf32> -> vector<8x1xf32>
    %149 = arith.mulf %147, %148 : vector<8x1xf32>
    %cst_59 = arith.constant 2.000000e+00 : f32
    %150 = vector.broadcast %cst_59 : f32 to vector<8x1xf32>
    %151 = arith.subf %150, %149 : vector<8x1xf32>
    %152 = arith.mulf %148, %151 : vector<8x1xf32>
    %153 = vector.broadcast %152 : vector<8x1xf32> to vector<8x32xf32>
    %154 = arith.mulf %145, %153 : vector<8x32xf32>
    %c0_60 = arith.constant 0 : index
    %c0_61 = arith.constant 0 : index
    %155 = vector.load %arg5[%c0_60, %c0_61] : memref<8x8xf32, #tpu.memory_space<vmem>>, vector<8x8xf32>
    %cst_62 = arith.constant 0.000000e+00 : f32
    %156 = vector.broadcast %cst_62 : f32 to vector<8x8xf32>
    %157 = arith.cmpf ogt, %155, %156 : vector<8x8xf32>
    %cst_63 = arith.constant -9.999900e+04 : f32
    %158 = vector.broadcast %cst_63 : f32 to vector<8x8xf32>
    %159 = arith.select %157, %135, %158 : vector<8x8xi1>, vector<8x8xf32>
    %cst_64 = arith.constant dense<0xFF800000> : vector<8xf32>
    %160 = vector.multi_reduction <maximumf>, %159, %cst_64 [1] : vector<8x8xf32> to vector<8xf32>
    %161 = vector.shape_cast %160 : vector<8xf32> to vector<8x1xf32>
    %162 = vector.broadcast %161 : vector<8x1xf32> to vector<8x8xf32>
    %163 = arith.subf %159, %162 : vector<8x8xf32>
    %164 = math.exp %163 : vector<8x8xf32>
    %cst_65 = arith.constant dense<0.000000e+00> : vector<8xf32>
    %165 = vector.multi_reduction <add>, %164, %cst_65 [1] : vector<8x8xf32> to vector<8xf32>
    %166 = vector.shape_cast %165 : vector<8xf32> to vector<8x1xf32>
    %167 = tpu.reciprocal %166 {approx = true} : vector<8x1xf32> -> vector<8x1xf32>
    %168 = arith.mulf %166, %167 : vector<8x1xf32>
    %cst_66 = arith.constant 2.000000e+00 : f32
    %169 = vector.broadcast %cst_66 : f32 to vector<8x1xf32>
    %170 = arith.subf %169, %168 : vector<8x1xf32>
    %171 = arith.mulf %167, %170 : vector<8x1xf32>
    %172 = vector.broadcast %171 : vector<8x1xf32> to vector<8x8xf32>
    %173 = arith.mulf %164, %172 : vector<8x8xf32>
    %cst_67 = arith.constant dense<0.000000e+00> : vector<8x128xf32>
    %174 = tpu.matmul %58, %21, %cst_67 {dimension_numbers = #tpu.dot_dimension_numbers<[1], [0], [0], [1], [0, 0, 1, 1], [], []>} : vector<8x32xf32>, vector<32x128xf32>, vector<8x128xf32> -> vector<8x128xf32>
    %175 = vector.broadcast %23 : vector<1x128xf32> to vector<8x128xf32>
    %176 = arith.addf %174, %175 : vector<8x128xf32>
    %cst_68 = arith.constant dense<0.000000e+00> : vector<8xf32>
    %177 = vector.multi_reduction <add>, %176, %cst_68 [1] : vector<8x128xf32> to vector<8xf32>
    %178 = vector.shape_cast %177 : vector<8xf32> to vector<8x1xf32>
    %cst_69 = arith.constant 0.00999999977 : f32
    %179 = vector.broadcast %cst_69 : f32 to vector<8x1xf32>
    %180 = arith.mulf %178, %179 : vector<8x1xf32>
    %181 = arith.mulf %176, %176 : vector<8x128xf32>
    %cst_70 = arith.constant dense<0.000000e+00> : vector<8xf32>
    %182 = vector.multi_reduction <add>, %181, %cst_70 [1] : vector<8x128xf32> to vector<8xf32>
    %183 = vector.shape_cast %182 : vector<8xf32> to vector<8x1xf32>
    %cst_71 = arith.constant 0.00999999977 : f32
    %184 = vector.broadcast %cst_71 : f32 to vector<8x1xf32>
    %185 = arith.mulf %183, %184 : vector<8x1xf32>
    %186 = arith.mulf %180, %180 : vector<8x1xf32>
    %187 = arith.subf %185, %186 : vector<8x1xf32>
    %188 = vector.broadcast %180 : vector<8x1xf32> to vector<8x128xf32>
    %189 = arith.subf %176, %188 : vector<8x128xf32>
    %cst_72 = arith.constant 9.99999974E-6 : f32
    %190 = vector.broadcast %cst_72 : f32 to vector<8x1xf32>
    %191 = arith.addf %187, %190 : vector<8x1xf32>
    %192 = math.rsqrt %191 : vector<8x1xf32>
    %193 = vector.broadcast %192 : vector<8x1xf32> to vector<8x128xf32>
    %194 = arith.mulf %189, %193 : vector<8x128xf32>
    %195 = vector.broadcast %24 : vector<1x128xf32> to vector<8x128xf32>
    %196 = arith.mulf %194, %195 : vector<8x128xf32>
    %197 = vector.broadcast %25 : vector<1x128xf32> to vector<8x128xf32>
    %198 = arith.addf %196, %197 : vector<8x128xf32>
    %cst_73 = arith.constant 0.000000e+00 : f32
    %199 = vector.broadcast %cst_73 : f32 to vector<8x128xf32>
    %200 = arith.maximumf %198, %199 : vector<8x128xf32>
    %201 = vector.broadcast %26 : vector<1x128xf32> to vector<8x128xf32>
    %202 = arith.mulf %200, %201 : vector<8x128xf32>
    %cst_74 = arith.constant dense<0.000000e+00> : vector<8xf32>
    %203 = vector.multi_reduction <add>, %202, %cst_74 [1] : vector<8x128xf32> to vector<8xf32>
    %204 = vector.shape_cast %203 : vector<8xf32> to vector<8x1xf32>
    %205 = arith.negf %204 : vector<8x1xf32>
    %206 = math.exp %205 : vector<8x1xf32>
    %cst_75 = arith.constant 1.000000e+00 : f32
    %207 = vector.broadcast %cst_75 : f32 to vector<8x1xf32>
    %208 = arith.addf %207, %206 : vector<8x1xf32>
    %209 = arith.divf %207, %208 : vector<8x1xf32>
    %210 = tpu.iota {dimensions = array<i32: 2>} : vector<8x32x128xi32>
    %c0_76 = arith.constant 0 : index
    %c0_77 = arith.constant 0 : index
    %211 = vector.load %arg6[%c0_76, %c0_77] : memref<8x32xi32, #tpu.memory_space<vmem>>, vector<8x32xi32>
    %212 = vector.shape_cast %211 : vector<8x32xi32> to vector<8x32x1xi32>
    %213 = vector.broadcast %212 : vector<8x32x1xi32> to vector<8x32x128xi32>
    %214 = arith.cmpi eq, %210, %213 : vector<8x32x128xi32>
    %215 = arith.extui %214 : vector<8x32x128xi1> to vector<8x32x128xi32>
    %216 = arith.sitofp %215 : vector<8x32x128xi32> to vector<8x32x128xf32>
    %217 = vector.extract_strided_slice %210 {offsets = [0, 0, 0], sizes = [8, 8, 128], strides = [1, 1, 1]} : vector<8x32x128xi32> to vector<8x8x128xi32>
    %c0_78 = arith.constant 0 : index
    %c0_79 = arith.constant 0 : index
    %218 = vector.load %arg7[%c0_78, %c0_79] : memref<8x8xi32, #tpu.memory_space<vmem>>, vector<8x8xi32>
    %219 = vector.shape_cast %218 : vector<8x8xi32> to vector<8x8x1xi32>
    %220 = vector.broadcast %219 : vector<8x8x1xi32> to vector<8x8x128xi32>
    %221 = arith.cmpi eq, %217, %220 : vector<8x8x128xi32>
    %222 = arith.extui %221 : vector<8x8x128xi1> to vector<8x8x128xi32>
    %223 = arith.sitofp %222 : vector<8x8x128xi32> to vector<8x8x128xf32>
    %224 = vector.broadcast %209 : vector<8x1xf32> to vector<8x32xf32>
    %225 = arith.mulf %224, %154 : vector<8x32xf32>
    %226 = vector.shape_cast %225 : vector<8x32xf32> to vector<8x32x1xf32>
    %227 = vector.broadcast %226 : vector<8x32x1xf32> to vector<8x32x128xf32>
    %228 = arith.mulf %227, %216 : vector<8x32x128xf32>
    %cst_80 = arith.constant dense<0.000000e+00> : vector<8x128xf32>
    %229 = vector.multi_reduction <add>, %228, %cst_80 [1] : vector<8x32x128xf32> to vector<8x128xf32>
    %cst_81 = arith.constant 1.000000e+00 : f32
    %230 = vector.broadcast %cst_81 : f32 to vector<8x1xf32>
    %231 = arith.subf %230, %209 : vector<8x1xf32>
    %232 = vector.broadcast %231 : vector<8x1xf32> to vector<8x8xf32>
    %233 = arith.mulf %232, %173 : vector<8x8xf32>
    %234 = vector.shape_cast %233 : vector<8x8xf32> to vector<8x8x1xf32>
    %235 = vector.broadcast %234 : vector<8x8x1xf32> to vector<8x8x128xf32>
    %236 = arith.mulf %235, %223 : vector<8x8x128xf32>
    %cst_82 = arith.constant dense<0.000000e+00> : vector<8x128xf32>
    %237 = vector.multi_reduction <add>, %236, %cst_82 [1] : vector<8x8x128xf32> to vector<8x128xf32>
    %238 = arith.addf %229, %237 : vector<8x128xf32>
    %c0_83 = arith.constant 0 : index
    %c0_84 = arith.constant 0 : index
    %239 = vector.load %arg12[%c0_83, %c0_84] : memref<8x128xf32, #tpu.memory_space<vmem>>, vector<8x128xf32>
    tpu.vector_store %arg12[%c0_83, %c0_84], %238 {strides = array<i32>} : memref<8x128xf32, #tpu.memory_space<vmem>>, vector<8x128xf32>,
    return
  }
  func.func @transform_0(%arg0: i32) -> (i32, i32) {
    %c0_i32 = arith.constant 0 : i32
    %c0_i32_0 = arith.constant 0 : i32
    %c0_i32_1 = arith.constant 0 : i32
    return %c0_i32, %c0_i32_0 : i32, i32
  }
  func.func @transform_1(%arg0: i32) -> (i32, i32) {
    %c0_i32 = arith.constant 0 : i32
    %c0_i32_0 = arith.constant 0 : i32
    %c0_i32_1 = arith.constant 0 : i32
    return %c0_i32, %c0_i32_0 : i32, i32
  }
  func.func @transform_2(%arg0: i32) -> (i32, i32) {
    %c0_i32 = arith.constant 0 : i32
    %c0_i32_0 = arith.constant 0 : i32
    %c0_i32_1 = arith.constant 0 : i32
    return %c0_i32, %c0_i32_0 : i32, i32
  }
  func.func @transform_3(%arg0: i32) -> (i32, i32) {
    %c0_i32 = arith.constant 0 : i32
    %c0_i32_0 = arith.constant 0 : i32
    %c0_i32_1 = arith.constant 0 : i32
    return %c0_i32, %c0_i32_0 : i32, i32
  }
  func.func @transform_4(%arg0: i32) -> (i32, i32) {
    %c0_i32 = arith.constant 0 : i32
    %c0_i32_0 = arith.constant 0 : i32
    %c0_i32_1 = arith.constant 0 : i32
    return %c0_i32, %c0_i32_0 : i32, i32
  }
  func.func @transform_5(%arg0: i32) -> (i32, i32) {
    %c0_i32 = arith.constant 0 : i32
    %c0_i32_0 = arith.constant 0 : i32
    %c0_i32_1 = arith.constant 0 : i32
    return %c0_i32, %c0_i32_0 : i32, i32
  }
  func.func @transform_6(%arg0: i32) -> (i32, i32) {
    %c0_i32 = arith.constant 0 : i32
    %c0_i32_0 = arith.constant 0 : i32
    %c0_i32_1 = arith.constant 0 : i32
    return %c0_i32, %c0_i32_0 : i32, i32
  }
  func.func @transform_7(%arg0: i32) -> (i32, i32) {
    %c0_i32 = arith.constant 0 : i32
    %c0_i32_0 = arith.constant 0 : i32
    %c0_i32_1 = arith.constant 0 : i32
    return %c0_i32, %c0_i32_0 : i32, i32
  }
  func.func @transform_8(%arg0: i32) -> (i32, i32) {
    %c0_i32 = arith.constant 0 : i32
    %c0_i32_0 = arith.constant 0 : i32
    %c0_i32_1 = arith.constant 0 : i32
    return %c0_i32, %c0_i32_0 : i32, i32
  }
  func.func @transform_9(%arg0: i32) -> (i32, i32) {
    %c0_i32 = arith.constant 0 : i32
    %c0_i32_0 = arith.constant 0 : i32
    %c0_i32_1 = arith.constant 0 : i32
    return %c0_i32, %c0_i32_0 : i32, i32
  }
  func.func @transform_10(%arg0: i32) -> (i32, i32) {
    %c0_i32 = arith.constant 0 : i32
    %c0_i32_0 = arith.constant 0 : i32
    %c0_i32_1 = arith.constant 0 : i32
    return %c0_i32, %c0_i32_0 : i32, i32
  }
  func.func @transform_11(%arg0: i32) -> (i32, i32) {
    %c0_i32 = arith.constant 0 : i32
    %c0_i32_0 = arith.constant 0 : i32
    %c0_i32_1 = arith.constant 0 : i32
    return %c0_i32, %c0_i32_0 : i32, i32
  }
}

</mosaic_0001>

<llo_original>
// kernel: mem_reward_forward.1
$region0: #{mem_reward_forward.1}
  #allocation0 [shape = 'u32[]', space=smem, size = 0x4, offset = 0x4, fixed_abs, tag = 'smem constant byte address 0x4 - core index']
  #allocation1 [shape = 'u32[144,128]{1,0:T(1,128)}', space=vmem, size = 0x12000, scoped, tag = 'internal scratch']
  %s0 = inlined_call_operand.vmem [shape: f32[8,64], index: 0, kind: input, shape index: {}]
  %s1 = inlined_call_operand.vmem [shape: f32[8,32], index: 1, kind: input, shape index: {}]
  %s2 = inlined_call_operand.vmem [shape: f32[320,32], index: 2, kind: input, shape index: {}]
  %s3 = inlined_call_operand.vmem [shape: f32[8,32], index: 3, kind: input, shape index: {}]
  %s4 = inlined_call_operand.vmem [shape: f32[8,8], index: 4, kind: input, shape index: {}]
  %s5 = inlined_call_operand.vmem [shape: s32[8,32], index: 5, kind: input, shape index: {}]
  %s6 = inlined_call_operand.vmem [shape: s32[8,8], index: 6, kind: input, shape index: {}]
  %s7 = inlined_call_operand.vmem [shape: f32[200,64], index: 7, kind: input, shape index: {}]
  %s8 = inlined_call_operand.vmem [shape: f32[104,32], index: 8, kind: input, shape index: {}]
  %s9 = inlined_call_operand.vmem [shape: f32[104,256], index: 9, kind: input, shape index: {}]
  %s10 = inlined_call_operand.vmem [shape: f32[40,128], index: 10, kind: input, shape index: {}]
  %s11 = inlined_call_operand.vmem [shape: f32[8,128], index: 11, kind: output, shape index: {}]
  %s12 = sld [smem:[#allocation0]]
  $region54: #{mem_reward_forward.1} parent=0
    _
  %s14 = ssub.s32 1, %s12
  %s15 = scalar_select 0, %s14, %s12
  // Predicated region
  $region2: #{mem_reward_forward.1} parent=0 // pred_check
    _
  $region3: #{mem_reward_forward.1} parent=0 // pred_check_branch
    %17 = sbr.rel (0) target = $region5
  $region4: #{mem_reward_forward.1} parent=0 // pred_region
    _
  $region5: #{mem_reward_forward.1} parent=0 // pred_fallthru
    _
  // Predicated region
  $region6: #{mem_reward_forward.1} parent=0 // pred_check
    _
  $region7: #{mem_reward_forward.1} parent=0 // pred_check_branch
    %19 = sbr.rel (0) target = $region9
  $region8: #{mem_reward_forward.1} parent=0 // pred_region
    _
  $region9: #{mem_reward_forward.1} parent=0 // pred_fallthru
    _
  // Predicated region
  $region10: #{mem_reward_forward.1} parent=0 // pred_check
    _
  $region11: #{mem_reward_forward.1} parent=0 // pred_check_branch
    %21 = sbr.rel (0) target = $region13
  $region12: #{mem_reward_forward.1} parent=0 // pred_region
    _
  $region13: #{mem_reward_forward.1} parent=0 // pred_fallthru
    _
  // Predicated region
  $region14: #{mem_reward_forward.1} parent=0 // pred_check
    _
  $region15: #{mem_reward_forward.1} parent=0 // pred_check_branch
    %23 = sbr.rel (0) target = $region17
  $region16: #{mem_reward_forward.1} parent=0 // pred_region
    _
  $region17: #{mem_reward_forward.1} parent=0 // pred_fallthru
    _
  // Predicated region
  $region18: #{mem_reward_forward.1} parent=0 // pred_check
    _
  $region19: #{mem_reward_forward.1} parent=0 // pred_check_branch
    %25 = sbr.rel (0) target = $region21
  $region20: #{mem_reward_forward.1} parent=0 // pred_region
    _
  $region21: #{mem_reward_forward.1} parent=0 // pred_fallthru
    _
  // Predicated region
  $region22: #{mem_reward_forward.1} parent=0 // pred_check
    _
  $region23: #{mem_reward_forward.1} parent=0 // pred_check_branch
    %27 = sbr.rel (0) target = $region25
  $region24: #{mem_reward_forward.1} parent=0 // pred_region
    _
  $region25: #{mem_reward_forward.1} parent=0 // pred_fallthru
    _
  // Predicated region
  $region26: #{mem_reward_forward.1} parent=0 // pred_check
    _
  $region27: #{mem_reward_forward.1} parent=0 // pred_check_branch
    %29 = sbr.rel (0) target = $region29
  $region28: #{mem_reward_forward.1} parent=0 // pred_region
    _
  $region29: #{mem_reward_forward.1} parent=0 // pred_fallthru
    _
  // Predicated region
  $region30: #{mem_reward_forward.1} parent=0 // pred_check
    _
  $region31: #{mem_reward_forward.1} parent=0 // pred_check_branch
    %31 = sbr.rel (0) target = $region33
  $region32: #{mem_reward_forward.1} parent=0 // pred_region
    _
  $region33: #{mem_reward_forward.1} parent=0 // pred_fallthru
    _
  // Predicated region
  $region34: #{mem_reward_forward.1} parent=0 // pred_check
    _
  $region35: #{mem_reward_forward.1} parent=0 // pred_check_branch
    %33 = sbr.rel (0) target = $region37
  $region36: #{mem_reward_forward.1} parent=0 // pred_region
    _
  $region37: #{mem_reward_forward.1} parent=0 // pred_fallthru
    _
  // Predicated region
  $region38: #{mem_reward_forward.1} parent=0 // pred_check
    _
  $region39: #{mem_reward_forward.1} parent=0 // pred_check_branch
    %35 = sbr.rel (0) target = $region41
  $region40: #{mem_reward_forward.1} parent=0 // pred_region
    _
  $region41: #{mem_reward_forward.1} parent=0 // pred_fallthru
    _
  // Predicated region
  $region42: #{mem_reward_forward.1} parent=0 // pred_check
    _
  $region43: #{mem_reward_forward.1} parent=0 // pred_check_branch
    %37 = sbr.rel (0) target = $region45
  $region44: #{mem_reward_forward.1} parent=0 // pred_region
    _
  $region45: #{mem_reward_forward.1} parent=0 // pred_fallthru
    _
  %v38 = vld [vmem:[%s7] sm:$0xff]
  %v39 = vld [vmem:[%s7 + $0x8] sm:$0xff]
  %v40 = vld [vmem:[%s7 + $0x10] sm:$0xff]
  %v41 = vld [vmem:[%s7 + $0x18] sm:$0xff]
  %v42 = vld [vmem:[%s7 + $0x20] sm:$0xff]
  %v43 = vld [vmem:[%s7 + $0x28] sm:$0xff]
  %v44 = vld [vmem:[%s7 + $0x30] sm:$0xff]
  %v45 = vld [vmem:[%s7 + $0x38] sm:$0xff]
  %v46 = vld [vmem:[%s7 + $0x40] sm:$0xff]
  %v47 = vld [vmem:[%s7 + $0x48] sm:$0xff]
  %v48 = vld [vmem:[%s7 + $0x50] sm:$0xff]
  %v49 = vld [vmem:[%s7 + $0x58] sm:$0xff]
  %v50 = vld [vmem:[%s7 + $0x60] sm:$0xff]
  %v51 = vld [vmem:[%s7 + $0x68] sm:$0xff]
  %v52 = vld [vmem:[%s7 + $0x70] sm:$0xff]
  %v53 = vld [vmem:[%s7 + $0x78] sm:$0xff]
  %v54 = vld [vmem:[%s7 + $0x80] sm:$0xff]
  %v55 = vld [vmem:[%s7 + $0x88] sm:$0xff]
  %v56 = vld [vmem:[%s7 + $0x90] sm:$0xff]
  %v57 = vld [vmem:[%s7 + $0x98] sm:$0xff]
  %v58 = vld [vmem:[%s7 + $0xa0] sm:$0xff]
  %v59 = vld [vmem:[%s7 + $0xa8] sm:$0xff]
  %v60 = vld [vmem:[%s7 + $0xb0] sm:$0xff]
  %v61 = vld [vmem:[%s7 + $0xb8] sm:$0xff]
  %v62 = vld [vmem:[%s7 + $0xc0] sm:$0xff]
  %v63 = vld [vmem:[%s8] sm:$0xff]
  %v64 = vld [vmem:[%s8 + $0x8] sm:$0xff]
  %v65 = vld [vmem:[%s8 + $0x10] sm:$0xff]
  %v66 = vld [vmem:[%s8 + $0x18] sm:$0xff]
  %v67 = vld [vmem:[%s8 + $0x20] sm:$0xff]
  %v68 = vld [vmem:[%s8 + $0x28] sm:$0xff]
  %v69 = vld [vmem:[%s8 + $0x30] sm:$0xff]
  %v70 = vld [vmem:[%s8 + $0x38] sm:$0xff]
  %v71 = vld [vmem:[%s8 + $0x40] sm:$0xff]
  %v72 = vld [vmem:[%s8 + $0x48] sm:$0xff]
  %v73 = vld [vmem:[%s8 + $0x50] sm:$0xff]
  %v74 = vld [vmem:[%s8 + $0x58] sm:$0xff]
  %v75 = vld [vmem:[%s8 + $0x60] sm:$0xff]
  %v76 = vld [vmem:[%s9] sm:$0xff]
  %v77 = vld [vmem:[%s9 + $0x8] sm:$0xff]
  %v78 = vld [vmem:[%s9 + $0x10] sm:$0xff]
  %v79 = vld [vmem:[%s9 + $0x18] sm:$0xff]
  %v80 = vld [vmem:[%s9 + $0x20] sm:$0xff]
  %v81 = vld [vmem:[%s9 + $0x28] sm:$0xff]
  %v82 = vld [vmem:[%s9 + $0x30] sm:$0xff]
  %v83 = vld [vmem:[%s9 + $0x38] sm:$0xff]
  %v84 = vld [vmem:[%s9 + $0x40] sm:$0xff]
  %v85 = vld [vmem:[%s9 + $0x48] sm:$0xff]
  %v86 = vld [vmem:[%s9 + $0x50] sm:$0xff]
  %v87 = vld [vmem:[%s9 + $0x58] sm:$0xff]
  %v88 = vld [vmem:[%s9 + $0x60] sm:$0xff]
  %v89 = vld [vmem:[%s9 + $0x68] sm:$0xff]
  %v90 = vld [vmem:[%s9 + $0x70] sm:$0xff]
  %v91 = vld [vmem:[%s9 + $0x78] sm:$0xff]
  %v92 = vld [vmem:[%s9 + $0x80] sm:$0xff]
  %v93 = vld [vmem:[%s9 + $0x88] sm:$0xff]
  %v94 = vld [vmem:[%s9 + $0x90] sm:$0xff]
  %v95 = vld [vmem:[%s9 + $0x98] sm:$0xff]
  %v96 = vld [vmem:[%s9 + $0xa0] sm:$0xff]
  %v97 = vld [vmem:[%s9 + $0xa8] sm:$0xff]
  %v98 = vld [vmem:[%s9 + $0xb0] sm:$0xff]
  %v99 = vld [vmem:[%s9 + $0xb8] sm:$0xff]
  %v100 = vld [vmem:[%s9 + $0xc0] sm:$0xff]
  %v101 = vld [vmem:[%s9 + $0xc8] sm:$0xff]
  %v102 = vld [vmem:[%s10] sm:$0xff]
  %v103 = vld [vmem:[%s10 + $0x8] sm:$0xff]
  %v104 = vld [vmem:[%s10 + $0x10] sm:$0xff]
  %v105 = vld [vmem:[%s10 + $0x18] sm:$0xff]
  %v106 = vld [vmem:[%s10 + $0x20] sm:$0xff]
  %v107 = vld [vmem:[%s0] sm:$0xff]
  %v108 = vlaneseq
  %v109 = vshrl.u32 %v108, 7
  %v110 = vsub.s32 0, %v109
  %v111 = vrot.slane %v62, %v110
  %vm112 = vcmask 523264
  %v114 = vsel %vm112, %v107, 0
  %116 = vmatprep.subr.mxu0 0.0
  %117 = vmatpush1.msra.mxu0 0.0
  %118 = vmatprep.subr.mxu0 0.0
  %119 = vmatpush1.msra.mxu0 0.0
  %120 = vmatprep.subr.mxu0 0.0
  %121 = vmatpush1.msra.mxu0 0.0
  %122 = vmatprep.subr.mxu0 0.0
  %123 = vmatpush1.msra.mxu0 0.0
  %124 = vmatprep.subr.mxu0 0.0
  %125 = vmatpush1.msra.mxu0 0.0
  %126 = vmatprep.subr.mxu0 0.0
  %127 = vmatpush1.msra.mxu0 0.0
  %128 = vmatprep.subr.mxu0 0.0
  %129 = vmatpush1.msra.mxu0 0.0
  %130 = vmatprep.subr.mxu0 0.0
  %131 = vmatpush1.msra.mxu0 0.0
  %132 = vmatprep.subr.mxu0 0.0
  %133 = vmatpush1.msra.mxu0 %v45
  %134 = vmatprep.subr.mxu0 0.0
  %135 = vmatpush1.msra.mxu0 %v44
  %136 = vmatprep.subr.mxu0 0.0
  %137 = vmatpush1.msra.mxu0 %v43
  %138 = vmatprep.subr.mxu0 0.0
  %139 = vmatpush1.msra.mxu0 %v42
  %140 = vmatprep.subr.mxu0 0.0
  %141 = vmatpush1.msra.mxu0 %v41
  %142 = vmatprep.subr.mxu0 0.0
  %143 = vmatpush1.msra.mxu0 %v40
  %144 = vmatprep.subr.mxu0 0.0
  %145 = vmatpush1.msra.mxu0 %v39
  %146 = vmatprep.subr.mxu0 0.0
  %147 = vmatpush1.msra.mxu0 %v38
  %148 = vmatprep.subr.mxu0 0.0
  %149 = vmatpush2.msra.mxu0 0.0
  %150 = vmatprep.subr.mxu0 0.0
  %151 = vmatpush2.msra.mxu0 0.0
  %152 = vmatprep.subr.mxu0 0.0
  %153 = vmatpush2.msra.mxu0 0.0
  %154 = vmatprep.subr.mxu0 0.0
  %155 = vmatpush2.msra.mxu0 0.0
  %156 = vmatprep.subr.mxu0 0.0
  %157 = vmatpush2.msra.mxu0 0.0
  %158 = vmatprep.subr.mxu0 0.0
  %159 = vmatpush2.msra.mxu0 0.0
  %160 = vmatprep.subr.mxu0 0.0
  %161 = vmatpush2.msra.mxu0 0.0
  %162 = vmatprep.subr.mxu0 0.0
  %163 = vmatpush2.msra.mxu0 0.0
  %164 = vmatprep.subr.mxu0 0.0
  %165 = vmatpush2.msra.mxu0 0.0
  %166 = vmatprep.subr.mxu0 0.0
  %167 = vmatpush2.msra.mxu0 0.0
  %168 = vmatprep.subr.mxu0 0.0
  %169 = vmatpush2.msra.mxu0 0.0
  %170 = vmatprep.subr.mxu0 0.0
  %171 = vmatpush2.msra.mxu0 0.0
  %172 = vmatprep.subr.mxu0 0.0
  %173 = vmatpush2.msra.mxu0 0.0
  %174 = vmatprep.subr.mxu0 0.0
  %175 = vmatpush2.msra.mxu0 0.0
  %176 = vmatprep.subr.mxu0 0.0
  %177 = vmatpush2.msra.mxu0 0.0
  %178 = vmatprep.subr.mxu0 0.0
  %179 = vmatpush2.msra.mxu0 0.0
  %180 = vmatprep.mubr.f32.mxu0 0.0
  %181 = vmatmul.mubr.f32.gmra.mxu0 %v114
  %v182 = vpop.f32.mrf.mxu0
  %v183 = vadd.f32 %v111, %v182
  %v184 = vpop.f32.mrf.mxu0
  %185 = vdwg.mxu0
  %v186 = vtanh.pop %v183
  %v187 = vadd.f32 %v186, %v107
  %v188 = vlaneseq
  %v189 = vshrl.u32 %v188, 7
  %v190 = vsub.s32 1, %v189
  %v191 = vrot.slane %v62, %v190
  %v193 = vsel %vm112, %v187, 0
  %195 = vmatprep.subr.mxu0 0.0
  %196 = vmatpush1.msra.mxu0 0.0
  %197 = vmatprep.subr.mxu0 0.0
  %198 = vmatpush1.msra.mxu0 0.0
  %199 = vmatprep.subr.mxu0 0.0
  %200 = vmatpush1.msra.mxu0 0.0
  %201 = vmatprep.subr.mxu0 0.0
  %202 = vmatpush1.msra.mxu0 0.0
  %203 = vmatprep.subr.mxu0 0.0
  %204 = vmatpush1.msra.mxu0 0.0
  %205 = vmatprep.subr.mxu0 0.0
  %206 = vmatpush1.msra.mxu0 0.0
  %207 = vmatprep.subr.mxu0 0.0
  %208 = vmatpush1.msra.mxu0 0.0
  %209 = vmatprep.subr.mxu0 0.0
  %210 = vmatpush1.msra.mxu0 0.0
  %211 = vmatprep.subr.mxu0 0.0
  %212 = vmatpush1.msra.mxu0 %v53
  %213 = vmatprep.subr.mxu0 0.0
  %214 = vmatpush1.msra.mxu0 %v52
  %215 = vmatprep.subr.mxu0 0.0
  %216 = vmatpush1.msra.mxu0 %v51
  %217 = vmatprep.subr.mxu0 0.0
  %218 = vmatpush1.msra.mxu0 %v50
  %219 = vmatprep.subr.mxu0 0.0
  %220 = vmatpush1.msra.mxu0 %v49
  %221 = vmatprep.subr.mxu0 0.0
  %222 = vmatpush1.msra.mxu0 %v48
  %223 = vmatprep.subr.mxu0 0.0
  %224 = vmatpush1.msra.mxu0 %v47
  %225 = vmatprep.subr.mxu0 0.0
  %226 = vmatpush1.msra.mxu0 %v46
  %227 = vmatprep.subr.mxu0 0.0
  %228 = vmatpush2.msra.mxu0 0.0
  %229 = vmatprep.subr.mxu0 0.0
  %230 = vmatpush2.msra.mxu0 0.0
  %231 = vmatprep.subr.mxu0 0.0
  %232 = vmatpush2.msra.mxu0 0.0
  %233 = vmatprep.subr.mxu0 0.0
  %234 = vmatpush2.msra.mxu0 0.0
  %235 = vmatprep.subr.mxu0 0.0
  %236 = vmatpush2.msra.mxu0 0.0
  %237 = vmatprep.subr.mxu0 0.0
  %238 = vmatpush2.msra.mxu0 0.0
  %239 = vmatprep.subr.mxu0 0.0
  %240 = vmatpush2.msra.mxu0 0.0
  %241 = vmatprep.subr.mxu0 0.0
  %242 = vmatpush2.msra.mxu0 0.0
  %243 = vmatprep.subr.mxu0 0.0
  %244 = vmatpush2.msra.mxu0 0.0
  %245 = vmatprep.subr.mxu0 0.0
  %246 = vmatpush2.msra.mxu0 0.0
  %247 = vmatprep.subr.mxu0 0.0
  %248 = vmatpush2.msra.mxu0 0.0
  %249 = vmatprep.subr.mxu0 0.0
  %250 = vmatpush2.msra.mxu0 0.0
  %251 = vmatprep.subr.mxu0 0.0
  %252 = vmatpush2.msra.mxu0 0.0
  %253 = vmatprep.subr.mxu0 0.0
  %254 = vmatpush2.msra.mxu0 0.0
  %255 = vmatprep.subr.mxu0 0.0
  %256 = vmatpush2.msra.mxu0 0.0
  %257 = vmatprep.subr.mxu0 0.0
  %258 = vmatpush2.msra.mxu0 0.0
  %259 = vmatprep.mubr.f32.mxu0 0.0
  %260 = vmatmul.mubr.f32.gmra.mxu0 %v193
  %v261 = vpop.f32.mrf.mxu0
  %v262 = vadd.f32 %v191, %v261
  %v263 = vpop.f32.mrf.mxu0
  %264 = vdwg.mxu0
  %v265 = vtanh.pop %v262
  %v266 = vadd.f32 %v265, %v187
  %v267 = vlaneseq
  %v268 = vshrl.u32 %v267, 7
  %v269 = vsub.s32 2, %v268
  %v270 = vrot.slane %v62, %v269
  %v272 = vsel %vm112, %v266, 0
  %274 = vmatprep.subr.mxu0 0.0
  %275 = vmatpush1.msra.mxu0 0.0
  %276 = vmatprep.subr.mxu0 0.0
  %277 = vmatpush1.msra.mxu0 0.0
  %278 = vmatprep.subr.mxu0 0.0
  %279 = vmatpush1.msra.mxu0 0.0
  %280 = vmatprep.subr.mxu0 0.0
  %281 = vmatpush1.msra.mxu0 0.0
  %282 = vmatprep.subr.mxu0 0.0
  %283 = vmatpush1.msra.mxu0 0.0
  %284 = vmatprep.subr.mxu0 0.0
  %285 = vmatpush1.msra.mxu0 0.0
  %286 = vmatprep.subr.mxu0 0.0
  %287 = vmatpush1.msra.mxu0 0.0
  %288 = vmatprep.subr.mxu0 0.0
  %289 = vmatpush1.msra.mxu0 0.0
  %290 = vmatprep.subr.mxu0 0.0
  %291 = vmatpush1.msra.mxu0 %v61
  %292 = vmatprep.subr.mxu0 0.0
  %293 = vmatpush1.msra.mxu0 %v60
  %294 = vmatprep.subr.mxu0 0.0
  %295 = vmatpush1.msra.mxu0 %v59
  %296 = vmatprep.subr.mxu0 0.0
  %297 = vmatpush1.msra.mxu0 %v58
  %298 = vmatprep.subr.mxu0 0.0
  %299 = vmatpush1.msra.mxu0 %v57
  %300 = vmatprep.subr.mxu0 0.0
  %301 = vmatpush1.msra.mxu0 %v56
  %302 = vmatprep.subr.mxu0 0.0
  %303 = vmatpush1.msra.mxu0 %v55
  %304 = vmatprep.subr.mxu0 0.0
  %305 = vmatpush1.msra.mxu0 %v54
  %306 = vmatprep.subr.mxu0 0.0
  %307 = vmatpush2.msra.mxu0 0.0
  %308 = vmatprep.subr.mxu0 0.0
  %309 = vmatpush2.msra.mxu0 0.0
  %310 = vmatprep.subr.mxu0 0.0
  %311 = vmatpush2.msra.mxu0 0.0
  %312 = vmatprep.subr.mxu0 0.0
  %313 = vmatpush2.msra.mxu0 0.0
  %314 = vmatprep.subr.mxu0 0.0
  %315 = vmatpush2.msra.mxu0 0.0
  %316 = vmatprep.subr.mxu0 0.0
  %317 = vmatpush2.msra.mxu0 0.0
  %318 = vmatprep.subr.mxu0 0.0
  %319 = vmatpush2.msra.mxu0 0.0
  %320 = vmatprep.subr.mxu0 0.0
  %321 = vmatpush2.msra.mxu0 0.0
  %322 = vmatprep.subr.mxu0 0.0
  %323 = vmatpush2.msra.mxu0 0.0
  %324 = vmatprep.subr.mxu0 0.0
  %325 = vmatpush2.msra.mxu0 0.0
  %326 = vmatprep.subr.mxu0 0.0
  %327 = vmatpush2.msra.mxu0 0.0
  %328 = vmatprep.subr.mxu0 0.0
  %329 = vmatpush2.msra.mxu0 0.0
  %330 = vmatprep.subr.mxu0 0.0
  %331 = vmatpush2.msra.mxu0 0.0
  %332 = vmatprep.subr.mxu0 0.0
  %333 = vmatpush2.msra.mxu0 0.0
  %334 = vmatprep.subr.mxu0 0.0
  %335 = vmatpush2.msra.mxu0 0.0
  %336 = vmatprep.subr.mxu0 0.0
  %337 = vmatpush2.msra.mxu0 0.0
  %338 = vmatprep.mubr.f32.mxu0 0.0
  %339 = vmatmul.mubr.f32.gmra.mxu0 %v272
  %v340 = vpop.f32.mrf.mxu0
  %v341 = vadd.f32 %v270, %v340
  %v342 = vpop.f32.mrf.mxu0
  %343 = vdwg.mxu0
  %v344 = vtanh.pop %v341
  %v345 = vld [vmem:[%s1] sm:$0xff]
  %v346 = vld [vmem:[%s2] sm:$0xff]
  %v347 = vld [vmem:[%s2 + $0x8] sm:$0xff]
  %v348 = vld [vmem:[%s2 + $0x10] sm:$0xff]
  %v349 = vld [vmem:[%s2 + $0x18] sm:$0xff]
  %v350 = vld [vmem:[%s2 + $0x20] sm:$0xff]
  %v351 = vld [vmem:[%s2 + $0x28] sm:$0xff]
  %v352 = vld [vmem:[%s2 + $0x30] sm:$0xff]
  %v353 = vld [vmem:[%s2 + $0x38] sm:$0xff]
  %v354 = vld [vmem:[%s2 + $0x40] sm:$0xff]
  %v355 = vld [vmem:[%s2 + $0x48] sm:$0xff]
  %v356 = vld [vmem:[%s2 + $0x50] sm:$0xff]
  %v357 = vld [vmem:[%s2 + $0x58] sm:$0xff]
  %v358 = vld [vmem:[%s2 + $0x60] sm:$0xff]
  %v359 = vld [vmem:[%s2 + $0x68] sm:$0xff]
  %v360 = vld [vmem:[%s2 + $0x70] sm:$0xff]
  %v361 = vld [vmem:[%s2 + $0x78] sm:$0xff]
  %v362 = vld [vmem:[%s2 + $0x80] sm:$0xff]
  %v363 = vld [vmem:[%s2 + $0x88] sm:$0xff]
  %v364 = vld [vmem:[%s2 + $0x90] sm:$0xff]
  %v365 = vld [vmem:[%s2 + $0x98] sm:$0xff]
  %v366 = vld [vmem:[%s2 + $0xa0] sm:$0xff]
  %v367 = vld [vmem:[%s2 + $0xa8] sm:$0xff]
  %v368 = vld [vmem:[%s2 + $0xb0] sm:$0xff]
  %v369 = vld [vmem:[%s2 + $0xb8] sm:$0xff]
  %v370 = vld [vmem:[%s2 + $0xc0] sm:$0xff]
  %v371 = vld [vmem:[%s2 + $0xc8] sm:$0xff]
  %v372 = vld [vmem:[%s2 + $0xd0] sm:$0xff]
  %v373 = vld [vmem:[%s2 + $0xd8] sm:$0xff]
  %v374 = vld [vmem:[%s2 + $0xe0] sm:$0xff]
  %v375 = vld [vmem:[%s2 + $0xe8] sm:$0xff]
  %v376 = vld [vmem:[%s2 + $0xf0] sm:$0xff]
  %v377 = vld [vmem:[%s2 + $0xf8] sm:$0xff]
  %v378 = vld [vmem:[%s2 + $0x100] sm:$0xff]
  %v379 = vld [vmem:[%s2 + $0x108] sm:$0xff]
  %v380 = vld [vmem:[%s2 + $0x110] sm:$0xff]
  %v381 = vld [vmem:[%s2 + $0x118] sm:$0xff]
  %v382 = vld [vmem:[%s2 + $0x120] sm:$0xff]
  %v383 = vld [vmem:[%s2 + $0x128] sm:$0xff]
  %v384 = vld [vmem:[%s2 + $0x130] sm:$0xff]
  %v385 = vld [vmem:[%s2 + $0x138] sm:$0xff]
  %v386 = vlaneseq
  %v387 = vshrl.u32 %v386, 7
  %v388 = vsub.s32 0, %v387
  %v389 = vrot.slane %v75, %v388
  %vm390 = vcmask 261120
  %v392 = vsel %vm390, %v378, 0
  %v395 = vsel %vm390, %v379, 0
  %v398 = vsel %vm390, %v380, 0
  %v401 = vsel %vm390, %v381, 0
  %v404 = vsel %vm390, %v382, 0
  %v407 = vsel %vm390, %v383, 0
  %v410 = vsel %vm390, %v384, 0
  %v413 = vsel %vm390, %v385, 0
  %415 = vmatprep.subr.mxu0 0.0
  %416 = vmatpush1.msra.mxu0 0.0
  %417 = vmatprep.subr.mxu0 0.0
  %418 = vmatpush1.msra.mxu0 0.0
  %419 = vmatprep.subr.mxu0 0.0
  %420 = vmatpush1.msra.mxu0 0.0
  %421 = vmatprep.subr.mxu0 0.0
  %422 = vmatpush1.msra.mxu0 0.0
  %423 = vmatprep.subr.mxu0 0.0
  %424 = vmatpush1.msra.mxu0 0.0
  %425 = vmatprep.subr.mxu0 0.0
  %426 = vmatpush1.msra.mxu0 0.0
  %427 = vmatprep.subr.mxu0 0.0
  %428 = vmatpush1.msra.mxu0 0.0
  %429 = vmatprep.subr.mxu0 0.0
  %430 = vmatpush1.msra.mxu0 0.0
  %431 = vmatprep.subr.mxu0 0.0
  %432 = vmatpush1.msra.mxu0 0.0
  %433 = vmatprep.subr.mxu0 0.0
  %434 = vmatpush1.msra.mxu0 0.0
  %435 = vmatprep.subr.mxu0 0.0
  %436 = vmatpush1.msra.mxu0 0.0
  %437 = vmatprep.subr.mxu0 0.0
  %438 = vmatpush1.msra.mxu0 0.0
  %439 = vmatprep.subr.mxu0 0.0
  %440 = vmatpush1.msra.mxu0 %v66
  %441 = vmatprep.subr.mxu0 0.0
  %442 = vmatpush1.msra.mxu0 %v65
  %443 = vmatprep.subr.mxu0 0.0
  %444 = vmatpush1.msra.mxu0 %v64
  %445 = vmatprep.subr.mxu0 0.0
  %446 = vmatpush1.msra.mxu0 %v63
  %447 = vmatprep.subr.mxu0 0.0
  %448 = vmatpush2.msra.mxu0 0.0
  %449 = vmatprep.subr.mxu0 0.0
  %450 = vmatpush2.msra.mxu0 0.0
  %451 = vmatprep.subr.mxu0 0.0
  %452 = vmatpush2.msra.mxu0 0.0
  %453 = vmatprep.subr.mxu0 0.0
  %454 = vmatpush2.msra.mxu0 0.0
  %455 = vmatprep.subr.mxu0 0.0
  %456 = vmatpush2.msra.mxu0 0.0
  %457 = vmatprep.subr.mxu0 0.0
  %458 = vmatpush2.msra.mxu0 0.0
  %459 = vmatprep.subr.mxu0 0.0
  %460 = vmatpush2.msra.mxu0 0.0
  %461 = vmatprep.subr.mxu0 0.0
  %462 = vmatpush2.msra.mxu0 0.0
  %463 = vmatprep.subr.mxu0 0.0
  %464 = vmatpush2.msra.mxu0 0.0
  %465 = vmatprep.subr.mxu0 0.0
  %466 = vmatpush2.msra.mxu0 0.0
  %467 = vmatprep.subr.mxu0 0.0
  %468 = vmatpush2.msra.mxu0 0.0
  %469 = vmatprep.subr.mxu0 0.0
  %470 = vmatpush2.msra.mxu0 0.0
  %471 = vmatprep.subr.mxu0 0.0
  %472 = vmatpush2.msra.mxu0 0.0
  %473 = vmatprep.subr.mxu0 0.0
  %474 = vmatpush2.msra.mxu0 0.0
  %475 = vmatprep.subr.mxu0 0.0
  %476 = vmatpush2.msra.mxu0 0.0
  %477 = vmatprep.subr.mxu0 0.0
  %478 = vmatpush2.msra.mxu0 0.0
  %479 = vmatprep.mubr.f32.mxu0 0.0
  %480 = vmatmul.mubr.f32.gmra.mxu0 %v392
  %v481 = vpop.f32.mrf.mxu0
  %v482 = vadd.f32 %v389, %v481
  %v483 = vpop.f32.mrf.mxu0
  %484 = vmatprep.mubr.f32.mxu0 0.0
  %485 = vmatmul.mubr.f32.gmra.mxu0 %v395
  %v486 = vpop.f32.mrf.mxu0
  %v487 = vadd.f32 %v389, %v486
  %v488 = vpop.f32.mrf.mxu0
  %489 = vmatprep.mubr.f32.mxu0 0.0
  %490 = vmatmul.mubr.f32.gmra.mxu0 %v398
  %v491 = vpop.f32.mrf.mxu0
  %v492 = vadd.f32 %v389, %v491
  %v493 = vpop.f32.mrf.mxu0
  %494 = vmatprep.mubr.f32.mxu0 0.0
  %495 = vmatmul.mubr.f32.gmra.mxu0 %v401
  %v496 = vpop.f32.mrf.mxu0
  %v497 = vadd.f32 %v389, %v496
  %v498 = vpop.f32.mrf.mxu0
  %499 = vmatprep.mubr.f32.mxu0 0.0
  %500 = vmatmul.mubr.f32.gmra.mxu0 %v404
  %v501 = vpop.f32.mrf.mxu0
  %v502 = vadd.f32 %v389, %v501
  %v503 = vpop.f32.mrf.mxu0
  %504 = vmatprep.mubr.f32.mxu0 0.0
  %505 = vmatmul.mubr.f32.gmra.mxu0 %v407
  %v506 = vpop.f32.mrf.mxu0
  %v507 = vadd.f32 %v389, %v506
  %v508 = vpop.f32.mrf.mxu0
  %509 = vmatprep.mubr.f32.mxu0 0.0
  %510 = vmatmul.mubr.f32.gmra.mxu0 %v410
  %v511 = vpop.f32.mrf.mxu0
  %v512 = vadd.f32 %v389, %v511
  %v513 = vpop.f32.mrf.mxu0
  %514 = vmatprep.mubr.f32.mxu0 0.0
  %515 = vmatmul.mubr.f32.gmra.mxu0 %v413
  %v516 = vpop.f32.mrf.mxu0
  %v517 = vadd.f32 %v389, %v516
  %v518 = vpop.f32.mrf.mxu0
  %519 = vdwg.mxu0
  %v520 = vtanh.pop %v482
  %v521 = vtanh.pop %v487
  %v522 = vtanh.pop %v492
  %v523 = vtanh.pop %v497
  %v524 = vtanh.pop %v502
  %v525 = vtanh.pop %v507
  %v526 = vtanh.pop %v512
  %v527 = vtanh.pop %v517
  %v528 = vsel %vm390, %v520, 0.0
  %v529 = vrot.slane %v528, 4
  %v530 = vadd.f32 %v528, %v529
  %v531 = vrot.slane %v530, 2
  %v532 = vadd.f32 %v530, %v531
  %v533 = vrot.slane %v532, 1
  %v534 = vadd.f32 %v532, %v533
  %v535 = vsel %vm390, %v521, 0.0
  %v536 = vrot.slane %v535, 4
  %v537 = vadd.f32 %v535, %v536
  %v538 = vrot.slane %v537, 2
  %v539 = vadd.f32 %v537, %v538
  %v540 = vrot.slane %v539, 1
  %v541 = vadd.f32 %v539, %v540
  %v542 = vsel %vm390, %v522, 0.0
  %v543 = vrot.slane %v542, 4
  %v544 = vadd.f32 %v542, %v543
  %v545 = vrot.slane %v544, 2
  %v546 = vadd.f32 %v544, %v545
  %v547 = vrot.slane %v546, 1
  %v548 = vadd.f32 %v546, %v547
  %v549 = vsel %vm390, %v523, 0.0
  %v550 = vrot.slane %v549, 4
  %v551 = vadd.f32 %v549, %v550
  %v552 = vrot.slane %v551, 2
  %v553 = vadd.f32 %v551, %v552
  %v554 = vrot.slane %v553, 1
  %v555 = vadd.f32 %v553, %v554
  %v556 = vsel %vm390, %v524, 0.0
  %v557 = vrot.slane %v556, 4
  %v558 = vadd.f32 %v556, %v557
  %v559 = vrot.slane %v558, 2
  %v560 = vadd.f32 %v558, %v559
  %v561 = vrot.slane %v560, 1
  %v562 = vadd.f32 %v560, %v561
  %v563 = vsel %vm390, %v525, 0.0
  %v564 = vrot.slane %v563, 4
  %v565 = vadd.f32 %v563, %v564
  %v566 = vrot.slane %v565, 2
  %v567 = vadd.f32 %v565, %v566
  %v568 = vrot.slane %v567, 1
  %v569 = vadd.f32 %v567, %v568
  %v570 = vsel %vm390, %v526, 0.0
  %v571 = vrot.slane %v570, 4
  %v572 = vadd.f32 %v570, %v571
  %v573 = vrot.slane %v572, 2
  %v574 = vadd.f32 %v572, %v573
  %v575 = vrot.slane %v574, 1
  %v576 = vadd.f32 %v574, %v575
  %v577 = vsel %vm390, %v527, 0.0
  %v578 = vrot.slane %v577, 4
  %v579 = vadd.f32 %v577, %v578
  %v580 = vrot.slane %v579, 2
  %v581 = vadd.f32 %v579, %v580
  %v582 = vrot.slane %v581, 1
  %v583 = vadd.f32 %v581, %v582
  %v584 = vrcp.pop 8.0
  %v585 = vmul.f32 %v534, %v584
  %v586 = vmul.f32 %v541, %v584
  %v587 = vmul.f32 %v548, %v584
  %v588 = vmul.f32 %v555, %v584
  %v589 = vmul.f32 %v562, %v584
  %v590 = vmul.f32 %v569, %v584
  %v591 = vmul.f32 %v576, %v584
  %v592 = vmul.f32 %v583, %v584
  %vm601 = vcmask 1041409
  %v602 = vsel %vm601, %v586, %v585
  %vm603 = vcmask 1042434
  %v604 = vsel %vm603, %v587, %v602
  %vm605 = vcmask 1043459
  %v606 = vsel %vm605, %v588, %v604
  %vm607 = vcmask 1044484
  %v608 = vsel %vm607, %v589, %v606
  %vm609 = vcmask 1045509
  %v610 = vsel %vm609, %v590, %v608
  %vm611 = vcmask 1046534
  %v612 = vsel %vm611, %v591, %v610
  %vm613 = vcmask 1047559
  %v614 = vsel %vm613, %v592, %v612
  %v615 = vsel %vm390, %v614, 0
  %617 = vmatprep.subr.mxu0 0.0
  %618 = vmatpush1.msra.mxu0 0.0
  %619 = vmatprep.subr.mxu0 0.0
  %620 = vmatpush1.msra.mxu0 0.0
  %621 = vmatprep.subr.mxu0 0.0
  %622 = vmatpush1.msra.mxu0 0.0
  %623 = vmatprep.subr.mxu0 0.0
  %624 = vmatpush1.msra.mxu0 0.0
  %625 = vmatprep.subr.mxu0 0.0
  %626 = vmatpush1.msra.mxu0 0.0
  %627 = vmatprep.subr.mxu0 0.0
  %628 = vmatpush1.msra.mxu0 0.0
  %629 = vmatprep.subr.mxu0 0.0
  %630 = vmatpush1.msra.mxu0 0.0
  %631 = vmatprep.subr.mxu0 0.0
  %632 = vmatpush1.msra.mxu0 0.0
  %633 = vmatprep.subr.mxu0 0.0
  %634 = vmatpush1.msra.mxu0 0.0
  %635 = vmatprep.subr.mxu0 0.0
  %636 = vmatpush1.msra.mxu0 0.0
  %637 = vmatprep.subr.mxu0 0.0
  %638 = vmatpush1.msra.mxu0 0.0
  %639 = vmatprep.subr.mxu0 0.0
  %640 = vmatpush1.msra.mxu0 0.0
  %641 = vmatprep.subr.mxu0 0.0
  %642 = vmatpush1.msra.mxu0 %v74
  %643 = vmatprep.subr.mxu0 0.0
  %644 = vmatpush1.msra.mxu0 %v73
  %645 = vmatprep.subr.mxu0 0.0
  %646 = vmatpush1.msra.mxu0 %v72
  %647 = vmatprep.subr.mxu0 0.0
  %648 = vmatpush1.msra.mxu0 %v71
  %649 = vmatprep.subr.mxu0 0.0
  %650 = vmatpush2.msra.mxu0 0.0
  %651 = vmatprep.subr.mxu0 0.0
  %652 = vmatpush2.msra.mxu0 0.0
  %653 = vmatprep.subr.mxu0 0.0
  %654 = vmatpush2.msra.mxu0 0.0
  %655 = vmatprep.subr.mxu0 0.0
  %656 = vmatpush2.msra.mxu0 0.0
  %657 = vmatprep.subr.mxu0 0.0
  %658 = vmatpush2.msra.mxu0 0.0
  %659 = vmatprep.subr.mxu0 0.0
  %660 = vmatpush2.msra.mxu0 0.0
  %661 = vmatprep.subr.mxu0 0.0
  %662 = vmatpush2.msra.mxu0 0.0
  %663 = vmatprep.subr.mxu0 0.0
  %664 = vmatpush2.msra.mxu0 0.0
  %665 = vmatprep.subr.mxu0 0.0
  %666 = vmatpush2.msra.mxu0 0.0
  %667 = vmatprep.subr.mxu0 0.0
  %668 = vmatpush2.msra.mxu0 0.0
  %669 = vmatprep.subr.mxu0 0.0
  %670 = vmatpush2.msra.mxu0 0.0
  %671 = vmatprep.subr.mxu0 0.0
  %672 = vmatpush2.msra.mxu0 0.0
  %673 = vmatprep.subr.mxu0 0.0
  %674 = vmatpush2.msra.mxu0 0.0
  %675 = vmatprep.subr.mxu0 0.0
  %676 = vmatpush2.msra.mxu0 0.0
  %677 = vmatprep.subr.mxu0 0.0
  %678 = vmatpush2.msra.mxu0 0.0
  %679 = vmatprep.subr.mxu0 0.0
  %680 = vmatpush2.msra.mxu0 0.0
  %681 = vmatprep.mubr.f32.mxu0 0.0
  %682 = vmatmul.mubr.f32.gmra.mxu0 %v615
  %v683 = vpop.f32.mrf.mxu0
  %v684 = vadd.f32 0.0, %v683
  %v685 = vpop.f32.mrf.mxu0
  %686 = vdwg.mxu0
  %v688 = vsel %vm390, %v344, 0
  %690 = vmatprep.subr.mxu0 0.0
  %691 = vmatpush1.msra.mxu0 0.0
  %692 = vmatprep.subr.mxu0 0.0
  %693 = vmatpush1.msra.mxu0 0.0
  %694 = vmatprep.subr.mxu0 0.0
  %695 = vmatpush1.msra.mxu0 0.0
  %696 = vmatprep.subr.mxu0 0.0
  %697 = vmatpush1.msra.mxu0 0.0
  %698 = vmatprep.subr.mxu0 0.0
  %699 = vmatpush1.msra.mxu0 0.0
  %700 = vmatprep.subr.mxu0 0.0
  %701 = vmatpush1.msra.mxu0 0.0
  %702 = vmatprep.subr.mxu0 0.0
  %703 = vmatpush1.msra.mxu0 0.0
  %704 = vmatprep.subr.mxu0 0.0
  %705 = vmatpush1.msra.mxu0 0.0
  %706 = vmatprep.subr.mxu0 0.0
  %707 = vmatpush1.msra.mxu0 0.0
  %708 = vmatprep.subr.mxu0 0.0
  %709 = vmatpush1.msra.mxu0 0.0
  %710 = vmatprep.subr.mxu0 0.0
  %711 = vmatpush1.msra.mxu0 0.0
  %712 = vmatprep.subr.mxu0 0.0
  %713 = vmatpush1.msra.mxu0 0.0
  %714 = vmatprep.subr.mxu0 0.0
  %715 = vmatpush1.msra.mxu0 %v70
  %716 = vmatprep.subr.mxu0 0.0
  %717 = vmatpush1.msra.mxu0 %v69
  %718 = vmatprep.subr.mxu0 0.0
  %719 = vmatpush1.msra.mxu0 %v68
  %720 = vmatprep.subr.mxu0 0.0
  %721 = vmatpush1.msra.mxu0 %v67
  %722 = vmatprep.subr.mxu0 0.0
  %723 = vmatpush2.msra.mxu0 0.0
  %724 = vmatprep.subr.mxu0 0.0
  %725 = vmatpush2.msra.mxu0 0.0
  %726 = vmatprep.subr.mxu0 0.0
  %727 = vmatpush2.msra.mxu0 0.0
  %728 = vmatprep.subr.mxu0 0.0
  %729 = vmatpush2.msra.mxu0 0.0
  %730 = vmatprep.subr.mxu0 0.0
  %731 = vmatpush2.msra.mxu0 0.0
  %732 = vmatprep.subr.mxu0 0.0
  %733 = vmatpush2.msra.mxu0 0.0
  %734 = vmatprep.subr.mxu0 0.0
  %735 = vmatpush2.msra.mxu0 0.0
  %736 = vmatprep.subr.mxu0 0.0
  %737 = vmatpush2.msra.mxu0 0.0
  %738 = vmatprep.subr.mxu0 0.0
  %739 = vmatpush2.msra.mxu0 0.0
  %740 = vmatprep.subr.mxu0 0.0
  %741 = vmatpush2.msra.mxu0 0.0
  %742 = vmatprep.subr.mxu0 0.0
  %743 = vmatpush2.msra.mxu0 0.0
  %744 = vmatprep.subr.mxu0 0.0
  %745 = vmatpush2.msra.mxu0 0.0
  %746 = vmatprep.subr.mxu0 0.0
  %747 = vmatpush2.msra.mxu0 0.0
  %748 = vmatprep.subr.mxu0 0.0
  %749 = vmatpush2.msra.mxu0 0.0
  %750 = vmatprep.subr.mxu0 0.0
  %751 = vmatpush2.msra.mxu0 0.0
  %752 = vmatprep.subr.mxu0 0.0
  %753 = vmatpush2.msra.mxu0 0.0
  %754 = vmatprep.mubr.f32.mxu0 0.0
  %755 = vmatmul.mubr.f32.gmra.mxu0 %v688
  %v756 = vpop.f32.mrf.mxu0
  %v757 = vadd.f32 %v684, %v756
  %v758 = vpop.f32.mrf.mxu0
  %759 = vdwg.mxu0
  %v760 = vlaneseq
  %v761 = vshrl.u32 %v760, 7
  %v762 = vsub.s32 1, %v761
  %v763 = vrot.slane %v75, %v762
  %v764 = vadd.f32 %v757, %v763
  %v765 = vtanh.pop %v764
  %v767 = vsel %vm390, %v345, 0
  %769 = vmatprep.subr.mxu0 0.0
  %770 = vmatpush1.msra.mxu0 0.0
  %771 = vmatprep.subr.mxu0 0.0
  %772 = vmatpush1.msra.mxu0 0.0
  %773 = vmatprep.subr.mxu0 0.0
  %774 = vmatpush1.msra.mxu0 0.0
  %775 = vmatprep.subr.mxu0 0.0
  %776 = vmatpush1.msra.mxu0 0.0
  %777 = vmatprep.subr.mxu0 0.0
  %778 = vmatpush1.msra.mxu0 0.0
  %779 = vmatprep.subr.mxu0 0.0
  %780 = vmatpush1.msra.mxu0 0.0
  %781 = vmatprep.subr.mxu0 0.0
  %782 = vmatpush1.msra.mxu0 0.0
  %783 = vmatprep.subr.mxu0 0.0
  %784 = vmatpush1.msra.mxu0 0.0
  %785 = vmatprep.subr.mxu0 0.0
  %786 = vmatpush1.msra.mxu0 0.0
  %787 = vmatprep.subr.mxu0 0.0
  %788 = vmatpush1.msra.mxu0 0.0
  %789 = vmatprep.subr.mxu0 0.0
  %790 = vmatpush1.msra.mxu0 0.0
  %791 = vmatprep.subr.mxu0 0.0
  %792 = vmatpush1.msra.mxu0 0.0
  %793 = vmatprep.subr.mxu0 %v99
  %794 = vmatpush1.msra.mxu0 %v98
  %795 = vmatprep.subr.mxu0 %v97
  %796 = vmatpush1.msra.mxu0 %v96
  %797 = vmatprep.subr.mxu0 %v95
  %798 = vmatpush1.msra.mxu0 %v94
  %799 = vmatprep.subr.mxu0 %v93
  %800 = vmatpush1.msra.mxu0 %v92
  %801 = vmatprep.subr.mxu0 0.0
  %802 = vmatpush2.msra.mxu0 0.0
  %803 = vmatprep.subr.mxu0 0.0
  %804 = vmatpush2.msra.mxu0 0.0
  %805 = vmatprep.subr.mxu0 0.0
  %806 = vmatpush2.msra.mxu0 0.0
  %807 = vmatprep.subr.mxu0 0.0
  %808 = vmatpush2.msra.mxu0 0.0
  %809 = vmatprep.subr.mxu0 0.0
  %810 = vmatpush2.msra.mxu0 0.0
  %811 = vmatprep.subr.mxu0 0.0
  %812 = vmatpush2.msra.mxu0 0.0
  %813 = vmatprep.subr.mxu0 0.0
  %814 = vmatpush2.msra.mxu0 0.0
  %815 = vmatprep.subr.mxu0 0.0
  %816 = vmatpush2.msra.mxu0 0.0
  %817 = vmatprep.subr.mxu0 0.0
  %818 = vmatpush2.msra.mxu0 0.0
  %819 = vmatprep.subr.mxu0 0.0
  %820 = vmatpush2.msra.mxu0 0.0
  %821 = vmatprep.subr.mxu0 0.0
  %822 = vmatpush2.msra.mxu0 0.0
  %823 = vmatprep.subr.mxu0 0.0
  %824 = vmatpush2.msra.mxu0 0.0
  %825 = vmatprep.subr.mxu0 0.0
  %826 = vmatpush2.msra.mxu0 0.0
  %827 = vmatprep.subr.mxu0 0.0
  %828 = vmatpush2.msra.mxu0 0.0
  %829 = vmatprep.subr.mxu0 0.0
  %830 = vmatpush2.msra.mxu0 0.0
  %831 = vmatprep.subr.mxu0 0.0
  %832 = vmatpush2.msra.mxu0 0.0
  %833 = vmatprep.mubr.f32.mxu0 0.0
  %834 = vmatmul.mubr.f32.gmra.mxu0 %v767
  %v835 = vpop.f32.mrf.mxu0
  %v836 = vadd.f32 0.0, %v835
  %v837 = vpop.f32.mrf.mxu0
  %v838 = vadd.f32 0.0, %v837
  %839 = vdwg.mxu0
  %v841 = vsel %vm390, %v765, 0
  %843 = vmatprep.subr.mxu0 0.0
  %844 = vmatpush1.msra.mxu0 0.0
  %845 = vmatprep.subr.mxu0 0.0
  %846 = vmatpush1.msra.mxu0 0.0
  %847 = vmatprep.subr.mxu0 0.0
  %848 = vmatpush1.msra.mxu0 0.0
  %849 = vmatprep.subr.mxu0 0.0
  %850 = vmatpush1.msra.mxu0 0.0
  %851 = vmatprep.subr.mxu0 0.0
  %852 = vmatpush1.msra.mxu0 0.0
  %853 = vmatprep.subr.mxu0 0.0
  %854 = vmatpush1.msra.mxu0 0.0
  %855 = vmatprep.subr.mxu0 0.0
  %856 = vmatpush1.msra.mxu0 0.0
  %857 = vmatprep.subr.mxu0 0.0
  %858 = vmatpush1.msra.mxu0 0.0
  %859 = vmatprep.subr.mxu0 0.0
  %860 = vmatpush1.msra.mxu0 0.0
  %861 = vmatprep.subr.mxu0 0.0
  %862 = vmatpush1.msra.mxu0 0.0
  %863 = vmatprep.subr.mxu0 0.0
  %864 = vmatpush1.msra.mxu0 0.0
  %865 = vmatprep.subr.mxu0 0.0
  %866 = vmatpush1.msra.mxu0 0.0
  %867 = vmatprep.subr.mxu0 %v91
  %868 = vmatpush1.msra.mxu0 %v90
  %869 = vmatprep.subr.mxu0 %v89
  %870 = vmatpush1.msra.mxu0 %v88
  %871 = vmatprep.subr.mxu0 %v87
  %872 = vmatpush1.msra.mxu0 %v86
  %873 = vmatprep.subr.mxu0 %v85
  %874 = vmatpush1.msra.mxu0 %v84
  %875 = vmatprep.subr.mxu0 0.0
  %876 = vmatpush2.msra.mxu0 0.0
  %877 = vmatprep.subr.mxu0 0.0
  %878 = vmatpush2.msra.mxu0 0.0
  %879 = vmatprep.subr.mxu0 0.0
  %880 = vmatpush2.msra.mxu0 0.0
  %881 = vmatprep.subr.mxu0 0.0
  %882 = vmatpush2.msra.mxu0 0.0
  %883 = vmatprep.subr.mxu0 0.0
  %884 = vmatpush2.msra.mxu0 0.0
  %885 = vmatprep.subr.mxu0 0.0
  %886 = vmatpush2.msra.mxu0 0.0
  %887 = vmatprep.subr.mxu0 0.0
  %888 = vmatpush2.msra.mxu0 0.0
  %889 = vmatprep.subr.mxu0 0.0
  %890 = vmatpush2.msra.mxu0 0.0
  %891 = vmatprep.subr.mxu0 0.0
  %892 = vmatpush2.msra.mxu0 0.0
  %893 = vmatprep.subr.mxu0 0.0
  %894 = vmatpush2.msra.mxu0 0.0
  %895 = vmatprep.subr.mxu0 0.0
  %896 = vmatpush2.msra.mxu0 0.0
  %897 = vmatprep.subr.mxu0 0.0
  %898 = vmatpush2.msra.mxu0 0.0
  %899 = vmatprep.subr.mxu0 0.0
  %900 = vmatpush2.msra.mxu0 0.0
  %901 = vmatprep.subr.mxu0 0.0
  %902 = vmatpush2.msra.mxu0 0.0
  %903 = vmatprep.subr.mxu0 0.0
  %904 = vmatpush2.msra.mxu0 0.0
  %905 = vmatprep.subr.mxu0 0.0
  %906 = vmatpush2.msra.mxu0 0.0
  %907 = vmatprep.mubr.f32.mxu0 0.0
  %908 = vmatmul.mubr.f32.gmra.mxu0 %v841
  %v909 = vpop.f32.mrf.mxu0
  %v910 = vadd.f32 %v836, %v909
  %v911 = vpop.f32.mrf.mxu0
  %v912 = vadd.f32 %v838, %v911
  %913 = vdwg.mxu0
  %v914 = vlaneseq
  %v915 = vshrl.u32 %v914, 7
  %v916 = vsub.s32 0, %v915
  %v917 = vrot.slane %v100, %v916
  %v918 = vlaneseq
  %v919 = vshrl.u32 %v918, 7
  %v920 = vsub.s32 0, %v919
  %v921 = vrot.slane %v101, %v920
  %v922 = vadd.f32 %v910, %v917
  %v923 = vadd.f32 %v912, %v921
  %v925 = vsel %vm390, %v346, 0
  %v928 = vsel %vm390, %v347, 0
  %v931 = vsel %vm390, %v348, 0
  %v934 = vsel %vm390, %v349, 0
  %v937 = vsel %vm390, %v350, 0
  %v940 = vsel %vm390, %v351, 0
  %v943 = vsel %vm390, %v352, 0
  %v946 = vsel %vm390, %v353, 0
  %v949 = vsel %vm390, %v354, 0
  %v952 = vsel %vm390, %v355, 0
  %v955 = vsel %vm390, %v356, 0
  %v958 = vsel %vm390, %v357, 0
  %v961 = vsel %vm390, %v358, 0
  %v964 = vsel %vm390, %v359, 0
  %v967 = vsel %vm390, %v360, 0
  %v970 = vsel %vm390, %v361, 0
  %v973 = vsel %vm390, %v362, 0
  %v976 = vsel %vm390, %v363, 0
  %v979 = vsel %vm390, %v364, 0
  %v982 = vsel %vm390, %v365, 0
  %v985 = vsel %vm390, %v366, 0
  %v988 = vsel %vm390, %v367, 0
  %v991 = vsel %vm390, %v368, 0
  %v994 = vsel %vm390, %v369, 0
  %v997 = vsel %vm390, %v370, 0
  %v1000 = vsel %vm390, %v371, 0
  %v1003 = vsel %vm390, %v372, 0
  %v1006 = vsel %vm390, %v373, 0
  %v1009 = vsel %vm390, %v374, 0
  %v1012 = vsel %vm390, %v375, 0
  %v1015 = vsel %vm390, %v376, 0
  %v1018 = vsel %vm390, %v377, 0
  %v1021 = vsel %vm390, %v520, 0
  %v1024 = vsel %vm390, %v521, 0
  %v1027 = vsel %vm390, %v522, 0
  %v1030 = vsel %vm390, %v523, 0
  %v1033 = vsel %vm390, %v524, 0
  %v1036 = vsel %vm390, %v525, 0
  %v1039 = vsel %vm390, %v526, 0
  %v1042 = vsel %vm390, %v527, 0
  %1044 = vmatprep.subr.mxu0 0.0
  %1045 = vmatpush1.msra.mxu0 0.0
  %1046 = vmatprep.subr.mxu0 0.0
  %1047 = vmatpush1.msra.mxu0 0.0
  %1048 = vmatprep.subr.mxu0 0.0
  %1049 = vmatpush1.msra.mxu0 0.0
  %1050 = vmatprep.subr.mxu0 0.0
  %1051 = vmatpush1.msra.mxu0 0.0
  %1052 = vmatprep.subr.mxu0 0.0
  %1053 = vmatpush1.msra.mxu0 0.0
  %1054 = vmatprep.subr.mxu0 0.0
  %1055 = vmatpush1.msra.mxu0 0.0
  %1056 = vmatprep.subr.mxu0 0.0
  %1057 = vmatpush1.msra.mxu0 0.0
  %1058 = vmatprep.subr.mxu0 0.0
  %1059 = vmatpush1.msra.mxu0 0.0
  %1060 = vmatprep.subr.mxu0 0.0
  %1061 = vmatpush1.msra.mxu0 0.0
  %1062 = vmatprep.subr.mxu0 0.0
  %1063 = vmatpush1.msra.mxu0 0.0
  %1064 = vmatprep.subr.mxu0 0.0
  %1065 = vmatpush1.msra.mxu0 0.0
  %1066 = vmatprep.subr.mxu0 0.0
  %1067 = vmatpush1.msra.mxu0 0.0
  %1068 = vmatprep.subr.mxu0 %v83
  %1069 = vmatpush1.msra.mxu0 %v82
  %1070 = vmatprep.subr.mxu0 %v81
  %1071 = vmatpush1.msra.mxu0 %v80
  %1072 = vmatprep.subr.mxu0 %v79
  %1073 = vmatpush1.msra.mxu0 %v78
  %1074 = vmatprep.subr.mxu0 %v77
  %1075 = vmatpush1.msra.mxu0 %v76
  %1076 = vmatprep.subr.mxu0 0.0
  %1077 = vmatpush2.msra.mxu0 0.0
  %1078 = vmatprep.subr.mxu0 0.0
  %1079 = vmatpush2.msra.mxu0 0.0
  %1080 = vmatprep.subr.mxu0 0.0
  %1081 = vmatpush2.msra.mxu0 0.0
  %1082 = vmatprep.subr.mxu0 0.0
  %1083 = vmatpush2.msra.mxu0 0.0
  %1084 = vmatprep.subr.mxu0 0.0
  %1085 = vmatpush2.msra.mxu0 0.0
  %1086 = vmatprep.subr.mxu0 0.0
  %1087 = vmatpush2.msra.mxu0 0.0
  %1088 = vmatprep.subr.mxu0 0.0
  %1089 = vmatpush2.msra.mxu0 0.0
  %1090 = vmatprep.subr.mxu0 0.0
  %1091 = vmatpush2.msra.mxu0 0.0
  %1092 = vmatprep.subr.mxu0 0.0
  %1093 = vmatpush2.msra.mxu0 0.0
  %1094 = vmatprep.subr.mxu0 0.0
  %1095 = vmatpush2.msra.mxu0 0.0
  %1096 = vmatprep.subr.mxu0 0.0
  %1097 = vmatpush2.msra.mxu0 0.0
  %1098 = vmatprep.subr.mxu0 0.0
  %1099 = vmatpush2.msra.mxu0 0.0
  %1100 = vmatprep.subr.mxu0 0.0
  %1101 = vmatpush2.msra.mxu0 0.0
  %1102 = vmatprep.subr.mxu0 0.0
  %1103 = vmatpush2.msra.mxu0 0.0
  %1104 = vmatprep.subr.mxu0 0.0
  %1105 = vmatpush2.msra.mxu0 0.0
  %1106 = vmatprep.subr.mxu0 0.0
  %1107 = vmatpush2.msra.mxu0 0.0
  %1108 = vmatprep.mubr.f32.mxu0 0.0
  %1109 = vmatmul.mubr.f32.gmra.mxu0 %v925
  %v1110 = vpop.f32.mrf.mxu0
  %v1111 = vadd.f32 0.0, %v1110
  %v1112 = vpop.f32.mrf.mxu0
  %v1113 = vadd.f32 0.0, %v1112
  %1114 = vmatprep.mubr.f32.mxu0 0.0
  %1115 = vmatmul.mubr.f32.gmra.mxu0 %v928
  %v1116 = vpop.f32.mrf.mxu0
  %v1117 = vadd.f32 0.0, %v1116
  %v1118 = vpop.f32.mrf.mxu0
  %v1119 = vadd.f32 0.0, %v1118
  %1120 = vmatprep.mubr.f32.mxu0 0.0
  %1121 = vmatmul.mubr.f32.gmra.mxu0 %v931
  %v1122 = vpop.f32.mrf.mxu0
  %v1123 = vadd.f32 0.0, %v1122
  %v1124 = vpop.f32.mrf.mxu0
  %v1125 = vadd.f32 0.0, %v1124
  %1126 = vmatprep.mubr.f32.mxu0 0.0
  %1127 = vmatmul.mubr.f32.gmra.mxu0 %v934
  %v1128 = vpop.f32.mrf.mxu0
  %v1129 = vadd.f32 0.0, %v1128
  %v1130 = vpop.f32.mrf.mxu0
  %v1131 = vadd.f32 0.0, %v1130
  %1132 = vmatprep.mubr.f32.mxu0 0.0
  %1133 = vmatmul.mubr.f32.gmra.mxu0 %v937
  %v1134 = vpop.f32.mrf.mxu0
  %v1135 = vadd.f32 0.0, %v1134
  %v1136 = vpop.f32.mrf.mxu0
  %v1137 = vadd.f32 0.0, %v1136
  %1138 = vmatprep.mubr.f32.mxu0 0.0
  %1139 = vmatmul.mubr.f32.gmra.mxu0 %v940
  %v1140 = vpop.f32.mrf.mxu0
  %v1141 = vadd.f32 0.0, %v1140
  %v1142 = vpop.f32.mrf.mxu0
  %v1143 = vadd.f32 0.0, %v1142
  %1144 = vmatprep.mubr.f32.mxu0 0.0
  %1145 = vmatmul.mubr.f32.gmra.mxu0 %v943
  %v1146 = vpop.f32.mrf.mxu0
  %v1147 = vadd.f32 0.0, %v1146
  %v1148 = vpop.f32.mrf.mxu0
  %v1149 = vadd.f32 0.0, %v1148
  %1150 = vmatprep.mubr.f32.mxu0 0.0
  %1151 = vmatmul.mubr.f32.gmra.mxu0 %v946
  %v1152 = vpop.f32.mrf.mxu0
  %v1153 = vadd.f32 0.0, %v1152
  %v1154 = vpop.f32.mrf.mxu0
  %v1155 = vadd.f32 0.0, %v1154
  %1156 = vmatprep.mubr.f32.mxu0 0.0
  %1157 = vmatmul.mubr.f32.gmra.mxu0 %v949
  %v1158 = vpop.f32.mrf.mxu0
  %v1159 = vadd.f32 0.0, %v1158
  %v1160 = vpop.f32.mrf.mxu0
  %v1161 = vadd.f32 0.0, %v1160
  %1162 = vmatprep.mubr.f32.mxu0 0.0
  %1163 = vmatmul.mubr.f32.gmra.mxu0 %v952
  %v1164 = vpop.f32.mrf.mxu0
  %v1165 = vadd.f32 0.0, %v1164
  %v1166 = vpop.f32.mrf.mxu0
  %v1167 = vadd.f32 0.0, %v1166
  %1168 = vmatprep.mubr.f32.mxu0 0.0
  %1169 = vmatmul.mubr.f32.gmra.mxu0 %v955
  %v1170 = vpop.f32.mrf.mxu0
  %v1171 = vadd.f32 0.0, %v1170
  %v1172 = vpop.f32.mrf.mxu0
  %v1173 = vadd.f32 0.0, %v1172
  %1174 = vmatprep.mubr.f32.mxu0 0.0
  %1175 = vmatmul.mubr.f32.gmra.mxu0 %v958
  %v1176 = vpop.f32.mrf.mxu0
  %v1177 = vadd.f32 0.0, %v1176
  %v1178 = vpop.f32.mrf.mxu0
  %v1179 = vadd.f32 0.0, %v1178
  %1180 = vmatprep.mubr.f32.mxu0 0.0
  %1181 = vmatmul.mubr.f32.gmra.mxu0 %v961
  %v1182 = vpop.f32.mrf.mxu0
  %v1183 = vadd.f32 0.0, %v1182
  %v1184 = vpop.f32.mrf.mxu0
  %v1185 = vadd.f32 0.0, %v1184
  %1186 = vmatprep.mubr.f32.mxu0 0.0
  %1187 = vmatmul.mubr.f32.gmra.mxu0 %v964
  %v1188 = vpop.f32.mrf.mxu0
  %v1189 = vadd.f32 0.0, %v1188
  %v1190 = vpop.f32.mrf.mxu0
  %v1191 = vadd.f32 0.0, %v1190
  %1192 = vmatprep.mubr.f32.mxu0 0.0
  %1193 = vmatmul.mubr.f32.gmra.mxu0 %v967
  %v1194 = vpop.f32.mrf.mxu0
  %v1195 = vadd.f32 0.0, %v1194
  %v1196 = vpop.f32.mrf.mxu0
  %v1197 = vadd.f32 0.0, %v1196
  %1198 = vmatprep.mubr.f32.mxu0 0.0
  %1199 = vmatmul.mubr.f32.gmra.mxu0 %v970
  %v1200 = vpop.f32.mrf.mxu0
  %v1201 = vadd.f32 0.0, %v1200
  %v1202 = vpop.f32.mrf.mxu0
  %v1203 = vadd.f32 0.0, %v1202
  %1204 = vmatprep.mubr.f32.mxu0 0.0
  %1205 = vmatmul.mubr.f32.gmra.mxu0 %v973
  %v1206 = vpop.f32.mrf.mxu0
  %v1207 = vadd.f32 0.0, %v1206
  %v1208 = vpop.f32.mrf.mxu0
  %v1209 = vadd.f32 0.0, %v1208
  %1210 = vmatprep.mubr.f32.mxu0 0.0
  %1211 = vmatmul.mubr.f32.gmra.mxu0 %v976
  %v1212 = vpop.f32.mrf.mxu0
  %v1213 = vadd.f32 0.0, %v1212
  %v1214 = vpop.f32.mrf.mxu0
  %v1215 = vadd.f32 0.0, %v1214
  %1216 = vmatprep.mubr.f32.mxu0 0.0
  %1217 = vmatmul.mubr.f32.gmra.mxu0 %v979
  %v1218 = vpop.f32.mrf.mxu0
  %v1219 = vadd.f32 0.0, %v1218
  %v1220 = vpop.f32.mrf.mxu0
  %v1221 = vadd.f32 0.0, %v1220
  %1222 = vmatprep.mubr.f32.mxu0 0.0
  %1223 = vmatmul.mubr.f32.gmra.mxu0 %v982
  %v1224 = vpop.f32.mrf.mxu0
  %v1225 = vadd.f32 0.0, %v1224
  %v1226 = vpop.f32.mrf.mxu0
  %v1227 = vadd.f32 0.0, %v1226
  %1228 = vmatprep.mubr.f32.mxu0 0.0
  %1229 = vmatmul.mubr.f32.gmra.mxu0 %v985
  %v1230 = vpop.f32.mrf.mxu0
  %v1231 = vadd.f32 0.0, %v1230
  %v1232 = vpop.f32.mrf.mxu0
  %v1233 = vadd.f32 0.0, %v1232
  %1234 = vmatprep.mubr.f32.mxu0 0.0
  %1235 = vmatmul.mubr.f32.gmra.mxu0 %v988
  %v1236 = vpop.f32.mrf.mxu0
  %v1237 = vadd.f32 0.0, %v1236
  %v1238 = vpop.f32.mrf.mxu0
  %v1239 = vadd.f32 0.0, %v1238
  %1240 = vmatprep.mubr.f32.mxu0 0.0
  %1241 = vmatmul.mubr.f32.gmra.mxu0 %v991
  %v1242 = vpop.f32.mrf.mxu0
  %v1243 = vadd.f32 0.0, %v1242
  %v1244 = vpop.f32.mrf.mxu0
  %v1245 = vadd.f32 0.0, %v1244
  %1246 = vmatprep.mubr.f32.mxu0 0.0
  %1247 = vmatmul.mubr.f32.gmra.mxu0 %v994
  %v1248 = vpop.f32.mrf.mxu0
  %v1249 = vadd.f32 0.0, %v1248
  %v1250 = vpop.f32.mrf.mxu0
  %v1251 = vadd.f32 0.0, %v1250
  %1252 = vmatprep.mubr.f32.mxu0 0.0
  %1253 = vmatmul.mubr.f32.gmra.mxu0 %v997
  %v1254 = vpop.f32.mrf.mxu0
  %v1255 = vadd.f32 0.0, %v1254
  %v1256 = vpop.f32.mrf.mxu0
  %v1257 = vadd.f32 0.0, %v1256
  %1258 = vmatprep.mubr.f32.mxu0 0.0
  %1259 = vmatmul.mubr.f32.gmra.mxu0 %v1000
  %v1260 = vpop.f32.mrf.mxu0
  %v1261 = vadd.f32 0.0, %v1260
  %v1262 = vpop.f32.mrf.mxu0
  %v1263 = vadd.f32 0.0, %v1262
  %1264 = vmatprep.mubr.f32.mxu0 0.0
  %1265 = vmatmul.mubr.f32.gmra.mxu0 %v1003
  %v1266 = vpop.f32.mrf.mxu0
  %v1267 = vadd.f32 0.0, %v1266
  %v1268 = vpop.f32.mrf.mxu0
  %v1269 = vadd.f32 0.0, %v1268
  %1270 = vmatprep.mubr.f32.mxu0 0.0
  %1271 = vmatmul.mubr.f32.gmra.mxu0 %v1006
  %v1272 = vpop.f32.mrf.mxu0
  %v1273 = vadd.f32 0.0, %v1272
  %v1274 = vpop.f32.mrf.mxu0
  %v1275 = vadd.f32 0.0, %v1274
  %1276 = vmatprep.mubr.f32.mxu0 0.0
  %1277 = vmatmul.mubr.f32.gmra.mxu0 %v1009
  %v1278 = vpop.f32.mrf.mxu0
  %v1279 = vadd.f32 0.0, %v1278
  %v1280 = vpop.f32.mrf.mxu0
  %v1281 = vadd.f32 0.0, %v1280
  %1282 = vmatprep.mubr.f32.mxu0 0.0
  %1283 = vmatmul.mubr.f32.gmra.mxu0 %v1012
  %v1284 = vpop.f32.mrf.mxu0
  %v1285 = vadd.f32 0.0, %v1284
  %v1286 = vpop.f32.mrf.mxu0
  %v1287 = vadd.f32 0.0, %v1286
  %1288 = vmatprep.mubr.f32.mxu0 0.0
  %1289 = vmatmul.mubr.f32.gmra.mxu0 %v1015
  %v1290 = vpop.f32.mrf.mxu0
  %v1291 = vadd.f32 0.0, %v1290
  %v1292 = vpop.f32.mrf.mxu0
  %v1293 = vadd.f32 0.0, %v1292
  %1294 = vmatprep.mubr.f32.mxu0 0.0
  %1295 = vmatmul.mubr.f32.gmra.mxu0 %v1018
  %v1296 = vpop.f32.mrf.mxu0
  %v1297 = vadd.f32 0.0, %v1296
  %v1298 = vpop.f32.mrf.mxu0
  %v1299 = vadd.f32 0.0, %v1298
  %1300 = vmatprep.mubr.f32.mxu0 0.0
  %1301 = vmatmul.mubr.f32.gmra.mxu0 %v1021
  %v1302 = vpop.f32.mrf.mxu0
  %v1303 = vadd.f32 0.0, %v1302
  %v1304 = vpop.f32.mrf.mxu0
  %v1305 = vadd.f32 0.0, %v1304
  %1306 = vmatprep.mubr.f32.mxu0 0.0
  %1307 = vmatmul.mubr.f32.gmra.mxu0 %v1024
  %v1308 = vpop.f32.mrf.mxu0
  %v1309 = vadd.f32 0.0, %v1308
  %v1310 = vpop.f32.mrf.mxu0
  %v1311 = vadd.f32 0.0, %v1310
  %1312 = vmatprep.mubr.f32.mxu0 0.0
  %1313 = vmatmul.mubr.f32.gmra.mxu0 %v1027
  %v1314 = vpop.f32.mrf.mxu0
  %v1315 = vadd.f32 0.0, %v1314
  %v1316 = vpop.f32.mrf.mxu0
  %v1317 = vadd.f32 0.0, %v1316
  %1318 = vmatprep.mubr.f32.mxu0 0.0
  %1319 = vmatmul.mubr.f32.gmra.mxu0 %v1030
  %v1320 = vpop.f32.mrf.mxu0
  %v1321 = vadd.f32 0.0, %v1320
  %v1322 = vpop.f32.mrf.mxu0
  %v1323 = vadd.f32 0.0, %v1322
  %1324 = vmatprep.mubr.f32.mxu0 0.0
  %1325 = vmatmul.mubr.f32.gmra.mxu0 %v1033
  %v1326 = vpop.f32.mrf.mxu0
  %v1327 = vadd.f32 0.0, %v1326
  %v1328 = vpop.f32.mrf.mxu0
  %v1329 = vadd.f32 0.0, %v1328
  %1330 = vmatprep.mubr.f32.mxu0 0.0
  %1331 = vmatmul.mubr.f32.gmra.mxu0 %v1036
  %v1332 = vpop.f32.mrf.mxu0
  %v1333 = vadd.f32 0.0, %v1332
  %v1334 = vpop.f32.mrf.mxu0
  %v1335 = vadd.f32 0.0, %v1334
  %1336 = vmatprep.mubr.f32.mxu0 0.0
  %1337 = vmatmul.mubr.f32.gmra.mxu0 %v1039
  %v1338 = vpop.f32.mrf.mxu0
  %v1339 = vadd.f32 0.0, %v1338
  %v1340 = vpop.f32.mrf.mxu0
  %v1341 = vadd.f32 0.0, %v1340
  %1342 = vmatprep.mubr.f32.mxu0 0.0
  %1343 = vmatmul.mubr.f32.gmra.mxu0 %v1042
  %v1344 = vpop.f32.mrf.mxu0
  %v1345 = vadd.f32 0.0, %v1344
  %v1346 = vpop.f32.mrf.mxu0
  %v1347 = vadd.f32 0.0, %v1346
  %1348 = vdwg.mxu0
  %v1351 = vcombine.low %v922, %v923
  %v1352 = vcombine.high %v922, %v923
  %v1354 = vunpack.c.l.s4 1966171168
  %v1355 = vunpack.c.0.s8 %v1354
  %v1356 = vlaneseq
  %v1357 = vshrl.u32 %v1356, 7
  %v1358 = vsub.s32 %v1355, %v1357
  %v1359 = vrot.slane %v1351, %v1358
  %v1361 = vunpack.c.l.s4 1966171168
  %v1362 = vunpack.c.0.s8 %v1361
  %v1363 = vlaneseq
  %v1364 = vshrl.u32 %v1363, 7
  %v1365 = vsub.s32 %v1362, %v1364
  %v1366 = vrot.slane %v1352, %v1365
  %v1367 = vcombine.high %v1359, %v1359
  %v1368 = vcombine.high %v1366, %v1366
  %v1370 = vunpack.c.l.s4 1966171168
  %v1371 = vunpack.c.0.s8 %v1370
  %v1372 = vlaneseq
  %v1373 = vshrl.u32 %v1372, 7
  %v1374 = vsub.s32 %v1371, %v1373
  %v1375 = vrot.slane %v1359, %v1374
  %v1377 = vunpack.c.l.s4 1966171168
  %v1378 = vunpack.c.0.s8 %v1377
  %v1379 = vlaneseq
  %v1380 = vshrl.u32 %v1379, 7
  %v1381 = vsub.s32 %v1378, %v1380
  %v1382 = vrot.slane %v1366, %v1381
  %v1384 = vunpack.c.l.s4 1966171168
  %v1385 = vunpack.c.0.s8 %v1384
  %v1386 = vlaneseq
  %v1387 = vshrl.u32 %v1386, 7
  %v1388 = vsub.s32 %v1385, %v1387
  %v1389 = vrot.slane %v1367, %v1388
  %v1391 = vunpack.c.l.s4 1966171168
  %v1392 = vunpack.c.0.s8 %v1391
  %v1393 = vlaneseq
  %v1394 = vshrl.u32 %v1393, 7
  %v1395 = vsub.s32 %v1392, %v1394
  %v1396 = vrot.slane %v1368, %v1395
  %v1397 = vcombine.high %v1375, %v1375
  %v1398 = vcombine.high %v1382, %v1382
  %v1399 = vcombine.high %v1389, %v1389
  %v1400 = vcombine.high %v1396, %v1396
  %v1401 = vlaneseq
  %v1402 = vshrl.u32 %v1401, 7
  %v1403 = vsub.s32 0, %v1402
  %v1404 = vrot.slane %v1375, %v1403
  %v1405 = vlaneseq
  %v1406 = vshrl.u32 %v1405, 7
  %v1407 = vsub.s32 1, %v1406
  %v1408 = vrot.slane %v1375, %v1407
  %v1409 = vlaneseq
  %v1410 = vshrl.u32 %v1409, 7
  %v1411 = vsub.s32 0, %v1410
  %v1412 = vrot.slane %v1389, %v1411
  %v1413 = vlaneseq
  %v1414 = vshrl.u32 %v1413, 7
  %v1415 = vsub.s32 1, %v1414
  %v1416 = vrot.slane %v1389, %v1415
  %v1417 = vlaneseq
  %v1418 = vshrl.u32 %v1417, 7
  %v1419 = vsub.s32 0, %v1418
  %v1420 = vrot.slane %v1397, %v1419
  %v1421 = vlaneseq
  %v1422 = vshrl.u32 %v1421, 7
  %v1423 = vsub.s32 1, %v1422
  %v1424 = vrot.slane %v1397, %v1423
  %v1425 = vlaneseq
  %v1426 = vshrl.u32 %v1425, 7
  %v1427 = vsub.s32 0, %v1426
  %v1428 = vrot.slane %v1399, %v1427
  %v1429 = vlaneseq
  %v1430 = vshrl.u32 %v1429, 7
  %v1431 = vsub.s32 1, %v1430
  %v1432 = vrot.slane %v1399, %v1431
  %v1433 = vlaneseq
  %v1434 = vshrl.u32 %v1433, 7
  %v1435 = vsub.s32 0, %v1434
  %v1436 = vrot.slane %v1382, %v1435
  %v1437 = vlaneseq
  %v1438 = vshrl.u32 %v1437, 7
  %v1439 = vsub.s32 1, %v1438
  %v1440 = vrot.slane %v1382, %v1439
  %v1441 = vlaneseq
  %v1442 = vshrl.u32 %v1441, 7
  %v1443 = vsub.s32 0, %v1442
  %v1444 = vrot.slane %v1396, %v1443
  %v1445 = vlaneseq
  %v1446 = vshrl.u32 %v1445, 7
  %v1447 = vsub.s32 1, %v1446
  %v1448 = vrot.slane %v1396, %v1447
  %v1449 = vlaneseq
  %v1450 = vshrl.u32 %v1449, 7
  %v1451 = vsub.s32 0, %v1450
  %v1452 = vrot.slane %v1398, %v1451
  %v1453 = vlaneseq
  %v1454 = vshrl.u32 %v1453, 7
  %v1455 = vsub.s32 1, %v1454
  %v1456 = vrot.slane %v1398, %v1455
  %v1457 = vlaneseq
  %v1458 = vshrl.u32 %v1457, 7
  %v1459 = vsub.s32 0, %v1458
  %v1460 = vrot.slane %v1400, %v1459
  %v1461 = vlaneseq
  %v1462 = vshrl.u32 %v1461, 7
  %v1463 = vsub.s32 1, %v1462
  %v1464 = vrot.slane %v1400, %v1463
  %v1481 = vadd.f32 %v1111, %v1404
  %v1482 = vadd.f32 %v1113, %v1408
  %v1483 = vadd.f32 %v1117, %v1404
  %v1484 = vadd.f32 %v1119, %v1408
  %v1485 = vadd.f32 %v1123, %v1404
  %v1486 = vadd.f32 %v1125, %v1408
  %v1487 = vadd.f32 %v1129, %v1404
  %v1488 = vadd.f32 %v1131, %v1408
  %v1489 = vadd.f32 %v1135, %v1412
  %v1490 = vadd.f32 %v1137, %v1416
  %v1491 = vadd.f32 %v1141, %v1412
  %v1492 = vadd.f32 %v1143, %v1416
  %v1493 = vadd.f32 %v1147, %v1412
  %v1494 = vadd.f32 %v1149, %v1416
  %v1495 = vadd.f32 %v1153, %v1412
  %v1496 = vadd.f32 %v1155, %v1416
  %v1497 = vadd.f32 %v1159, %v1420
  %v1498 = vadd.f32 %v1161, %v1424
  %v1499 = vadd.f32 %v1165, %v1420
  %v1500 = vadd.f32 %v1167, %v1424
  %v1501 = vadd.f32 %v1171, %v1420
  %v1502 = vadd.f32 %v1173, %v1424
  %v1503 = vadd.f32 %v1177, %v1420
  %v1504 = vadd.f32 %v1179, %v1424
  %v1505 = vadd.f32 %v1183, %v1428
  %v1506 = vadd.f32 %v1185, %v1432
  %v1507 = vadd.f32 %v1189, %v1428
  %v1508 = vadd.f32 %v1191, %v1432
  %v1509 = vadd.f32 %v1195, %v1428
  %v1510 = vadd.f32 %v1197, %v1432
  %v1511 = vadd.f32 %v1201, %v1428
  %v1512 = vadd.f32 %v1203, %v1432
  %v1513 = vadd.f32 %v1207, %v1436
  %v1514 = vadd.f32 %v1209, %v1440
  %v1515 = vadd.f32 %v1213, %v1436
  %v1516 = vadd.f32 %v1215, %v1440
  %v1517 = vadd.f32 %v1219, %v1436
  %v1518 = vadd.f32 %v1221, %v1440
  %v1519 = vadd.f32 %v1225, %v1436
  %v1520 = vadd.f32 %v1227, %v1440
  %v1521 = vadd.f32 %v1231, %v1444
  %v1522 = vadd.f32 %v1233, %v1448
  %v1523 = vadd.f32 %v1237, %v1444
  %v1524 = vadd.f32 %v1239, %v1448
  %v1525 = vadd.f32 %v1243, %v1444
  %v1526 = vadd.f32 %v1245, %v1448
  %v1527 = vadd.f32 %v1249, %v1444
  %v1528 = vadd.f32 %v1251, %v1448
  %v1529 = vadd.f32 %v1255, %v1452
  %v1530 = vadd.f32 %v1257, %v1456
  %v1531 = vadd.f32 %v1261, %v1452
  %v1532 = vadd.f32 %v1263, %v1456
  %v1533 = vadd.f32 %v1267, %v1452
  %v1534 = vadd.f32 %v1269, %v1456
  %v1535 = vadd.f32 %v1273, %v1452
  %v1536 = vadd.f32 %v1275, %v1456
  %v1537 = vadd.f32 %v1279, %v1460
  %v1538 = vadd.f32 %v1281, %v1464
  %v1539 = vadd.f32 %v1285, %v1460
  %v1540 = vadd.f32 %v1287, %v1464
  %v1541 = vadd.f32 %v1291, %v1460
  %v1542 = vadd.f32 %v1293, %v1464
  %v1543 = vadd.f32 %v1297, %v1460
  %v1544 = vadd.f32 %v1299, %v1464
  %v1545 = vadd.f32 %v1481, %v1482
  %1546 = vadd.xlane.f32.xlu0 %v1545
  %v1547 = vpop.xlane.xlu0 %1546
  %v1548 = vadd.f32 %v1483, %v1484
  %1549 = vadd.xlane.f32.xlu0 %v1548
  %v1550 = vpop.xlane.xlu0 %1549
  %v1551 = vadd.f32 %v1485, %v1486
  %1552 = vadd.xlane.f32.xlu0 %v1551
  %v1553 = vpop.xlane.xlu0 %1552
  %v1554 = vadd.f32 %v1487, %v1488
  %1555 = vadd.xlane.f32.xlu0 %v1554
  %v1556 = vpop.xlane.xlu0 %1555
  %v1557 = vadd.f32 %v1489, %v1490
  %1558 = vadd.xlane.f32.xlu0 %v1557
  %v1559 = vpop.xlane.xlu0 %1558
  %v1560 = vadd.f32 %v1491, %v1492
  %1561 = vadd.xlane.f32.xlu0 %v1560
  %v1562 = vpop.xlane.xlu0 %1561
  %v1563 = vadd.f32 %v1493, %v1494
  %1564 = vadd.xlane.f32.xlu0 %v1563
  %v1565 = vpop.xlane.xlu0 %1564
  %v1566 = vadd.f32 %v1495, %v1496
  %1567 = vadd.xlane.f32.xlu0 %v1566
  %v1568 = vpop.xlane.xlu0 %1567
  %v1569 = vadd.f32 %v1497, %v1498
  %1570 = vadd.xlane.f32.xlu0 %v1569
  %v1571 = vpop.xlane.xlu0 %1570
  %v1572 = vadd.f32 %v1499, %v1500
  %1573 = vadd.xlane.f32.xlu0 %v1572
  %v1574 = vpop.xlane.xlu0 %1573
  %v1575 = vadd.f32 %v1501, %v1502
  %1576 = vadd.xlane.f32.xlu0 %v1575
  %v1577 = vpop.xlane.xlu0 %1576
  %v1578 = vadd.f32 %v1503, %v1504
  %1579 = vadd.xlane.f32.xlu0 %v1578
  %v1580 = vpop.xlane.xlu0 %1579
  %v1581 = vadd.f32 %v1505, %v1506
  %1582 = vadd.xlane.f32.xlu0 %v1581
  %v1583 = vpop.xlane.xlu0 %1582
  %v1584 = vadd.f32 %v1507, %v1508
  %1585 = vadd.xlane.f32.xlu0 %v1584
  %v1586 = vpop.xlane.xlu0 %1585
  %v1587 = vadd.f32 %v1509, %v1510
  %1588 = vadd.xlane.f32.xlu0 %v1587
  %v1589 = vpop.xlane.xlu0 %1588
  %v1590 = vadd.f32 %v1511, %v1512
  %1591 = vadd.xlane.f32.xlu0 %v1590
  %v1592 = vpop.xlane.xlu0 %1591
  %v1593 = vadd.f32 %v1513, %v1514
  %1594 = vadd.xlane.f32.xlu0 %v1593
  %v1595 = vpop.xlane.xlu0 %1594
  %v1596 = vadd.f32 %v1515, %v1516
  %1597 = vadd.xlane.f32.xlu0 %v1596
  %v1598 = vpop.xlane.xlu0 %1597
  %v1599 = vadd.f32 %v1517, %v1518
  %1600 = vadd.xlane.f32.xlu0 %v1599
  %v1601 = vpop.xlane.xlu0 %1600
  %v1602 = vadd.f32 %v1519, %v1520
  %1603 = vadd.xlane.f32.xlu0 %v1602
  %v1604 = vpop.xlane.xlu0 %1603
  %v1605 = vadd.f32 %v1521, %v1522
  %1606 = vadd.xlane.f32.xlu0 %v1605
  %v1607 = vpop.xlane.xlu0 %1606
  %v1608 = vadd.f32 %v1523, %v1524
  %1609 = vadd.xlane.f32.xlu0 %v1608
  %v1610 = vpop.xlane.xlu0 %1609
  %v1611 = vadd.f32 %v1525, %v1526
  %1612 = vadd.xlane.f32.xlu0 %v1611
  %v1613 = vpop.xlane.xlu0 %1612
  %v1614 = vadd.f32 %v1527, %v1528
  %1615 = vadd.xlane.f32.xlu0 %v1614
  %v1616 = vpop.xlane.xlu0 %1615
  %v1617 = vadd.f32 %v1529, %v1530
  %1618 = vadd.xlane.f32.xlu0 %v1617
  %v1619 = vpop.xlane.xlu0 %1618
  %v1620 = vadd.f32 %v1531, %v1532
  %1621 = vadd.xlane.f32.xlu0 %v1620
  %v1622 = vpop.xlane.xlu0 %1621
  %v1623 = vadd.f32 %v1533, %v1534
  %1624 = vadd.xlane.f32.xlu0 %v1623
  %v1625 = vpop.xlane.xlu0 %1624
  %v1626 = vadd.f32 %v1535, %v1536
  %1627 = vadd.xlane.f32.xlu0 %v1626
  %v1628 = vpop.xlane.xlu0 %1627
  %v1629 = vadd.f32 %v1537, %v1538
  %1630 = vadd.xlane.f32.xlu0 %v1629
  %v1631 = vpop.xlane.xlu0 %1630
  %v1632 = vadd.f32 %v1539, %v1540
  %1633 = vadd.xlane.f32.xlu0 %v1632
  %v1634 = vpop.xlane.xlu0 %1633
  %v1635 = vadd.f32 %v1541, %v1542
  %1636 = vadd.xlane.f32.xlu0 %v1635
  %v1637 = vpop.xlane.xlu0 %1636
  %v1638 = vadd.f32 %v1543, %v1544
  %1639 = vadd.xlane.f32.xlu0 %v1638
  %v1640 = vpop.xlane.xlu0 %1639
  %v1641 = vmul.f32 %v1547, 0.005
  %v1642 = vmul.f32 %v1550, 0.005
  %v1643 = vmul.f32 %v1553, 0.005
  %v1644 = vmul.f32 %v1556, 0.005
  %v1645 = vmul.f32 %v1559, 0.005
  %v1646 = vmul.f32 %v1562, 0.005
  %v1647 = vmul.f32 %v1565, 0.005
  %v1648 = vmul.f32 %v1568, 0.005
  %v1649 = vmul.f32 %v1571, 0.005
  %v1650 = vmul.f32 %v1574, 0.005
  %v1651 = vmul.f32 %v1577, 0.005
  %v1652 = vmul.f32 %v1580, 0.005
  %v1653 = vmul.f32 %v1583, 0.005
  %v1654 = vmul.f32 %v1586, 0.005
  %v1655 = vmul.f32 %v1589, 0.005
  %v1656 = vmul.f32 %v1592, 0.005
  %v1657 = vmul.f32 %v1595, 0.005
  %v1658 = vmul.f32 %v1598, 0.005
  %v1659 = vmul.f32 %v1601, 0.005
  %v1660 = vmul.f32 %v1604, 0.005
  %v1661 = vmul.f32 %v1607, 0.005
  %v1662 = vmul.f32 %v1610, 0.005
  %v1663 = vmul.f32 %v1613, 0.005
  %v1664 = vmul.f32 %v1616, 0.005
  %v1665 = vmul.f32 %v1619, 0.005
  %v1666 = vmul.f32 %v1622, 0.005
  %v1667 = vmul.f32 %v1625, 0.005
  %v1668 = vmul.f32 %v1628, 0.005
  %v1669 = vmul.f32 %v1631, 0.005
  %v1670 = vmul.f32 %v1634, 0.005
  %v1671 = vmul.f32 %v1637, 0.005
  %v1672 = vmul.f32 %v1640, 0.005
  %v1673 = vmul.f32 %v1481, %v1481
  %v1674 = vmul.f32 %v1482, %v1482
  %v1675 = vmul.f32 %v1483, %v1483
  %v1676 = vmul.f32 %v1484, %v1484
  %v1677 = vmul.f32 %v1485, %v1485
  %v1678 = vmul.f32 %v1486, %v1486
  %v1679 = vmul.f32 %v1487, %v1487
  %v1680 = vmul.f32 %v1488, %v1488
  %v1681 = vmul.f32 %v1489, %v1489
  %v1682 = vmul.f32 %v1490, %v1490
  %v1683 = vmul.f32 %v1491, %v1491
  %v1684 = vmul.f32 %v1492, %v1492
  %v1685 = vmul.f32 %v1493, %v1493
  %v1686 = vmul.f32 %v1494, %v1494
  %v1687 = vmul.f32 %v1495, %v1495
  %v1688 = vmul.f32 %v1496, %v1496
  %v1689 = vmul.f32 %v1497, %v1497
  %v1690 = vmul.f32 %v1498, %v1498
  %v1691 = vmul.f32 %v1499, %v1499
  %v1692 = vmul.f32 %v1500, %v1500
  %v1693 = vmul.f32 %v1501, %v1501
  %v1694 = vmul.f32 %v1502, %v1502
  %v1695 = vmul.f32 %v1503, %v1503
  %v1696 = vmul.f32 %v1504, %v1504
  %v1697 = vmul.f32 %v1505, %v1505
  %v1698 = vmul.f32 %v1506, %v1506
  %v1699 = vmul.f32 %v1507, %v1507
  %v1700 = vmul.f32 %v1508, %v1508
  %v1701 = vmul.f32 %v1509, %v1509
  %v1702 = vmul.f32 %v1510, %v1510
  %v1703 = vmul.f32 %v1511, %v1511
  %v1704 = vmul.f32 %v1512, %v1512
  %v1705 = vmul.f32 %v1513, %v1513
  %v1706 = vmul.f32 %v1514, %v1514
  %v1707 = vmul.f32 %v1515, %v1515
  %v1708 = vmul.f32 %v1516, %v1516
  %v1709 = vmul.f32 %v1517, %v1517
  %v1710 = vmul.f32 %v1518, %v1518
  %v1711 = vmul.f32 %v1519, %v1519
  %v1712 = vmul.f32 %v1520, %v1520
  %v1713 = vmul.f32 %v1521, %v1521
  %v1714 = vmul.f32 %v1522, %v1522
  %v1715 = vmul.f32 %v1523, %v1523
  %v1716 = vmul.f32 %v1524, %v1524
  %v1717 = vmul.f32 %v1525, %v1525
  %v1718 = vmul.f32 %v1526, %v1526
  %v1719 = vmul.f32 %v1527, %v1527
  %v1720 = vmul.f32 %v1528, %v1528
  %v1721 = vmul.f32 %v1529, %v1529
  %v1722 = vmul.f32 %v1530, %v1530
  %v1723 = vmul.f32 %v1531, %v1531
  %v1724 = vmul.f32 %v1532, %v1532
  %v1725 = vmul.f32 %v1533, %v1533
  %v1726 = vmul.f32 %v1534, %v1534
  %v1727 = vmul.f32 %v1535, %v1535
  %v1728 = vmul.f32 %v1536, %v1536
  %v1729 = vmul.f32 %v1537, %v1537
  %v1730 = vmul.f32 %v1538, %v1538
  %v1731 = vmul.f32 %v1539, %v1539
  %v1732 = vmul.f32 %v1540, %v1540
  %v1733 = vmul.f32 %v1541, %v1541
  %v1734 = vmul.f32 %v1542, %v1542
  %v1735 = vmul.f32 %v1543, %v1543
  %v1736 = vmul.f32 %v1544, %v1544
  %v1737 = vadd.f32 %v1673, %v1674
  %1738 = vadd.xlane.f32.xlu0 %v1737
  %v1739 = vpop.xlane.xlu0 %1738
  %v1740 = vadd.f32 %v1675, %v1676
  %1741 = vadd.xlane.f32.xlu0 %v1740
  %v1742 = vpop.xlane.xlu0 %1741
  %v1743 = vadd.f32 %v1677, %v1678
  %1744 = vadd.xlane.f32.xlu0 %v1743
  %v1745 = vpop.xlane.xlu0 %1744
  %v1746 = vadd.f32 %v1679, %v1680
  %1747 = vadd.xlane.f32.xlu0 %v1746
  %v1748 = vpop.xlane.xlu0 %1747
  %v1749 = vadd.f32 %v1681, %v1682
  %1750 = vadd.xlane.f32.xlu0 %v1749
  %v1751 = vpop.xlane.xlu0 %1750
  %v1752 = vadd.f32 %v1683, %v1684
  %1753 = vadd.xlane.f32.xlu0 %v1752
  %v1754 = vpop.xlane.xlu0 %1753
  %v1755 = vadd.f32 %v1685, %v1686
  %1756 = vadd.xlane.f32.xlu0 %v1755
  %v1757 = vpop.xlane.xlu0 %1756
  %v1758 = vadd.f32 %v1687, %v1688
  %1759 = vadd.xlane.f32.xlu0 %v1758
  %v1760 = vpop.xlane.xlu0 %1759
  %v1761 = vadd.f32 %v1689, %v1690
  %1762 = vadd.xlane.f32.xlu0 %v1761
  %v1763 = vpop.xlane.xlu0 %1762
  %v1764 = vadd.f32 %v1691, %v1692
  %1765 = vadd.xlane.f32.xlu0 %v1764
  %v1766 = vpop.xlane.xlu0 %1765
  %v1767 = vadd.f32 %v1693, %v1694
  %1768 = vadd.xlane.f32.xlu0 %v1767
  %v1769 = vpop.xlane.xlu0 %1768
  %v1770 = vadd.f32 %v1695, %v1696
  %1771 = vadd.xlane.f32.xlu0 %v1770
  %v1772 = vpop.xlane.xlu0 %1771
  %v1773 = vadd.f32 %v1697, %v1698
  %1774 = vadd.xlane.f32.xlu0 %v1773
  %v1775 = vpop.xlane.xlu0 %1774
  %v1776 = vadd.f32 %v1699, %v1700
  %1777 = vadd.xlane.f32.xlu0 %v1776
  %v1778 = vpop.xlane.xlu0 %1777
  %v1779 = vadd.f32 %v1701, %v1702
  %1780 = vadd.xlane.f32.xlu0 %v1779
  %v1781 = vpop.xlane.xlu0 %1780
  %v1782 = vadd.f32 %v1703, %v1704
  %1783 = vadd.xlane.f32.xlu0 %v1782
  %v1784 = vpop.xlane.xlu0 %1783
  %v1785 = vadd.f32 %v1705, %v1706
  %1786 = vadd.xlane.f32.xlu0 %v1785
  %v1787 = vpop.xlane.xlu0 %1786
  %v1788 = vadd.f32 %v1707, %v1708
  %1789 = vadd.xlane.f32.xlu0 %v1788
  %v1790 = vpop.xlane.xlu0 %1789
  %v1791 = vadd.f32 %v1709, %v1710
  %1792 = vadd.xlane.f32.xlu0 %v1791
  %v1793 = vpop.xlane.xlu0 %1792
  %v1794 = vadd.f32 %v1711, %v1712
  %1795 = vadd.xlane.f32.xlu0 %v1794
  %v1796 = vpop.xlane.xlu0 %1795
  %v1797 = vadd.f32 %v1713, %v1714
  %1798 = vadd.xlane.f32.xlu0 %v1797
  %v1799 = vpop.xlane.xlu0 %1798
  %v1800 = vadd.f32 %v1715, %v1716
  %1801 = vadd.xlane.f32.xlu0 %v1800
  %v1802 = vpop.xlane.xlu0 %1801
  %v1803 = vadd.f32 %v1717, %v1718
  %1804 = vadd.xlane.f32.xlu0 %v1803
  %v1805 = vpop.xlane.xlu0 %1804
  %v1806 = vadd.f32 %v1719, %v1720
  %1807 = vadd.xlane.f32.xlu0 %v1806
  %v1808 = vpop.xlane.xlu0 %1807
  %v1809 = vadd.f32 %v1721, %v1722
  %1810 = vadd.xlane.f32.xlu0 %v1809
  %v1811 = vpop.xlane.xlu0 %1810
  %v1812 = vadd.f32 %v1723, %v1724
  %1813 = vadd.xlane.f32.xlu0 %v1812
  %v1814 = vpop.xlane.xlu0 %1813
  %v1815 = vadd.f32 %v1725, %v1726
  %1816 = vadd.xlane.f32.xlu0 %v1815
  %v1817 = vpop.xlane.xlu0 %1816
  %v1818 = vadd.f32 %v1727, %v1728
  %1819 = vadd.xlane.f32.xlu0 %v1818
  %v1820 = vpop.xlane.xlu0 %1819
  %v1821 = vadd.f32 %v1729, %v1730
  %1822 = vadd.xlane.f32.xlu0 %v1821
  %v1823 = vpop.xlane.xlu0 %1822
  %v1824 = vadd.f32 %v1731, %v1732
  %1825 = vadd.xlane.f32.xlu0 %v1824
  %v1826 = vpop.xlane.xlu0 %1825
  %v1827 = vadd.f32 %v1733, %v1734
  %1828 = vadd.xlane.f32.xlu0 %v1827
  %v1829 = vpop.xlane.xlu0 %1828
  %v1830 = vadd.f32 %v1735, %v1736
  %1831 = vadd.xlane.f32.xlu0 %v1830
  %v1832 = vpop.xlane.xlu0 %1831
  %v1833 = vmul.f32 %v1739, 0.005
  %v1834 = vmul.f32 %v1742, 0.005
  %v1835 = vmul.f32 %v1745, 0.005
  %v1836 = vmul.f32 %v1748, 0.005
  %v1837 = vmul.f32 %v1751, 0.005
  %v1838 = vmul.f32 %v1754, 0.005
  %v1839 = vmul.f32 %v1757, 0.005
  %v1840 = vmul.f32 %v1760, 0.005
  %v1841 = vmul.f32 %v1763, 0.005
  %v1842 = vmul.f32 %v1766, 0.005
  %v1843 = vmul.f32 %v1769, 0.005
  %v1844 = vmul.f32 %v1772, 0.005
  %v1845 = vmul.f32 %v1775, 0.005
  %v1846 = vmul.f32 %v1778, 0.005
  %v1847 = vmul.f32 %v1781, 0.005
  %v1848 = vmul.f32 %v1784, 0.005
  %v1849 = vmul.f32 %v1787, 0.005
  %v1850 = vmul.f32 %v1790, 0.005
  %v1851 = vmul.f32 %v1793, 0.005
  %v1852 = vmul.f32 %v1796, 0.005
  %v1853 = vmul.f32 %v1799, 0.005
  %v1854 = vmul.f32 %v1802, 0.005
  %v1855 = vmul.f32 %v1805, 0.005
  %v1856 = vmul.f32 %v1808, 0.005
  %v1857 = vmul.f32 %v1811, 0.005
  %v1858 = vmul.f32 %v1814, 0.005
  %v1859 = vmul.f32 %v1817, 0.005
  %v1860 = vmul.f32 %v1820, 0.005
  %v1861 = vmul.f32 %v1823, 0.005
  %v1862 = vmul.f32 %v1826, 0.005
  %v1863 = vmul.f32 %v1829, 0.005
  %v1864 = vmul.f32 %v1832, 0.005
  %v1865 = vmul.f32 %v1641, %v1641
  %v1866 = vmul.f32 %v1642, %v1642
  %v1867 = vmul.f32 %v1643, %v1643
  %v1868 = vmul.f32 %v1644, %v1644
  %v1869 = vmul.f32 %v1645, %v1645
  %v1870 = vmul.f32 %v1646, %v1646
  %v1871 = vmul.f32 %v1647, %v1647
  %v1872 = vmul.f32 %v1648, %v1648
  %v1873 = vmul.f32 %v1649, %v1649
  %v1874 = vmul.f32 %v1650, %v1650
  %v1875 = vmul.f32 %v1651, %v1651
  %v1876 = vmul.f32 %v1652, %v1652
  %v1877 = vmul.f32 %v1653, %v1653
  %v1878 = vmul.f32 %v1654, %v1654
  %v1879 = vmul.f32 %v1655, %v1655
  %v1880 = vmul.f32 %v1656, %v1656
  %v1881 = vmul.f32 %v1657, %v1657
  %v1882 = vmul.f32 %v1658, %v1658
  %v1883 = vmul.f32 %v1659, %v1659
  %v1884 = vmul.f32 %v1660, %v1660
  %v1885 = vmul.f32 %v1661, %v1661
  %v1886 = vmul.f32 %v1662, %v1662
  %v1887 = vmul.f32 %v1663, %v1663
  %v1888 = vmul.f32 %v1664, %v1664
  %v1889 = vmul.f32 %v1665, %v1665
  %v1890 = vmul.f32 %v1666, %v1666
  %v1891 = vmul.f32 %v1667, %v1667
  %v1892 = vmul.f32 %v1668, %v1668
  %v1893 = vmul.f32 %v1669, %v1669
  %v1894 = vmul.f32 %v1670, %v1670
  %v1895 = vmul.f32 %v1671, %v1671
  %v1896 = vmul.f32 %v1672, %v1672
  %v1897 = vsub.f32 %v1833, %v1865
  %v1898 = vsub.f32 %v1834, %v1866
  %v1899 = vsub.f32 %v1835, %v1867
  %v1900 = vsub.f32 %v1836, %v1868
  %v1901 = vsub.f32 %v1837, %v1869
  %v1902 = vsub.f32 %v1838, %v1870
  %v1903 = vsub.f32 %v1839, %v1871
  %v1904 = vsub.f32 %v1840, %v1872
  %v1905 = vsub.f32 %v1841, %v1873
  %v1906 = vsub.f32 %v1842, %v1874
  %v1907 = vsub.f32 %v1843, %v1875
  %v1908 = vsub.f32 %v1844, %v1876
  %v1909 = vsub.f32 %v1845, %v1877
  %v1910 = vsub.f32 %v1846, %v1878
  %v1911 = vsub.f32 %v1847, %v1879
  %v1912 = vsub.f32 %v1848, %v1880
  %v1913 = vsub.f32 %v1849, %v1881
  %v1914 = vsub.f32 %v1850, %v1882
  %v1915 = vsub.f32 %v1851, %v1883
  %v1916 = vsub.f32 %v1852, %v1884
  %v1917 = vsub.f32 %v1853, %v1885
  %v1918 = vsub.f32 %v1854, %v1886
  %v1919 = vsub.f32 %v1855, %v1887
  %v1920 = vsub.f32 %v1856, %v1888
  %v1921 = vsub.f32 %v1857, %v1889
  %v1922 = vsub.f32 %v1858, %v1890
  %v1923 = vsub.f32 %v1859, %v1891
  %v1924 = vsub.f32 %v1860, %v1892
  %v1925 = vsub.f32 %v1861, %v1893
  %v1926 = vsub.f32 %v1862, %v1894
  %v1927 = vsub.f32 %v1863, %v1895
  %v1928 = vsub.f32 %v1864, %v1896
  %v1929 = vsub.f32 %v1481, %v1641
  %v1930 = vsub.f32 %v1482, %v1641
  %v1931 = vsub.f32 %v1483, %v1642
  %v1932 = vsub.f32 %v1484, %v1642
  %v1933 = vsub.f32 %v1485, %v1643
  %v1934 = vsub.f32 %v1486, %v1643
  %v1935 = vsub.f32 %v1487, %v1644
  %v1936 = vsub.f32 %v1488, %v1644
  %v1937 = vsub.f32 %v1489, %v1645
  %v1938 = vsub.f32 %v1490, %v1645
  %v1939 = vsub.f32 %v1491, %v1646
  %v1940 = vsub.f32 %v1492, %v1646
  %v1941 = vsub.f32 %v1493, %v1647
  %v1942 = vsub.f32 %v1494, %v1647
  %v1943 = vsub.f32 %v1495, %v1648
  %v1944 = vsub.f32 %v1496, %v1648
  %v1945 = vsub.f32 %v1497, %v1649
  %v1946 = vsub.f32 %v1498, %v1649
  %v1947 = vsub.f32 %v1499, %v1650
  %v1948 = vsub.f32 %v1500, %v1650
  %v1949 = vsub.f32 %v1501, %v1651
  %v1950 = vsub.f32 %v1502, %v1651
  %v1951 = vsub.f32 %v1503, %v1652
  %v1952 = vsub.f32 %v1504, %v1652
  %v1953 = vsub.f32 %v1505, %v1653
  %v1954 = vsub.f32 %v1506, %v1653
  %v1955 = vsub.f32 %v1507, %v1654
  %v1956 = vsub.f32 %v1508, %v1654
  %v1957 = vsub.f32 %v1509, %v1655
  %v1958 = vsub.f32 %v1510, %v1655
  %v1959 = vsub.f32 %v1511, %v1656
  %v1960 = vsub.f32 %v1512, %v1656
  %v1961 = vsub.f32 %v1513, %v1657
  %v1962 = vsub.f32 %v1514, %v1657
  %v1963 = vsub.f32 %v1515, %v1658
  %v1964 = vsub.f32 %v1516, %v1658
  %v1965 = vsub.f32 %v1517, %v1659
  %v1966 = vsub.f32 %v1518, %v1659
  %v1967 = vsub.f32 %v1519, %v1660
  %v1968 = vsub.f32 %v1520, %v1660
  %v1969 = vsub.f32 %v1521, %v1661
  %v1970 = vsub.f32 %v1522, %v1661
  %v1971 = vsub.f32 %v1523, %v1662
  %v1972 = vsub.f32 %v1524, %v1662
  %v1973 = vsub.f32 %v1525, %v1663
  %v1974 = vsub.f32 %v1526, %v1663
  %v1975 = vsub.f32 %v1527, %v1664
  %v1976 = vsub.f32 %v1528, %v1664
  %v1977 = vsub.f32 %v1529, %v1665
  %v1978 = vsub.f32 %v1530, %v1665
  %v1979 = vsub.f32 %v1531, %v1666
  %v1980 = vsub.f32 %v1532, %v1666
  %v1981 = vsub.f32 %v1533, %v1667
  %v1982 = vsub.f32 %v1534, %v1667
  %v1983 = vsub.f32 %v1535, %v1668
  %v1984 = vsub.f32 %v1536, %v1668
  %v1985 = vsub.f32 %v1537, %v1669
  %v1986 = vsub.f32 %v1538, %v1669
  %v1987 = vsub.f32 %v1539, %v1670
  %v1988 = vsub.f32 %v1540, %v1670
  %v1989 = vsub.f32 %v1541, %v1671
  %v1990 = vsub.f32 %v1542, %v1671
  %v1991 = vsub.f32 %v1543, %v1672
  %v1992 = vsub.f32 %v1544, %v1672
  %v1993 = vadd.f32 %v1897, 1e-05
  %v1994 = vadd.f32 %v1898, 1e-05
  %v1995 = vadd.f32 %v1899, 1e-05
  %v1996 = vadd.f32 %v1900, 1e-05
  %v1997 = vadd.f32 %v1901, 1e-05
  %v1998 = vadd.f32 %v1902, 1e-05
  %v1999 = vadd.f32 %v1903, 1e-05
  %v2000 = vadd.f32 %v1904, 1e-05
  %v2001 = vadd.f32 %v1905, 1e-05
  %v2002 = vadd.f32 %v1906, 1e-05
  %v2003 = vadd.f32 %v1907, 1e-05
  %v2004 = vadd.f32 %v1908, 1e-05
  %v2005 = vadd.f32 %v1909, 1e-05
  %v2006 = vadd.f32 %v1910, 1e-05
  %v2007 = vadd.f32 %v1911, 1e-05
  %v2008 = vadd.f32 %v1912, 1e-05
  %v2009 = vadd.f32 %v1913, 1e-05
  %v2010 = vadd.f32 %v1914, 1e-05
  %v2011 = vadd.f32 %v1915, 1e-05
  %v2012 = vadd.f32 %v1916, 1e-05
  %v2013 = vadd.f32 %v1917, 1e-05
  %v2014 = vadd.f32 %v1918, 1e-05
  %v2015 = vadd.f32 %v1919, 1e-05
  %v2016 = vadd.f32 %v1920, 1e-05
  %v2017 = vadd.f32 %v1921, 1e-05
  %v2018 = vadd.f32 %v1922, 1e-05
  %v2019 = vadd.f32 %v1923, 1e-05
  %v2020 = vadd.f32 %v1924, 1e-05
  %v2021 = vadd.f32 %v1925, 1e-05
  %v2022 = vadd.f32 %v1926, 1e-05
  %v2023 = vadd.f32 %v1927, 1e-05
  %v2024 = vadd.f32 %v1928, 1e-05
  %v2025 = vrsqrt.pop %v1993
  %v2026 = vrsqrt.pop %v1994
  %v2027 = vrsqrt.pop %v1995
  %v2028 = vrsqrt.pop %v1996
  %v2029 = vrsqrt.pop %v1997
  %v2030 = vrsqrt.pop %v1998
  %v2031 = vrsqrt.pop %v1999
  %v2032 = vrsqrt.pop %v2000
  %v2033 = vrsqrt.pop %v2001
  %v2034 = vrsqrt.pop %v2002
  %v2035 = vrsqrt.pop %v2003
  %v2036 = vrsqrt.pop %v2004
  %v2037 = vrsqrt.pop %v2005
  %v2038 = vrsqrt.pop %v2006
  %v2039 = vrsqrt.pop %v2007
  %v2040 = vrsqrt.pop %v2008
  %v2041 = vrsqrt.pop %v2009
  %v2042 = vrsqrt.pop %v2010
  %v2043 = vrsqrt.pop %v2011
  %v2044 = vrsqrt.pop %v2012
  %v2045 = vrsqrt.pop %v2013
  %v2046 = vrsqrt.pop %v2014
  %v2047 = vrsqrt.pop %v2015
  %v2048 = vrsqrt.pop %v2016
  %v2049 = vrsqrt.pop %v2017
  %v2050 = vrsqrt.pop %v2018
  %v2051 = vrsqrt.pop %v2019
  %v2052 = vrsqrt.pop %v2020
  %v2053 = vrsqrt.pop %v2021
  %v2054 = vrsqrt.pop %v2022
  %v2055 = vrsqrt.pop %v2023
  %v2056 = vrsqrt.pop %v2024
  %v2057 = vmul.f32 %v1929, %v2025
  %v2058 = vmul.f32 %v1930, %v2025
  %v2059 = vmul.f32 %v1931, %v2026
  %v2060 = vmul.f32 %v1932, %v2026
  %v2061 = vmul.f32 %v1933, %v2027
  %v2062 = vmul.f32 %v1934, %v2027
  %v2063 = vmul.f32 %v1935, %v2028
  %v2064 = vmul.f32 %v1936, %v2028
  %v2065 = vmul.f32 %v1937, %v2029
  %v2066 = vmul.f32 %v1938, %v2029
  %v2067 = vmul.f32 %v1939, %v2030
  %v2068 = vmul.f32 %v1940, %v2030
  %v2069 = vmul.f32 %v1941, %v2031
  %v2070 = vmul.f32 %v1942, %v2031
  %v2071 = vmul.f32 %v1943, %v2032
  %v2072 = vmul.f32 %v1944, %v2032
  %v2073 = vmul.f32 %v1945, %v2033
  %v2074 = vmul.f32 %v1946, %v2033
  %v2075 = vmul.f32 %v1947, %v2034
  %v2076 = vmul.f32 %v1948, %v2034
  %v2077 = vmul.f32 %v1949, %v2035
  %v2078 = vmul.f32 %v1950, %v2035
  %v2079 = vmul.f32 %v1951, %v2036
  %v2080 = vmul.f32 %v1952, %v2036
  %v2081 = vmul.f32 %v1953, %v2037
  %v2082 = vmul.f32 %v1954, %v2037
  %v2083 = vmul.f32 %v1955, %v2038
  %v2084 = vmul.f32 %v1956, %v2038
  %v2085 = vmul.f32 %v1957, %v2039
  %v2086 = vmul.f32 %v1958, %v2039
  %v2087 = vmul.f32 %v1959, %v2040
  %v2088 = vmul.f32 %v1960, %v2040
  %v2089 = vmul.f32 %v1961, %v2041
  %v2090 = vmul.f32 %v1962, %v2041
  %v2091 = vmul.f32 %v1963, %v2042
  %v2092 = vmul.f32 %v1964, %v2042
  %v2093 = vmul.f32 %v1965, %v2043
  %v2094 = vmul.f32 %v1966, %v2043
  %v2095 = vmul.f32 %v1967, %v2044
  %v2096 = vmul.f32 %v1968, %v2044
  %v2097 = vmul.f32 %v1969, %v2045
  %v2098 = vmul.f32 %v1970, %v2045
  %v2099 = vmul.f32 %v1971, %v2046
  %v2100 = vmul.f32 %v1972, %v2046
  %v2101 = vmul.f32 %v1973, %v2047
  %v2102 = vmul.f32 %v1974, %v2047
  %v2103 = vmul.f32 %v1975, %v2048
  %v2104 = vmul.f32 %v1976, %v2048
  %v2105 = vmul.f32 %v1977, %v2049
  %v2106 = vmul.f32 %v1978, %v2049
  %v2107 = vmul.f32 %v1979, %v2050
  %v2108 = vmul.f32 %v1980, %v2050
  %v2109 = vmul.f32 %v1981, %v2051
  %v2110 = vmul.f32 %v1982, %v2051
  %v2111 = vmul.f32 %v1983, %v2052
  %v2112 = vmul.f32 %v1984, %v2052
  %v2113 = vmul.f32 %v1985, %v2053
  %v2114 = vmul.f32 %v1986, %v2053
  %v2115 = vmul.f32 %v1987, %v2054
  %v2116 = vmul.f32 %v1988, %v2054
  %v2117 = vmul.f32 %v1989, %v2055
  %v2118 = vmul.f32 %v1990, %v2055
  %v2119 = vmul.f32 %v1991, %v2056
  %v2120 = vmul.f32 %v1992, %v2056
  %v2121 = vlaneseq
  %v2122 = vshrl.u32 %v2121, 7
  %v2123 = vsub.s32 1, %v2122
  %v2124 = vrot.slane %v100, %v2123
  %v2125 = vlaneseq
  %v2126 = vshrl.u32 %v2125, 7
  %v2127 = vsub.s32 1, %v2126
  %v2128 = vrot.slane %v101, %v2127
  %v2129 = vmul.f32 %v2057, %v2124
  %v2130 = vmul.f32 %v2058, %v2128
  %v2131 = vmul.f32 %v2059, %v2124
  %v2132 = vmul.f32 %v2060, %v2128
  %v2133 = vmul.f32 %v2061, %v2124
  %v2134 = vmul.f32 %v2062, %v2128
  %v2135 = vmul.f32 %v2063, %v2124
  %v2136 = vmul.f32 %v2064, %v2128
  %v2137 = vmul.f32 %v2065, %v2124
  %v2138 = vmul.f32 %v2066, %v2128
  %v2139 = vmul.f32 %v2067, %v2124
  %v2140 = vmul.f32 %v2068, %v2128
  %v2141 = vmul.f32 %v2069, %v2124
  %v2142 = vmul.f32 %v2070, %v2128
  %v2143 = vmul.f32 %v2071, %v2124
  %v2144 = vmul.f32 %v2072, %v2128
  %v2145 = vmul.f32 %v2073, %v2124
  %v2146 = vmul.f32 %v2074, %v2128
  %v2147 = vmul.f32 %v2075, %v2124
  %v2148 = vmul.f32 %v2076, %v2128
  %v2149 = vmul.f32 %v2077, %v2124
  %v2150 = vmul.f32 %v2078, %v2128
  %v2151 = vmul.f32 %v2079, %v2124
  %v2152 = vmul.f32 %v2080, %v2128
  %v2153 = vmul.f32 %v2081, %v2124
  %v2154 = vmul.f32 %v2082, %v2128
  %v2155 = vmul.f32 %v2083, %v2124
  %v2156 = vmul.f32 %v2084, %v2128
  %v2157 = vmul.f32 %v2085, %v2124
  %v2158 = vmul.f32 %v2086, %v2128
  %v2159 = vmul.f32 %v2087, %v2124
  %v2160 = vmul.f32 %v2088, %v2128
  %v2161 = vmul.f32 %v2089, %v2124
  %v2162 = vmul.f32 %v2090, %v2128
  %v2163 = vmul.f32 %v2091, %v2124
  %v2164 = vmul.f32 %v2092, %v2128
  %v2165 = vmul.f32 %v2093, %v2124
  %v2166 = vmul.f32 %v2094, %v2128
  %v2167 = vmul.f32 %v2095, %v2124
  %v2168 = vmul.f32 %v2096, %v2128
  %v2169 = vmul.f32 %v2097, %v2124
  %v2170 = vmul.f32 %v2098, %v2128
  %v2171 = vmul.f32 %v2099, %v2124
  %v2172 = vmul.f32 %v2100, %v2128
  %v2173 = vmul.f32 %v2101, %v2124
  %v2174 = vmul.f32 %v2102, %v2128
  %v2175 = vmul.f32 %v2103, %v2124
  %v2176 = vmul.f32 %v2104, %v2128
  %v2177 = vmul.f32 %v2105, %v2124
  %v2178 = vmul.f32 %v2106, %v2128
  %v2179 = vmul.f32 %v2107, %v2124
  %v2180 = vmul.f32 %v2108, %v2128
  %v2181 = vmul.f32 %v2109, %v2124
  %v2182 = vmul.f32 %v2110, %v2128
  %v2183 = vmul.f32 %v2111, %v2124
  %v2184 = vmul.f32 %v2112, %v2128
  %v2185 = vmul.f32 %v2113, %v2124
  %v2186 = vmul.f32 %v2114, %v2128
  %v2187 = vmul.f32 %v2115, %v2124
  %v2188 = vmul.f32 %v2116, %v2128
  %v2189 = vmul.f32 %v2117, %v2124
  %v2190 = vmul.f32 %v2118, %v2128
  %v2191 = vmul.f32 %v2119, %v2124
  %v2192 = vmul.f32 %v2120, %v2128
  %v2193 = vlaneseq
  %v2194 = vshrl.u32 %v2193, 7
  %v2195 = vsub.s32 2, %v2194
  %v2196 = vrot.slane %v100, %v2195
  %v2197 = vlaneseq
  %v2198 = vshrl.u32 %v2197, 7
  %v2199 = vsub.s32 2, %v2198
  %v2200 = vrot.slane %v101, %v2199
  %v2201 = vadd.f32 %v2129, %v2196
  %v2202 = vadd.f32 %v2130, %v2200
  %v2203 = vadd.f32 %v2131, %v2196
  %v2204 = vadd.f32 %v2132, %v2200
  %v2205 = vadd.f32 %v2133, %v2196
  %v2206 = vadd.f32 %v2134, %v2200
  %v2207 = vadd.f32 %v2135, %v2196
  %v2208 = vadd.f32 %v2136, %v2200
  %v2209 = vadd.f32 %v2137, %v2196
  %v2210 = vadd.f32 %v2138, %v2200
  %v2211 = vadd.f32 %v2139, %v2196
  %v2212 = vadd.f32 %v2140, %v2200
  %v2213 = vadd.f32 %v2141, %v2196
  %v2214 = vadd.f32 %v2142, %v2200
  %v2215 = vadd.f32 %v2143, %v2196
  %v2216 = vadd.f32 %v2144, %v2200
  %v2217 = vadd.f32 %v2145, %v2196
  %v2218 = vadd.f32 %v2146, %v2200
  %v2219 = vadd.f32 %v2147, %v2196
  %v2220 = vadd.f32 %v2148, %v2200
  %v2221 = vadd.f32 %v2149, %v2196
  %v2222 = vadd.f32 %v2150, %v2200
  %v2223 = vadd.f32 %v2151, %v2196
  %v2224 = vadd.f32 %v2152, %v2200
  %v2225 = vadd.f32 %v2153, %v2196
  %v2226 = vadd.f32 %v2154, %v2200
  %v2227 = vadd.f32 %v2155, %v2196
  %v2228 = vadd.f32 %v2156, %v2200
  %v2229 = vadd.f32 %v2157, %v2196
  %v2230 = vadd.f32 %v2158, %v2200
  %v2231 = vadd.f32 %v2159, %v2196
  %v2232 = vadd.f32 %v2160, %v2200
  %v2233 = vadd.f32 %v2161, %v2196
  %v2234 = vadd.f32 %v2162, %v2200
  %v2235 = vadd.f32 %v2163, %v2196
  %v2236 = vadd.f32 %v2164, %v2200
  %v2237 = vadd.f32 %v2165, %v2196
  %v2238 = vadd.f32 %v2166, %v2200
  %v2239 = vadd.f32 %v2167, %v2196
  %v2240 = vadd.f32 %v2168, %v2200
  %v2241 = vadd.f32 %v2169, %v2196
  %v2242 = vadd.f32 %v2170, %v2200
  %v2243 = vadd.f32 %v2171, %v2196
  %v2244 = vadd.f32 %v2172, %v2200
  %v2245 = vadd.f32 %v2173, %v2196
  %v2246 = vadd.f32 %v2174, %v2200
  %v2247 = vadd.f32 %v2175, %v2196
  %v2248 = vadd.f32 %v2176, %v2200
  %v2249 = vadd.f32 %v2177, %v2196
  %v2250 = vadd.f32 %v2178, %v2200
  %v2251 = vadd.f32 %v2179, %v2196
  %v2252 = vadd.f32 %v2180, %v2200
  %v2253 = vadd.f32 %v2181, %v2196
  %v2254 = vadd.f32 %v2182, %v2200
  %v2255 = vadd.f32 %v2183, %v2196
  %v2256 = vadd.f32 %v2184, %v2200
  %v2257 = vadd.f32 %v2185, %v2196
  %v2258 = vadd.f32 %v2186, %v2200
  %v2259 = vadd.f32 %v2187, %v2196
  %v2260 = vadd.f32 %v2188, %v2200
  %v2261 = vadd.f32 %v2189, %v2196
  %v2262 = vadd.f32 %v2190, %v2200
  %v2263 = vadd.f32 %v2191, %v2196
  %v2264 = vadd.f32 %v2192, %v2200
  %v2265 = vmax.f32 %v2201, 0.0
  %v2266 = vmax.f32 %v2202, 0.0
  %v2267 = vmax.f32 %v2203, 0.0
  %v2268 = vmax.f32 %v2204, 0.0
  %v2269 = vmax.f32 %v2205, 0.0
  %v2270 = vmax.f32 %v2206, 0.0
  %v2271 = vmax.f32 %v2207, 0.0
  %v2272 = vmax.f32 %v2208, 0.0
  %v2273 = vmax.f32 %v2209, 0.0
  %v2274 = vmax.f32 %v2210, 0.0
  %v2275 = vmax.f32 %v2211, 0.0
  %v2276 = vmax.f32 %v2212, 0.0
  %v2277 = vmax.f32 %v2213, 0.0
  %v2278 = vmax.f32 %v2214, 0.0
  %v2279 = vmax.f32 %v2215, 0.0
  %v2280 = vmax.f32 %v2216, 0.0
  %v2281 = vmax.f32 %v2217, 0.0
  %v2282 = vmax.f32 %v2218, 0.0
  %v2283 = vmax.f32 %v2219, 0.0
  %v2284 = vmax.f32 %v2220, 0.0
  %v2285 = vmax.f32 %v2221, 0.0
  %v2286 = vmax.f32 %v2222, 0.0
  %v2287 = vmax.f32 %v2223, 0.0
  %v2288 = vmax.f32 %v2224, 0.0
  %v2289 = vmax.f32 %v2225, 0.0
  %v2290 = vmax.f32 %v2226, 0.0
  %v2291 = vmax.f32 %v2227, 0.0
  %v2292 = vmax.f32 %v2228, 0.0
  %v2293 = vmax.f32 %v2229, 0.0
  %v2294 = vmax.f32 %v2230, 0.0
  %v2295 = vmax.f32 %v2231, 0.0
  %v2296 = vmax.f32 %v2232, 0.0
  %v2297 = vmax.f32 %v2233, 0.0
  %v2298 = vmax.f32 %v2234, 0.0
  %v2299 = vmax.f32 %v2235, 0.0
  %v2300 = vmax.f32 %v2236, 0.0
  %v2301 = vmax.f32 %v2237, 0.0
  %v2302 = vmax.f32 %v2238, 0.0
  %v2303 = vmax.f32 %v2239, 0.0
  %v2304 = vmax.f32 %v2240, 0.0
  %v2305 = vmax.f32 %v2241, 0.0
  %v2306 = vmax.f32 %v2242, 0.0
  %v2307 = vmax.f32 %v2243, 0.0
  %v2308 = vmax.f32 %v2244, 0.0
  %v2309 = vmax.f32 %v2245, 0.0
  %v2310 = vmax.f32 %v2246, 0.0
  %v2311 = vmax.f32 %v2247, 0.0
  %v2312 = vmax.f32 %v2248, 0.0
  %v2313 = vmax.f32 %v2249, 0.0
  %v2314 = vmax.f32 %v2250, 0.0
  %v2315 = vmax.f32 %v2251, 0.0
  %v2316 = vmax.f32 %v2252, 0.0
  %v2317 = vmax.f32 %v2253, 0.0
  %v2318 = vmax.f32 %v2254, 0.0
  %v2319 = vmax.f32 %v2255, 0.0
  %v2320 = vmax.f32 %v2256, 0.0
  %v2321 = vmax.f32 %v2257, 0.0
  %v2322 = vmax.f32 %v2258, 0.0
  %v2323 = vmax.f32 %v2259, 0.0
  %v2324 = vmax.f32 %v2260, 0.0
  %v2325 = vmax.f32 %v2261, 0.0
  %v2326 = vmax.f32 %v2262, 0.0
  %v2327 = vmax.f32 %v2263, 0.0
  %v2328 = vmax.f32 %v2264, 0.0
  %v2329 = vlaneseq
  %v2330 = vshrl.u32 %v2329, 7
  %v2331 = vsub.s32 3, %v2330
  %v2332 = vrot.slane %v100, %v2331
  %v2333 = vlaneseq
  %v2334 = vshrl.u32 %v2333, 7
  %v2335 = vsub.s32 3, %v2334
  %v2336 = vrot.slane %v101, %v2335
  %v2337 = vmul.f32 %v2265, %v2332
  %v2338 = vmul.f32 %v2266, %v2336
  %v2339 = vmul.f32 %v2267, %v2332
  %v2340 = vmul.f32 %v2268, %v2336
  %v2341 = vmul.f32 %v2269, %v2332
  %v2342 = vmul.f32 %v2270, %v2336
  %v2343 = vmul.f32 %v2271, %v2332
  %v2344 = vmul.f32 %v2272, %v2336
  %v2345 = vmul.f32 %v2273, %v2332
  %v2346 = vmul.f32 %v2274, %v2336
  %v2347 = vmul.f32 %v2275, %v2332
  %v2348 = vmul.f32 %v2276, %v2336
  %v2349 = vmul.f32 %v2277, %v2332
  %v2350 = vmul.f32 %v2278, %v2336
  %v2351 = vmul.f32 %v2279, %v2332
  %v2352 = vmul.f32 %v2280, %v2336
  %v2353 = vmul.f32 %v2281, %v2332
  %v2354 = vmul.f32 %v2282, %v2336
  %v2355 = vmul.f32 %v2283, %v2332
  %v2356 = vmul.f32 %v2284, %v2336
  %v2357 = vmul.f32 %v2285, %v2332
  %v2358 = vmul.f32 %v2286, %v2336
  %v2359 = vmul.f32 %v2287, %v2332
  %v2360 = vmul.f32 %v2288, %v2336
  %v2361 = vmul.f32 %v2289, %v2332
  %v2362 = vmul.f32 %v2290, %v2336
  %v2363 = vmul.f32 %v2291, %v2332
  %v2364 = vmul.f32 %v2292, %v2336
  %v2365 = vmul.f32 %v2293, %v2332
  %v2366 = vmul.f32 %v2294, %v2336
  %v2367 = vmul.f32 %v2295, %v2332
  %v2368 = vmul.f32 %v2296, %v2336
  %v2369 = vmul.f32 %v2297, %v2332
  %v2370 = vmul.f32 %v2298, %v2336
  %v2371 = vmul.f32 %v2299, %v2332
  %v2372 = vmul.f32 %v2300, %v2336
  %v2373 = vmul.f32 %v2301, %v2332
  %v2374 = vmul.f32 %v2302, %v2336
  %v2375 = vmul.f32 %v2303, %v2332
  %v2376 = vmul.f32 %v2304, %v2336
  %v2377 = vmul.f32 %v2305, %v2332
  %v2378 = vmul.f32 %v2306, %v2336
  %v2379 = vmul.f32 %v2307, %v2332
  %v2380 = vmul.f32 %v2308, %v2336
  %v2381 = vmul.f32 %v2309, %v2332
  %v2382 = vmul.f32 %v2310, %v2336
  %v2383 = vmul.f32 %v2311, %v2332
  %v2384 = vmul.f32 %v2312, %v2336
  %v2385 = vmul.f32 %v2313, %v2332
  %v2386 = vmul.f32 %v2314, %v2336
  %v2387 = vmul.f32 %v2315, %v2332
  %v2388 = vmul.f32 %v2316, %v2336
  %v2389 = vmul.f32 %v2317, %v2332
  %v2390 = vmul.f32 %v2318, %v2336
  %v2391 = vmul.f32 %v2319, %v2332
  %v2392 = vmul.f32 %v2320, %v2336
  %v2393 = vmul.f32 %v2321, %v2332
  %v2394 = vmul.f32 %v2322, %v2336
  %v2395 = vmul.f32 %v2323, %v2332
  %v2396 = vmul.f32 %v2324, %v2336
  %v2397 = vmul.f32 %v2325, %v2332
  %v2398 = vmul.f32 %v2326, %v2336
  %v2399 = vmul.f32 %v2327, %v2332
  %v2400 = vmul.f32 %v2328, %v2336
  %v2401 = vadd.f32 %v2337, %v2338
  %2402 = vadd.xlane.f32.xlu0 %v2401
  %v2403 = vpop.xlane.xlu0 %2402
  %v2404 = vadd.f32 %v2339, %v2340
  %2405 = vadd.xlane.f32.xlu0 %v2404
  %v2406 = vpop.xlane.xlu0 %2405
  %v2407 = vadd.f32 %v2341, %v2342
  %2408 = vadd.xlane.f32.xlu0 %v2407
  %v2409 = vpop.xlane.xlu0 %2408
  %v2410 = vadd.f32 %v2343, %v2344
  %2411 = vadd.xlane.f32.xlu0 %v2410
  %v2412 = vpop.xlane.xlu0 %2411
  %v2413 = vadd.f32 %v2345, %v2346
  %2414 = vadd.xlane.f32.xlu0 %v2413
  %v2415 = vpop.xlane.xlu0 %2414
  %v2416 = vadd.f32 %v2347, %v2348
  %2417 = vadd.xlane.f32.xlu0 %v2416
  %v2418 = vpop.xlane.xlu0 %2417
  %v2419 = vadd.f32 %v2349, %v2350
  %2420 = vadd.xlane.f32.xlu0 %v2419
  %v2421 = vpop.xlane.xlu0 %2420
  %v2422 = vadd.f32 %v2351, %v2352
  %2423 = vadd.xlane.f32.xlu0 %v2422
  %v2424 = vpop.xlane.xlu0 %2423
  %v2425 = vadd.f32 %v2353, %v2354
  %2426 = vadd.xlane.f32.xlu0 %v2425
  %v2427 = vpop.xlane.xlu0 %2426
  %v2428 = vadd.f32 %v2355, %v2356
  %2429 = vadd.xlane.f32.xlu0 %v2428
  %v2430 = vpop.xlane.xlu0 %2429
  %v2431 = vadd.f32 %v2357, %v2358
  %2432 = vadd.xlane.f32.xlu0 %v2431
  %v2433 = vpop.xlane.xlu0 %2432
  %v2434 = vadd.f32 %v2359, %v2360
  %2435 = vadd.xlane.f32.xlu0 %v2434
  %v2436 = vpop.xlane.xlu0 %2435
  %v2437 = vadd.f32 %v2361, %v2362
  %2438 = vadd.xlane.f32.xlu0 %v2437
  %v2439 = vpop.xlane.xlu0 %2438
  %v2440 = vadd.f32 %v2363, %v2364
  %2441 = vadd.xlane.f32.xlu0 %v2440
  %v2442 = vpop.xlane.xlu0 %2441
  %v2443 = vadd.f32 %v2365, %v2366
  %2444 = vadd.xlane.f32.xlu0 %v2443
  %v2445 = vpop.xlane.xlu0 %2444
  %v2446 = vadd.f32 %v2367, %v2368
  %2447 = vadd.xlane.f32.xlu0 %v2446
  %v2448 = vpop.xlane.xlu0 %2447
  %v2449 = vadd.f32 %v2369, %v2370
  %2450 = vadd.xlane.f32.xlu0 %v2449
  %v2451 = vpop.xlane.xlu0 %2450
  %v2452 = vadd.f32 %v2371, %v2372
  %2453 = vadd.xlane.f32.xlu0 %v2452
  %v2454 = vpop.xlane.xlu0 %2453
  %v2455 = vadd.f32 %v2373, %v2374
  %2456 = vadd.xlane.f32.xlu0 %v2455
  %v2457 = vpop.xlane.xlu0 %2456
  %v2458 = vadd.f32 %v2375, %v2376
  %2459 = vadd.xlane.f32.xlu0 %v2458
  %v2460 = vpop.xlane.xlu0 %2459
  %v2461 = vadd.f32 %v2377, %v2378
  %2462 = vadd.xlane.f32.xlu0 %v2461
  %v2463 = vpop.xlane.xlu0 %2462
  %v2464 = vadd.f32 %v2379, %v2380
  %2465 = vadd.xlane.f32.xlu0 %v2464
  %v2466 = vpop.xlane.xlu0 %2465
  %v2467 = vadd.f32 %v2381, %v2382
  %2468 = vadd.xlane.f32.xlu0 %v2467
  %v2469 = vpop.xlane.xlu0 %2468
  %v2470 = vadd.f32 %v2383, %v2384
  %2471 = vadd.xlane.f32.xlu0 %v2470
  %v2472 = vpop.xlane.xlu0 %2471
  %v2473 = vadd.f32 %v2385, %v2386
  %2474 = vadd.xlane.f32.xlu0 %v2473
  %v2475 = vpop.xlane.xlu0 %2474
  %v2476 = vadd.f32 %v2387, %v2388
  %2477 = vadd.xlane.f32.xlu0 %v2476
  %v2478 = vpop.xlane.xlu0 %2477
  %v2479 = vadd.f32 %v2389, %v2390
  %2480 = vadd.xlane.f32.xlu0 %v2479
  %v2481 = vpop.xlane.xlu0 %2480
  %v2482 = vadd.f32 %v2391, %v2392
  %2483 = vadd.xlane.f32.xlu0 %v2482
  %v2484 = vpop.xlane.xlu0 %2483
  %v2485 = vadd.f32 %v2393, %v2394
  %2486 = vadd.xlane.f32.xlu0 %v2485
  %v2487 = vpop.xlane.xlu0 %2486
  %v2488 = vadd.f32 %v2395, %v2396
  %2489 = vadd.xlane.f32.xlu0 %v2488
  %v2490 = vpop.xlane.xlu0 %2489
  %v2491 = vadd.f32 %v2397, %v2398
  %2492 = vadd.xlane.f32.xlu0 %v2491
  %v2493 = vpop.xlane.xlu0 %2492
  %v2494 = vadd.f32 %v2399, %v2400
  %2495 = vadd.xlane.f32.xlu0 %v2494
  %v2496 = vpop.xlane.xlu0 %2495
  %v2497 = vadd.f32 %v1303, %v1404
  %v2498 = vadd.f32 %v1305, %v1408
  %v2499 = vadd.f32 %v1309, %v1412
  %v2500 = vadd.f32 %v1311, %v1416
  %v2501 = vadd.f32 %v1315, %v1420
  %v2502 = vadd.f32 %v1317, %v1424
  %v2503 = vadd.f32 %v1321, %v1428
  %v2504 = vadd.f32 %v1323, %v1432
  %v2505 = vadd.f32 %v1327, %v1436
  %v2506 = vadd.f32 %v1329, %v1440
  %v2507 = vadd.f32 %v1333, %v1444
  %v2508 = vadd.f32 %v1335, %v1448
  %v2509 = vadd.f32 %v1339, %v1452
  %v2510 = vadd.f32 %v1341, %v1456
  %v2511 = vadd.f32 %v1345, %v1460
  %v2512 = vadd.f32 %v1347, %v1464
  %v2513 = vadd.f32 %v2497, %v2498
  %2514 = vadd.xlane.f32.xlu0 %v2513
  %v2515 = vpop.xlane.xlu0 %2514
  %v2516 = vadd.f32 %v2499, %v2500
  %2517 = vadd.xlane.f32.xlu0 %v2516
  %v2518 = vpop.xlane.xlu0 %2517
  %v2519 = vadd.f32 %v2501, %v2502
  %2520 = vadd.xlane.f32.xlu0 %v2519
  %v2521 = vpop.xlane.xlu0 %2520
  %v2522 = vadd.f32 %v2503, %v2504
  %2523 = vadd.xlane.f32.xlu0 %v2522
  %v2524 = vpop.xlane.xlu0 %2523
  %v2525 = vadd.f32 %v2505, %v2506
  %2526 = vadd.xlane.f32.xlu0 %v2525
  %v2527 = vpop.xlane.xlu0 %2526
  %v2528 = vadd.f32 %v2507, %v2508
  %2529 = vadd.xlane.f32.xlu0 %v2528
  %v2530 = vpop.xlane.xlu0 %2529
  %v2531 = vadd.f32 %v2509, %v2510
  %2532 = vadd.xlane.f32.xlu0 %v2531
  %v2533 = vpop.xlane.xlu0 %2532
  %v2534 = vadd.f32 %v2511, %v2512
  %2535 = vadd.xlane.f32.xlu0 %v2534
  %v2536 = vpop.xlane.xlu0 %2535
  %v2537 = vmul.f32 %v2515, 0.005
  %v2538 = vmul.f32 %v2518, 0.005
  %v2539 = vmul.f32 %v2521, 0.005
  %v2540 = vmul.f32 %v2524, 0.005
  %v2541 = vmul.f32 %v2527, 0.005
  %v2542 = vmul.f32 %v2530, 0.005
  %v2543 = vmul.f32 %v2533, 0.005
  %v2544 = vmul.f32 %v2536, 0.005
  %v2545 = vmul.f32 %v2497, %v2497
  %v2546 = vmul.f32 %v2498, %v2498
  %v2547 = vmul.f32 %v2499, %v2499
  %v2548 = vmul.f32 %v2500, %v2500
  %v2549 = vmul.f32 %v2501, %v2501
  %v2550 = vmul.f32 %v2502, %v2502
  %v2551 = vmul.f32 %v2503, %v2503
  %v2552 = vmul.f32 %v2504, %v2504
  %v2553 = vmul.f32 %v2505, %v2505
  %v2554 = vmul.f32 %v2506, %v2506
  %v2555 = vmul.f32 %v2507, %v2507
  %v2556 = vmul.f32 %v2508, %v2508
  %v2557 = vmul.f32 %v2509, %v2509
  %v2558 = vmul.f32 %v2510, %v2510
  %v2559 = vmul.f32 %v2511, %v2511
  %v2560 = vmul.f32 %v2512, %v2512
  %v2561 = vadd.f32 %v2545, %v2546
  %2562 = vadd.xlane.f32.xlu0 %v2561
  %v2563 = vpop.xlane.xlu0 %2562
  %v2564 = vadd.f32 %v2547, %v2548
  %2565 = vadd.xlane.f32.xlu0 %v2564
  %v2566 = vpop.xlane.xlu0 %2565
  %v2567 = vadd.f32 %v2549, %v2550
  %2568 = vadd.xlane.f32.xlu0 %v2567
  %v2569 = vpop.xlane.xlu0 %2568
  %v2570 = vadd.f32 %v2551, %v2552
  %2571 = vadd.xlane.f32.xlu0 %v2570
  %v2572 = vpop.xlane.xlu0 %2571
  %v2573 = vadd.f32 %v2553, %v2554
  %2574 = vadd.xlane.f32.xlu0 %v2573
  %v2575 = vpop.xlane.xlu0 %2574
  %v2576 = vadd.f32 %v2555, %v2556
  %2577 = vadd.xlane.f32.xlu0 %v2576
  %v2578 = vpop.xlane.xlu0 %2577
  %v2579 = vadd.f32 %v2557, %v2558
  %2580 = vadd.xlane.f32.xlu0 %v2579
  %v2581 = vpop.xlane.xlu0 %2580
  %v2582 = vadd.f32 %v2559, %v2560
  %2583 = vadd.xlane.f32.xlu0 %v2582
  %v2584 = vpop.xlane.xlu0 %2583
  %v2585 = vmul.f32 %v2563, 0.005
  %v2586 = vmul.f32 %v2566, 0.005
  %v2587 = vmul.f32 %v2569, 0.005
  %v2588 = vmul.f32 %v2572, 0.005
  %v2589 = vmul.f32 %v2575, 0.005
  %v2590 = vmul.f32 %v2578, 0.005
  %v2591 = vmul.f32 %v2581, 0.005
  %v2592 = vmul.f32 %v2584, 0.005
  %v2593 = vmul.f32 %v2537, %v2537
  %v2594 = vmul.f32 %v2538, %v2538
  %v2595 = vmul.f32 %v2539, %v2539
  %v2596 = vmul.f32 %v2540, %v2540
  %v2597 = vmul.f32 %v2541, %v2541
  %v2598 = vmul.f32 %v2542, %v2542
  %v2599 = vmul.f32 %v2543, %v2543
  %v2600 = vmul.f32 %v2544, %v2544
  %v2601 = vsub.f32 %v2585, %v2593
  %v2602 = vsub.f32 %v2586, %v2594
  %v2603 = vsub.f32 %v2587, %v2595
  %v2604 = vsub.f32 %v2588, %v2596
  %v2605 = vsub.f32 %v2589, %v2597
  %v2606 = vsub.f32 %v2590, %v2598
  %v2607 = vsub.f32 %v2591, %v2599
  %v2608 = vsub.f32 %v2592, %v2600
  %v2609 = vsub.f32 %v2497, %v2537
  %v2610 = vsub.f32 %v2498, %v2537
  %v2611 = vsub.f32 %v2499, %v2538
  %v2612 = vsub.f32 %v2500, %v2538
  %v2613 = vsub.f32 %v2501, %v2539
  %v2614 = vsub.f32 %v2502, %v2539
  %v2615 = vsub.f32 %v2503, %v2540
  %v2616 = vsub.f32 %v2504, %v2540
  %v2617 = vsub.f32 %v2505, %v2541
  %v2618 = vsub.f32 %v2506, %v2541
  %v2619 = vsub.f32 %v2507, %v2542
  %v2620 = vsub.f32 %v2508, %v2542
  %v2621 = vsub.f32 %v2509, %v2543
  %v2622 = vsub.f32 %v2510, %v2543
  %v2623 = vsub.f32 %v2511, %v2544
  %v2624 = vsub.f32 %v2512, %v2544
  %v2625 = vadd.f32 %v2601, 1e-05
  %v2626 = vadd.f32 %v2602, 1e-05
  %v2627 = vadd.f32 %v2603, 1e-05
  %v2628 = vadd.f32 %v2604, 1e-05
  %v2629 = vadd.f32 %v2605, 1e-05
  %v2630 = vadd.f32 %v2606, 1e-05
  %v2631 = vadd.f32 %v2607, 1e-05
  %v2632 = vadd.f32 %v2608, 1e-05
  %v2633 = vrsqrt.pop %v2625
  %v2634 = vrsqrt.pop %v2626
  %v2635 = vrsqrt.pop %v2627
  %v2636 = vrsqrt.pop %v2628
  %v2637 = vrsqrt.pop %v2629
  %v2638 = vrsqrt.pop %v2630
  %v2639 = vrsqrt.pop %v2631
  %v2640 = vrsqrt.pop %v2632
  %v2641 = vmul.f32 %v2609, %v2633
  %v2642 = vmul.f32 %v2610, %v2633
  %v2643 = vmul.f32 %v2611, %v2634
  %v2644 = vmul.f32 %v2612, %v2634
  %v2645 = vmul.f32 %v2613, %v2635
  %v2646 = vmul.f32 %v2614, %v2635
  %v2647 = vmul.f32 %v2615, %v2636
  %v2648 = vmul.f32 %v2616, %v2636
  %v2649 = vmul.f32 %v2617, %v2637
  %v2650 = vmul.f32 %v2618, %v2637
  %v2651 = vmul.f32 %v2619, %v2638
  %v2652 = vmul.f32 %v2620, %v2638
  %v2653 = vmul.f32 %v2621, %v2639
  %v2654 = vmul.f32 %v2622, %v2639
  %v2655 = vmul.f32 %v2623, %v2640
  %v2656 = vmul.f32 %v2624, %v2640
  %v2657 = vmul.f32 %v2641, %v2124
  %v2658 = vmul.f32 %v2642, %v2128
  %v2659 = vmul.f32 %v2643, %v2124
  %v2660 = vmul.f32 %v2644, %v2128
  %v2661 = vmul.f32 %v2645, %v2124
  %v2662 = vmul.f32 %v2646, %v2128
  %v2663 = vmul.f32 %v2647, %v2124
  %v2664 = vmul.f32 %v2648, %v2128
  %v2665 = vmul.f32 %v2649, %v2124
  %v2666 = vmul.f32 %v2650, %v2128
  %v2667 = vmul.f32 %v2651, %v2124
  %v2668 = vmul.f32 %v2652, %v2128
  %v2669 = vmul.f32 %v2653, %v2124
  %v2670 = vmul.f32 %v2654, %v2128
  %v2671 = vmul.f32 %v2655, %v2124
  %v2672 = vmul.f32 %v2656, %v2128
  %v2673 = vadd.f32 %v2657, %v2196
  %v2674 = vadd.f32 %v2658, %v2200
  %v2675 = vadd.f32 %v2659, %v2196
  %v2676 = vadd.f32 %v2660, %v2200
  %v2677 = vadd.f32 %v2661, %v2196
  %v2678 = vadd.f32 %v2662, %v2200
  %v2679 = vadd.f32 %v2663, %v2196
  %v2680 = vadd.f32 %v2664, %v2200
  %v2681 = vadd.f32 %v2665, %v2196
  %v2682 = vadd.f32 %v2666, %v2200
  %v2683 = vadd.f32 %v2667, %v2196
  %v2684 = vadd.f32 %v2668, %v2200
  %v2685 = vadd.f32 %v2669, %v2196
  %v2686 = vadd.f32 %v2670, %v2200
  %v2687 = vadd.f32 %v2671, %v2196
  %v2688 = vadd.f32 %v2672, %v2200
  %v2689 = vmax.f32 %v2673, 0.0
  %v2690 = vmax.f32 %v2674, 0.0
  %v2691 = vmax.f32 %v2675, 0.0
  %v2692 = vmax.f32 %v2676, 0.0
  %v2693 = vmax.f32 %v2677, 0.0
  %v2694 = vmax.f32 %v2678, 0.0
  %v2695 = vmax.f32 %v2679, 0.0
  %v2696 = vmax.f32 %v2680, 0.0
  %v2697 = vmax.f32 %v2681, 0.0
  %v2698 = vmax.f32 %v2682, 0.0
  %v2699 = vmax.f32 %v2683, 0.0
  %v2700 = vmax.f32 %v2684, 0.0
  %v2701 = vmax.f32 %v2685, 0.0
  %v2702 = vmax.f32 %v2686, 0.0
  %v2703 = vmax.f32 %v2687, 0.0
  %v2704 = vmax.f32 %v2688, 0.0
  %v2705 = vmul.f32 %v2689, %v2332
  %v2706 = vmul.f32 %v2690, %v2336
  %v2707 = vmul.f32 %v2691, %v2332
  %v2708 = vmul.f32 %v2692, %v2336
  %v2709 = vmul.f32 %v2693, %v2332
  %v2710 = vmul.f32 %v2694, %v2336
  %v2711 = vmul.f32 %v2695, %v2332
  %v2712 = vmul.f32 %v2696, %v2336
  %v2713 = vmul.f32 %v2697, %v2332
  %v2714 = vmul.f32 %v2698, %v2336
  %v2715 = vmul.f32 %v2699, %v2332
  %v2716 = vmul.f32 %v2700, %v2336
  %v2717 = vmul.f32 %v2701, %v2332
  %v2718 = vmul.f32 %v2702, %v2336
  %v2719 = vmul.f32 %v2703, %v2332
  %v2720 = vmul.f32 %v2704, %v2336
  %v2721 = vadd.f32 %v2705, %v2706
  %2722 = vadd.xlane.f32.xlu0 %v2721
  %v2723 = vpop.xlane.xlu0 %2722
  %v2724 = vadd.f32 %v2707, %v2708
  %2725 = vadd.xlane.f32.xlu0 %v2724
  %v2726 = vpop.xlane.xlu0 %2725
  %v2727 = vadd.f32 %v2709, %v2710
  %2728 = vadd.xlane.f32.xlu0 %v2727
  %v2729 = vpop.xlane.xlu0 %2728
  %v2730 = vadd.f32 %v2711, %v2712
  %2731 = vadd.xlane.f32.xlu0 %v2730
  %v2732 = vpop.xlane.xlu0 %2731
  %v2733 = vadd.f32 %v2713, %v2714
  %2734 = vadd.xlane.f32.xlu0 %v2733
  %v2735 = vpop.xlane.xlu0 %2734
  %v2736 = vadd.f32 %v2715, %v2716
  %2737 = vadd.xlane.f32.xlu0 %v2736
  %v2738 = vpop.xlane.xlu0 %2737
  %v2739 = vadd.f32 %v2717, %v2718
  %2740 = vadd.xlane.f32.xlu0 %v2739
  %v2741 = vpop.xlane.xlu0 %2740
  %v2742 = vadd.f32 %v2719, %v2720
  %2743 = vadd.xlane.f32.xlu0 %v2742
  %v2744 = vpop.xlane.xlu0 %2743
  %v2745 = vld [vmem:[%s3] sm:$0xff]
  %vm2746 = vcmp.gt.f32.partialorder %v2745, 0.0
  %v2779 = vlaneseq
  %v2780 = vand.u32 %v2779, 127
  %v2781 = vlaneseq
  %v2782 = vshrl.u32 %v2781, 7
  %v2783 = vsub.s32 %v2780, %v2782
  %v2784 = vrot.slane %v2403, %v2783
  %v2785 = vadd.s32 %v2780, 4294967288
  %v2786 = vlaneseq
  %v2787 = vshrl.u32 %v2786, 7
  %v2788 = vsub.s32 %v2785, %v2787
  %v2789 = vrot.slane %v2406, %v2788
  %vm2790 = vcmask 130112
  %v2791 = vsel %vm2790, %v2789, %v2784
  %v2792 = vadd.s32 %v2780, 4294967280
  %v2793 = vlaneseq
  %v2794 = vshrl.u32 %v2793, 7
  %v2795 = vsub.s32 %v2792, %v2794
  %v2796 = vrot.slane %v2409, %v2795
  %vm2797 = vcmask 195712
  %v2798 = vsel %vm2797, %v2796, %v2791
  %v2799 = vadd.s32 %v2780, 4294967272
  %v2800 = vlaneseq
  %v2801 = vshrl.u32 %v2800, 7
  %v2802 = vsub.s32 %v2799, %v2801
  %v2803 = vrot.slane %v2412, %v2802
  %vm2804 = vcmask 261312
  %v2805 = vsel %vm2804, %v2803, %v2798
  %v2806 = vlaneseq
  %v2807 = vshrl.u32 %v2806, 7
  %v2808 = vsub.s32 %v2780, %v2807
  %v2809 = vrot.slane %v2415, %v2808
  %v2810 = vlaneseq
  %v2811 = vshrl.u32 %v2810, 7
  %v2812 = vsub.s32 %v2785, %v2811
  %v2813 = vrot.slane %v2418, %v2812
  %v2814 = vsel %vm2790, %v2813, %v2809
  %v2815 = vlaneseq
  %v2816 = vshrl.u32 %v2815, 7
  %v2817 = vsub.s32 %v2792, %v2816
  %v2818 = vrot.slane %v2421, %v2817
  %v2819 = vsel %vm2797, %v2818, %v2814
  %v2820 = vlaneseq
  %v2821 = vshrl.u32 %v2820, 7
  %v2822 = vsub.s32 %v2799, %v2821
  %v2823 = vrot.slane %v2424, %v2822
  %v2824 = vsel %vm2804, %v2823, %v2819
  %v2825 = vlaneseq
  %v2826 = vshrl.u32 %v2825, 7
  %v2827 = vsub.s32 %v2780, %v2826
  %v2828 = vrot.slane %v2427, %v2827
  %v2829 = vlaneseq
  %v2830 = vshrl.u32 %v2829, 7
  %v2831 = vsub.s32 %v2785, %v2830
  %v2832 = vrot.slane %v2430, %v2831
  %v2833 = vsel %vm2790, %v2832, %v2828
  %v2834 = vlaneseq
  %v2835 = vshrl.u32 %v2834, 7
  %v2836 = vsub.s32 %v2792, %v2835
  %v2837 = vrot.slane %v2433, %v2836
  %v2838 = vsel %vm2797, %v2837, %v2833
  %v2839 = vlaneseq
  %v2840 = vshrl.u32 %v2839, 7
  %v2841 = vsub.s32 %v2799, %v2840
  %v2842 = vrot.slane %v2436, %v2841
  %v2843 = vsel %vm2804, %v2842, %v2838
  %v2844 = vlaneseq
  %v2845 = vshrl.u32 %v2844, 7
  %v2846 = vsub.s32 %v2780, %v2845
  %v2847 = vrot.slane %v2439, %v2846
  %v2848 = vlaneseq
  %v2849 = vshrl.u32 %v2848, 7
  %v2850 = vsub.s32 %v2785, %v2849
  %v2851 = vrot.slane %v2442, %v2850
  %v2852 = vsel %vm2790, %v2851, %v2847
  %v2853 = vlaneseq
  %v2854 = vshrl.u32 %v2853, 7
  %v2855 = vsub.s32 %v2792, %v2854
  %v2856 = vrot.slane %v2445, %v2855
  %v2857 = vsel %vm2797, %v2856, %v2852
  %v2858 = vlaneseq
  %v2859 = vshrl.u32 %v2858, 7
  %v2860 = vsub.s32 %v2799, %v2859
  %v2861 = vrot.slane %v2448, %v2860
  %v2862 = vsel %vm2804, %v2861, %v2857
  %v2863 = vlaneseq
  %v2864 = vshrl.u32 %v2863, 7
  %v2865 = vsub.s32 %v2780, %v2864
  %v2866 = vrot.slane %v2451, %v2865
  %v2867 = vlaneseq
  %v2868 = vshrl.u32 %v2867, 7
  %v2869 = vsub.s32 %v2785, %v2868
  %v2870 = vrot.slane %v2454, %v2869
  %v2871 = vsel %vm2790, %v2870, %v2866
  %v2872 = vlaneseq
  %v2873 = vshrl.u32 %v2872, 7
  %v2874 = vsub.s32 %v2792, %v2873
  %v2875 = vrot.slane %v2457, %v2874
  %v2876 = vsel %vm2797, %v2875, %v2871
  %v2877 = vlaneseq
  %v2878 = vshrl.u32 %v2877, 7
  %v2879 = vsub.s32 %v2799, %v2878
  %v2880 = vrot.slane %v2460, %v2879
  %v2881 = vsel %vm2804, %v2880, %v2876
  %v2882 = vlaneseq
  %v2883 = vshrl.u32 %v2882, 7
  %v2884 = vsub.s32 %v2780, %v2883
  %v2885 = vrot.slane %v2463, %v2884
  %v2886 = vlaneseq
  %v2887 = vshrl.u32 %v2886, 7
  %v2888 = vsub.s32 %v2785, %v2887
  %v2889 = vrot.slane %v2466, %v2888
  %v2890 = vsel %vm2790, %v2889, %v2885
  %v2891 = vlaneseq
  %v2892 = vshrl.u32 %v2891, 7
  %v2893 = vsub.s32 %v2792, %v2892
  %v2894 = vrot.slane %v2469, %v2893
  %v2895 = vsel %vm2797, %v2894, %v2890
  %v2896 = vlaneseq
  %v2897 = vshrl.u32 %v2896, 7
  %v2898 = vsub.s32 %v2799, %v2897
  %v2899 = vrot.slane %v2472, %v2898
  %v2900 = vsel %vm2804, %v2899, %v2895
  %v2901 = vlaneseq
  %v2902 = vshrl.u32 %v2901, 7
  %v2903 = vsub.s32 %v2780, %v2902
  %v2904 = vrot.slane %v2475, %v2903
  %v2905 = vlaneseq
  %v2906 = vshrl.u32 %v2905, 7
  %v2907 = vsub.s32 %v2785, %v2906
  %v2908 = vrot.slane %v2478, %v2907
  %v2909 = vsel %vm2790, %v2908, %v2904
  %v2910 = vlaneseq
  %v2911 = vshrl.u32 %v2910, 7
  %v2912 = vsub.s32 %v2792, %v2911
  %v2913 = vrot.slane %v2481, %v2912
  %v2914 = vsel %vm2797, %v2913, %v2909
  %v2915 = vlaneseq
  %v2916 = vshrl.u32 %v2915, 7
  %v2917 = vsub.s32 %v2799, %v2916
  %v2918 = vrot.slane %v2484, %v2917
  %v2919 = vsel %vm2804, %v2918, %v2914
  %v2920 = vlaneseq
  %v2921 = vshrl.u32 %v2920, 7
  %v2922 = vsub.s32 %v2780, %v2921
  %v2923 = vrot.slane %v2487, %v2922
  %v2924 = vlaneseq
  %v2925 = vshrl.u32 %v2924, 7
  %v2926 = vsub.s32 %v2785, %v2925
  %v2927 = vrot.slane %v2490, %v2926
  %v2928 = vsel %vm2790, %v2927, %v2923
  %v2929 = vlaneseq
  %v2930 = vshrl.u32 %v2929, 7
  %v2931 = vsub.s32 %v2792, %v2930
  %v2932 = vrot.slane %v2493, %v2931
  %v2933 = vsel %vm2797, %v2932, %v2928
  %v2934 = vlaneseq
  %v2935 = vshrl.u32 %v2934, 7
  %v2936 = vsub.s32 %v2799, %v2935
  %v2937 = vrot.slane %v2496, %v2936
  %v2938 = vsel %vm2804, %v2937, %v2933
  %v2939 = vsel %vm601, %v2824, %v2805
  %v2940 = vsel %vm603, %v2843, %v2939
  %v2941 = vsel %vm605, %v2862, %v2940
  %v2942 = vsel %vm607, %v2881, %v2941
  %v2943 = vsel %vm609, %v2900, %v2942
  %v2944 = vsel %vm611, %v2919, %v2943
  %v2945 = vsel %vm613, %v2938, %v2944
  %v2947 = vsel %vm2746, %v2945, -99999.0
  %v2948 = vsel %vm390, %v2947, -inf
  %2949 = vmax.xlane.f32.xlu0 %v2948
  %v2950 = vpop.xlane.xlu0 %2949
  %v2951 = vsub.f32 %v2947, %v2950
  %v2952 = vmul.f32 %v2951, 1.442695
  %v2953 = vpow.pop %v2952
  %v2954 = vsel %vm390, %v2953, 0.0
  %2955 = vadd.xlane.f32.xlu0 %v2954
  %v2956 = vpop.xlane.xlu0 %2955
  %v2957 = vrcp.pop %v2956
  %v2958 = vmul.f32 %v2956, %v2957
  %v2959 = vsub.f32 2.0, %v2958
  %v2960 = vmul.f32 %v2957, %v2959
  %v2961 = vmul.f32 %v2953, %v2960
  %v2962 = vld [vmem:[%s4] sm:$0xff]
  %vm2963 = vcmp.gt.f32.partialorder %v2962, 0.0
  %v2972 = vlaneseq
  %v2973 = vshrl.u32 %v2972, 7
  %v2974 = vsub.s32 %v2780, %v2973
  %v2975 = vrot.slane %v2723, %v2974
  %v2976 = vlaneseq
  %v2977 = vshrl.u32 %v2976, 7
  %v2978 = vsub.s32 %v2780, %v2977
  %v2979 = vrot.slane %v2726, %v2978
  %v2980 = vlaneseq
  %v2981 = vshrl.u32 %v2980, 7
  %v2982 = vsub.s32 %v2780, %v2981
  %v2983 = vrot.slane %v2729, %v2982
  %v2984 = vlaneseq
  %v2985 = vshrl.u32 %v2984, 7
  %v2986 = vsub.s32 %v2780, %v2985
  %v2987 = vrot.slane %v2732, %v2986
  %v2988 = vlaneseq
  %v2989 = vshrl.u32 %v2988, 7
  %v2990 = vsub.s32 %v2780, %v2989
  %v2991 = vrot.slane %v2735, %v2990
  %v2992 = vlaneseq
  %v2993 = vshrl.u32 %v2992, 7
  %v2994 = vsub.s32 %v2780, %v2993
  %v2995 = vrot.slane %v2738, %v2994
  %v2996 = vlaneseq
  %v2997 = vshrl.u32 %v2996, 7
  %v2998 = vsub.s32 %v2780, %v2997
  %v2999 = vrot.slane %v2741, %v2998
  %v3000 = vlaneseq
  %v3001 = vshrl.u32 %v3000, 7
  %v3002 = vsub.s32 %v2780, %v3001
  %v3003 = vrot.slane %v2744, %v3002
  %v3004 = vsel %vm601, %v2979, %v2975
  %v3005 = vsel %vm603, %v2983, %v3004
  %v3006 = vsel %vm605, %v2987, %v3005
  %v3007 = vsel %vm607, %v2991, %v3006
  %v3008 = vsel %vm609, %v2995, %v3007
  %v3009 = vsel %vm611, %v2999, %v3008
  %v3010 = vsel %vm613, %v3003, %v3009
  %v3012 = vsel %vm2963, %v3010, -99999.0
  %vm3013 = vcmask 64512
  %v3014 = vsel %vm3013, %v3012, -inf
  %3015 = vmax.xlane.f32.xlu0 %v3014
  %v3016 = vpop.xlane.xlu0 %3015
  %v3017 = vsub.f32 %v3012, %v3016
  %v3018 = vmul.f32 %v3017, 1.442695
  %v3019 = vpow.pop %v3018
  %v3020 = vsel %vm3013, %v3019, 0.0
  %3021 = vadd.xlane.f32.xlu0 %v3020
  %v3022 = vpop.xlane.xlu0 %3021
  %v3023 = vrcp.pop %v3022
  %v3024 = vmul.f32 %v3022, %v3023
  %v3025 = vsub.f32 2.0, %v3024
  %v3026 = vmul.f32 %v3023, %v3025
  %v3027 = vmul.f32 %v3019, %v3026
  %v3028 = vlaneseq
  %v3029 = vshrl.u32 %v3028, 7
  %v3030 = vsub.s32 0, %v3029
  %v3031 = vrot.slane %v106, %v3030
  %3032 = vmatprep.subr.mxu0 0.0
  %3033 = vmatpush1.msra.mxu0 0.0
  %3034 = vmatprep.subr.mxu0 0.0
  %3035 = vmatpush1.msra.mxu0 0.0
  %3036 = vmatprep.subr.mxu0 0.0
  %3037 = vmatpush1.msra.mxu0 0.0
  %3038 = vmatprep.subr.mxu0 0.0
  %3039 = vmatpush1.msra.mxu0 0.0
  %3040 = vmatprep.subr.mxu0 0.0
  %3041 = vmatpush1.msra.mxu0 0.0
  %3042 = vmatprep.subr.mxu0 0.0
  %3043 = vmatpush1.msra.mxu0 0.0
  %3044 = vmatprep.subr.mxu0 0.0
  %3045 = vmatpush1.msra.mxu0 0.0
  %3046 = vmatprep.subr.mxu0 0.0
  %3047 = vmatpush1.msra.mxu0 0.0
  %3048 = vmatprep.subr.mxu0 0.0
  %3049 = vmatpush1.msra.mxu0 0.0
  %3050 = vmatprep.subr.mxu0 0.0
  %3051 = vmatpush1.msra.mxu0 0.0
  %3052 = vmatprep.subr.mxu0 0.0
  %3053 = vmatpush1.msra.mxu0 0.0
  %3054 = vmatprep.subr.mxu0 0.0
  %3055 = vmatpush1.msra.mxu0 0.0
  %3056 = vmatprep.subr.mxu0 0.0
  %3057 = vmatpush1.msra.mxu0 %v105
  %3058 = vmatprep.subr.mxu0 0.0
  %3059 = vmatpush1.msra.mxu0 %v104
  %3060 = vmatprep.subr.mxu0 0.0
  %3061 = vmatpush1.msra.mxu0 %v103
  %3062 = vmatprep.subr.mxu0 0.0
  %3063 = vmatpush1.msra.mxu0 %v102
  %3064 = vmatprep.subr.mxu0 0.0
  %3065 = vmatpush2.msra.mxu0 0.0
  %3066 = vmatprep.subr.mxu0 0.0
  %3067 = vmatpush2.msra.mxu0 0.0
  %3068 = vmatprep.subr.mxu0 0.0
  %3069 = vmatpush2.msra.mxu0 0.0
  %3070 = vmatprep.subr.mxu0 0.0
  %3071 = vmatpush2.msra.mxu0 0.0
  %3072 = vmatprep.subr.mxu0 0.0
  %3073 = vmatpush2.msra.mxu0 0.0
  %3074 = vmatprep.subr.mxu0 0.0
  %3075 = vmatpush2.msra.mxu0 0.0
  %3076 = vmatprep.subr.mxu0 0.0
  %3077 = vmatpush2.msra.mxu0 0.0
  %3078 = vmatprep.subr.mxu0 0.0
  %3079 = vmatpush2.msra.mxu0 0.0
  %3080 = vmatprep.subr.mxu0 0.0
  %3081 = vmatpush2.msra.mxu0 0.0
  %3082 = vmatprep.subr.mxu0 0.0
  %3083 = vmatpush2.msra.mxu0 0.0
  %3084 = vmatprep.subr.mxu0 0.0
  %3085 = vmatpush2.msra.mxu0 0.0
  %3086 = vmatprep.subr.mxu0 0.0
  %3087 = vmatpush2.msra.mxu0 0.0
  %3088 = vmatprep.subr.mxu0 0.0
  %3089 = vmatpush2.msra.mxu0 0.0
  %3090 = vmatprep.subr.mxu0 0.0
  %3091 = vmatpush2.msra.mxu0 0.0
  %3092 = vmatprep.subr.mxu0 0.0
  %3093 = vmatpush2.msra.mxu0 0.0
  %3094 = vmatprep.subr.mxu0 0.0
  %3095 = vmatpush2.msra.mxu0 0.0
  %3096 = vmatprep.mubr.f32.mxu0 0.0
  %3097 = vmatmul.mubr.f32.gmra.mxu0 %v841
  %v3098 = vpop.f32.mrf.mxu0
  %v3099 = vadd.f32 %v3031, %v3098
  %v3100 = vpop.f32.mrf.mxu0
  %3101 = vdwg.mxu0
  %3102 = vadd.xlane.f32.xlu0 %v3099
  %v3103 = vpop.xlane.xlu0 %3102
  %v3104 = vmul.f32 %v3103, 0.01
  %v3105 = vmul.f32 %v3099, %v3099
  %3106 = vadd.xlane.f32.xlu0 %v3105
  %v3107 = vpop.xlane.xlu0 %3106
  %v3108 = vmul.f32 %v3107, 0.01
  %v3109 = vmul.f32 %v3104, %v3104
  %v3110 = vsub.f32 %v3108, %v3109
  %v3111 = vsub.f32 %v3099, %v3104
  %v3112 = vadd.f32 %v3110, 1e-05
  %v3113 = vrsqrt.pop %v3112
  %v3114 = vmul.f32 %v3111, %v3113
  %v3115 = vlaneseq
  %v3116 = vshrl.u32 %v3115, 7
  %v3117 = vsub.s32 1, %v3116
  %v3118 = vrot.slane %v106, %v3117
  %v3119 = vmul.f32 %v3114, %v3118
  %v3120 = vlaneseq
  %v3121 = vshrl.u32 %v3120, 7
  %v3122 = vsub.s32 2, %v3121
  %v3123 = vrot.slane %v106, %v3122
  %v3124 = vadd.f32 %v3119, %v3123
  %v3125 = vmax.f32 %v3124, 0.0
  %v3126 = vlaneseq
  %v3127 = vshrl.u32 %v3126, 7
  %v3128 = vsub.s32 3, %v3127
  %v3129 = vrot.slane %v106, %v3128
  %v3130 = vmul.f32 %v3125, %v3129
  %3131 = vadd.xlane.f32.xlu0 %v3130
  %v3132 = vpop.xlane.xlu0 %3131
  %v3133 = vxor.u32 %v3132, 2147483648
  %v3134 = vmul.f32 %v3133, 1.442695
  %v3135 = vpow.pop %v3134
  %v3136 = vadd.f32 %v3135, 1.0
  %v3137 = vrcp.pop %v3136
  %v3138 = vmul.f32 1.0, %v3137
  %v3139 = vld [vmem:[%s5] sm:$0xff]
  %v3140 = vlaneseq
  %v3141 = vshrl.u32 %v3140, 7
  %v3142 = vsub.s32 0, %v3141
  %v3143 = vrot.slane %v3139, %v3142
  %3145 = vbcast.lane.b32.xlu0 %v3143, 256
  %v3146 = vpop.permute.xlu0 %3145
  %s3148 = sor.u32 256, 8
  %3149 = vbcast.lane.b32.xlu0 %v3143, %s3148
  %v3150 = vpop.permute.xlu0 %3149
  %s3152 = sor.u32 256, 16
  %3153 = vbcast.lane.b32.xlu0 %v3143, %s3152
  %v3154 = vpop.permute.xlu0 %3153
  %s3156 = sor.u32 256, 24
  %3157 = vbcast.lane.b32.xlu0 %v3143, %s3156
  %v3158 = vpop.permute.xlu0 %3157
  %v3159 = vlaneseq
  %v3160 = vshrl.u32 %v3159, 7
  %v3161 = vsub.s32 1, %v3160
  %v3162 = vrot.slane %v3139, %v3161
  %3164 = vbcast.lane.b32.xlu0 %v3162, 256
  %v3165 = vpop.permute.xlu0 %3164
  %s3167 = sor.u32 256, 8
  %3168 = vbcast.lane.b32.xlu0 %v3162, %s3167
  %v3169 = vpop.permute.xlu0 %3168
  %s3171 = sor.u32 256, 16
  %3172 = vbcast.lane.b32.xlu0 %v3162, %s3171
  %v3173 = vpop.permute.xlu0 %3172
  %s3175 = sor.u32 256, 24
  %3176 = vbcast.lane.b32.xlu0 %v3162, %s3175
  %v3177 = vpop.permute.xlu0 %3176
  %v3178 = vlaneseq
  %v3179 = vshrl.u32 %v3178, 7
  %v3180 = vsub.s32 2, %v3179
  %v3181 = vrot.slane %v3139, %v3180
  %3183 = vbcast.lane.b32.xlu0 %v3181, 256
  %v3184 = vpop.permute.xlu0 %3183
  %s3186 = sor.u32 256, 8
  %3187 = vbcast.lane.b32.xlu0 %v3181, %s3186
  %v3188 = vpop.permute.xlu0 %3187
  %s3190 = sor.u32 256, 16
  %3191 = vbcast.lane.b32.xlu0 %v3181, %s3190
  %v3192 = vpop.permute.xlu0 %3191
  %s3194 = sor.u32 256, 24
  %3195 = vbcast.lane.b32.xlu0 %v3181, %s3194
  %v3196 = vpop.permute.xlu0 %3195
  %v3197 = vlaneseq
  %v3198 = vshrl.u32 %v3197, 7
  %v3199 = vsub.s32 3, %v3198
  %v3200 = vrot.slane %v3139, %v3199
  %3202 = vbcast.lane.b32.xlu0 %v3200, 256
  %v3203 = vpop.permute.xlu0 %3202
  %s3205 = sor.u32 256, 8
  %3206 = vbcast.lane.b32.xlu0 %v3200, %s3205
  %v3207 = vpop.permute.xlu0 %3206
  %s3209 = sor.u32 256, 16
  %3210 = vbcast.lane.b32.xlu0 %v3200, %s3209
  %v3211 = vpop.permute.xlu0 %3210
  %s3213 = sor.u32 256, 24
  %3214 = vbcast.lane.b32.xlu0 %v3200, %s3213
  %v3215 = vpop.permute.xlu0 %3214
  %v3216 = vlaneseq
  %v3217 = vshrl.u32 %v3216, 7
  %v3218 = vsub.s32 4, %v3217
  %v3219 = vrot.slane %v3139, %v3218
  %3221 = vbcast.lane.b32.xlu0 %v3219, 256
  %v3222 = vpop.permute.xlu0 %3221
  %s3224 = sor.u32 256, 8
  %3225 = vbcast.lane.b32.xlu0 %v3219, %s3224
  %v3226 = vpop.permute.xlu0 %3225
  %s3228 = sor.u32 256, 16
  %3229 = vbcast.lane.b32.xlu0 %v3219, %s3228
  %v3230 = vpop.permute.xlu0 %3229
  %s3232 = sor.u32 256, 24
  %3233 = vbcast.lane.b32.xlu0 %v3219, %s3232
  %v3234 = vpop.permute.xlu0 %3233
  %v3235 = vlaneseq
  %v3236 = vshrl.u32 %v3235, 7
  %v3237 = vsub.s32 5, %v3236
  %v3238 = vrot.slane %v3139, %v3237
  %3240 = vbcast.lane.b32.xlu0 %v3238, 256
  %v3241 = vpop.permute.xlu0 %3240
  %s3243 = sor.u32 256, 8
  %3244 = vbcast.lane.b32.xlu0 %v3238, %s3243
  %v3245 = vpop.permute.xlu0 %3244
  %s3247 = sor.u32 256, 16
  %3248 = vbcast.lane.b32.xlu0 %v3238, %s3247
  %v3249 = vpop.permute.xlu0 %3248
  %s3251 = sor.u32 256, 24
  %3252 = vbcast.lane.b32.xlu0 %v3238, %s3251
  %v3253 = vpop.permute.xlu0 %3252
  %v3254 = vlaneseq
  %v3255 = vshrl.u32 %v3254, 7
  %v3256 = vsub.s32 6, %v3255
  %v3257 = vrot.slane %v3139, %v3256
  %3259 = vbcast.lane.b32.xlu0 %v3257, 256
  %v3260 = vpop.permute.xlu0 %3259
  %s3262 = sor.u32 256, 8
  %3263 = vbcast.lane.b32.xlu0 %v3257, %s3262
  %v3264 = vpop.permute.xlu0 %3263
  %s3266 = sor.u32 256, 16
  %3267 = vbcast.lane.b32.xlu0 %v3257, %s3266
  %v3268 = vpop.permute.xlu0 %3267
  %s3270 = sor.u32 256, 24
  %3271 = vbcast.lane.b32.xlu0 %v3257, %s3270
  %v3272 = vpop.permute.xlu0 %3271
  %v3273 = vlaneseq
  %v3274 = vshrl.u32 %v3273, 7
  %v3275 = vsub.s32 7, %v3274
  %v3276 = vrot.slane %v3139, %v3275
  %3278 = vbcast.lane.b32.xlu0 %v3276, 256
  %v3279 = vpop.permute.xlu0 %3278
  %s3281 = sor.u32 256, 8
  %3282 = vbcast.lane.b32.xlu0 %v3276, %s3281
  %v3283 = vpop.permute.xlu0 %3282
  %s3285 = sor.u32 256, 16
  %3286 = vbcast.lane.b32.xlu0 %v3276, %s3285
  %v3287 = vpop.permute.xlu0 %3286
  %s3289 = sor.u32 256, 24
  %3290 = vbcast.lane.b32.xlu0 %v3276, %s3289
  %v3291 = vpop.permute.xlu0 %3290
  %vm3292 = vcmp.eq.s32.totalorder %v2780, %v3146
  %vm3293 = vcmp.eq.s32.totalorder %v2780, %v3150
  %vm3294 = vcmp.eq.s32.totalorder %v2780, %v3154
  %vm3295 = vcmp.eq.s32.totalorder %v2780, %v3158
  %vm3296 = vcmp.eq.s32.totalorder %v2780, %v3165
  %vm3297 = vcmp.eq.s32.totalorder %v2780, %v3169
  %vm3298 = vcmp.eq.s32.totalorder %v2780, %v3173
  %vm3299 = vcmp.eq.s32.totalorder %v2780, %v3177
  %vm3300 = vcmp.eq.s32.totalorder %v2780, %v3184
  %vm3301 = vcmp.eq.s32.totalorder %v2780, %v3188
  %vm3302 = vcmp.eq.s32.totalorder %v2780, %v3192
  %vm3303 = vcmp.eq.s32.totalorder %v2780, %v3196
  %vm3304 = vcmp.eq.s32.totalorder %v2780, %v3203
  %vm3305 = vcmp.eq.s32.totalorder %v2780, %v3207
  %vm3306 = vcmp.eq.s32.totalorder %v2780, %v3211
  %vm3307 = vcmp.eq.s32.totalorder %v2780, %v3215
  %vm3308 = vcmp.eq.s32.totalorder %v2780, %v3222
  %vm3309 = vcmp.eq.s32.totalorder %v2780, %v3226
  %vm3310 = vcmp.eq.s32.totalorder %v2780, %v3230
  %vm3311 = vcmp.eq.s32.totalorder %v2780, %v3234
  %vm3312 = vcmp.eq.s32.totalorder %v2780, %v3241
  %vm3313 = vcmp.eq.s32.totalorder %v2780, %v3245
  %vm3314 = vcmp.eq.s32.totalorder %v2780, %v3249
  %vm3315 = vcmp.eq.s32.totalorder %v2780, %v3253
  %vm3316 = vcmp.eq.s32.totalorder %v2780, %v3260
  %vm3317 = vcmp.eq.s32.totalorder %v2780, %v3264
  %vm3318 = vcmp.eq.s32.totalorder %v2780, %v3268
  %vm3319 = vcmp.eq.s32.totalorder %v2780, %v3272
  %vm3320 = vcmp.eq.s32.totalorder %v2780, %v3279
  %vm3321 = vcmp.eq.s32.totalorder %v2780, %v3283
  %vm3322 = vcmp.eq.s32.totalorder %v2780, %v3287
  %vm3323 = vcmp.eq.s32.totalorder %v2780, %v3291
  %v3324 = vsel %vm3292, 1, 0
  %v3325 = vsel %vm3293, 1, 0
  %v3326 = vsel %vm3294, 1, 0
  %v3327 = vsel %vm3295, 1, 0
  %v3328 = vsel %vm3296, 1, 0
  %v3329 = vsel %vm3297, 1, 0
  %v3330 = vsel %vm3298, 1, 0
  %v3331 = vsel %vm3299, 1, 0
  %v3332 = vsel %vm3300, 1, 0
  %v3333 = vsel %vm3301, 1, 0
  %v3334 = vsel %vm3302, 1, 0
  %v3335 = vsel %vm3303, 1, 0
  %v3336 = vsel %vm3304, 1, 0
  %v3337 = vsel %vm3305, 1, 0
  %v3338 = vsel %vm3306, 1, 0
  %v3339 = vsel %vm3307, 1, 0
  %v3340 = vsel %vm3308, 1, 0
  %v3341 = vsel %vm3309, 1, 0
  %v3342 = vsel %vm3310, 1, 0
  %v3343 = vsel %vm3311, 1, 0
  %v3344 = vsel %vm3312, 1, 0
  %v3345 = vsel %vm3313, 1, 0
  %v3346 = vsel %vm3314, 1, 0
  %v3347 = vsel %vm3315, 1, 0
  %v3348 = vsel %vm3316, 1, 0
  %v3349 = vsel %vm3317, 1, 0
  %v3350 = vsel %vm3318, 1, 0
  %v3351 = vsel %vm3319, 1, 0
  %v3352 = vsel %vm3320, 1, 0
  %v3353 = vsel %vm3321, 1, 0
  %v3354 = vsel %vm3322, 1, 0
  %v3355 = vsel %vm3323, 1, 0
  %v3356 = vcvt.s32.f32 %v3324
  %v3357 = vcvt.s32.f32 %v3325
  %v3358 = vcvt.s32.f32 %v3326
  %v3359 = vcvt.s32.f32 %v3327
  %v3360 = vcvt.s32.f32 %v3328
  %v3361 = vcvt.s32.f32 %v3329
  %v3362 = vcvt.s32.f32 %v3330
  %v3363 = vcvt.s32.f32 %v3331
  %v3364 = vcvt.s32.f32 %v3332
  %v3365 = vcvt.s32.f32 %v3333
  %v3366 = vcvt.s32.f32 %v3334
  %v3367 = vcvt.s32.f32 %v3335
  %v3368 = vcvt.s32.f32 %v3336
  %v3369 = vcvt.s32.f32 %v3337
  %v3370 = vcvt.s32.f32 %v3338
  %v3371 = vcvt.s32.f32 %v3339
  %v3372 = vcvt.s32.f32 %v3340
  %v3373 = vcvt.s32.f32 %v3341
  %v3374 = vcvt.s32.f32 %v3342
  %v3375 = vcvt.s32.f32 %v3343
  %v3376 = vcvt.s32.f32 %v3344
  %v3377 = vcvt.s32.f32 %v3345
  %v3378 = vcvt.s32.f32 %v3346
  %v3379 = vcvt.s32.f32 %v3347
  %v3380 = vcvt.s32.f32 %v3348
  %v3381 = vcvt.s32.f32 %v3349
  %v3382 = vcvt.s32.f32 %v3350
  %v3383 = vcvt.s32.f32 %v3351
  %v3384 = vcvt.s32.f32 %v3352
  %v3385 = vcvt.s32.f32 %v3353
  %v3386 = vcvt.s32.f32 %v3354
  %v3387 = vcvt.s32.f32 %v3355
  %v3388 = vld [vmem:[%s6] sm:$0xff]
  %v3389 = vlaneseq
  %v3390 = vshrl.u32 %v3389, 7
  %v3391 = vsub.s32 0, %v3390
  %v3392 = vrot.slane %v3388, %v3391
  %3394 = vbcast.lane.b32.xlu0 %v3392, 256
  %v3395 = vpop.permute.xlu0 %3394
  %v3396 = vlaneseq
  %v3397 = vshrl.u32 %v3396, 7
  %v3398 = vsub.s32 1, %v3397
  %v3399 = vrot.slane %v3388, %v3398
  %3401 = vbcast.lane.b32.xlu0 %v3399, 256
  %v3402 = vpop.permute.xlu0 %3401
  %v3403 = vlaneseq
  %v3404 = vshrl.u32 %v3403, 7
  %v3405 = vsub.s32 2, %v3404
  %v3406 = vrot.slane %v3388, %v3405
  %3408 = vbcast.lane.b32.xlu0 %v3406, 256
  %v3409 = vpop.permute.xlu0 %3408
  %v3410 = vlaneseq
  %v3411 = vshrl.u32 %v3410, 7
  %v3412 = vsub.s32 3, %v3411
  %v3413 = vrot.slane %v3388, %v3412
  %3415 = vbcast.lane.b32.xlu0 %v3413, 256
  %v3416 = vpop.permute.xlu0 %3415
  %v3417 = vlaneseq
  %v3418 = vshrl.u32 %v3417, 7
  %v3419 = vsub.s32 4, %v3418
  %v3420 = vrot.slane %v3388, %v3419
  %3422 = vbcast.lane.b32.xlu0 %v3420, 256
  %v3423 = vpop.permute.xlu0 %3422
  %v3424 = vlaneseq
  %v3425 = vshrl.u32 %v3424, 7
  %v3426 = vsub.s32 5, %v3425
  %v3427 = vrot.slane %v3388, %v3426
  %3429 = vbcast.lane.b32.xlu0 %v3427, 256
  %v3430 = vpop.permute.xlu0 %3429
  %v3431 = vlaneseq
  %v3432 = vshrl.u32 %v3431, 7
  %v3433 = vsub.s32 6, %v3432
  %v3434 = vrot.slane %v3388, %v3433
  %3436 = vbcast.lane.b32.xlu0 %v3434, 256
  %v3437 = vpop.permute.xlu0 %3436
  %v3438 = vlaneseq
  %v3439 = vshrl.u32 %v3438, 7
  %v3440 = vsub.s32 7, %v3439
  %v3441 = vrot.slane %v3388, %v3440
  %3443 = vbcast.lane.b32.xlu0 %v3441, 256
  %v3444 = vpop.permute.xlu0 %3443
  %vm3445 = vcmp.eq.s32.totalorder %v2780, %v3395
  %vm3446 = vcmp.eq.s32.totalorder %v2780, %v3402
  %vm3447 = vcmp.eq.s32.totalorder %v2780, %v3409
  %vm3448 = vcmp.eq.s32.totalorder %v2780, %v3416
  %vm3449 = vcmp.eq.s32.totalorder %v2780, %v3423
  %vm3450 = vcmp.eq.s32.totalorder %v2780, %v3430
  %vm3451 = vcmp.eq.s32.totalorder %v2780, %v3437
  %vm3452 = vcmp.eq.s32.totalorder %v2780, %v3444
  %v3453 = vsel %vm3445, 1, 0
  %v3454 = vsel %vm3446, 1, 0
  %v3455 = vsel %vm3447, 1, 0
  %v3456 = vsel %vm3448, 1, 0
  %v3457 = vsel %vm3449, 1, 0
  %v3458 = vsel %vm3450, 1, 0
  %v3459 = vsel %vm3451, 1, 0
  %v3460 = vsel %vm3452, 1, 0
  %v3461 = vcvt.s32.f32 %v3453
  %v3462 = vcvt.s32.f32 %v3454
  %v3463 = vcvt.s32.f32 %v3455
  %v3464 = vcvt.s32.f32 %v3456
  %v3465 = vcvt.s32.f32 %v3457
  %v3466 = vcvt.s32.f32 %v3458
  %v3467 = vcvt.s32.f32 %v3459
  %v3468 = vcvt.s32.f32 %v3460
  %v3469 = vmul.f32 %v3138, %v2961
  %v3470 = vlaneseq
  %v3471 = vshrl.u32 %v3470, 7
  %v3472 = vsub.s32 0, %v3471
  %v3473 = vrot.slane %v3469, %v3472
  %3475 = vbcast.lane.b32.xlu0 %v3473, 256
  %v3476 = vpop.permute.xlu0 %3475
  %s3478 = sor.u32 256, 8
  %3479 = vbcast.lane.b32.xlu0 %v3473, %s3478
  %v3480 = vpop.permute.xlu0 %3479
  %s3482 = sor.u32 256, 16
  %3483 = vbcast.lane.b32.xlu0 %v3473, %s3482
  %v3484 = vpop.permute.xlu0 %3483
  %s3486 = sor.u32 256, 24
  %3487 = vbcast.lane.b32.xlu0 %v3473, %s3486
  %v3488 = vpop.permute.xlu0 %3487
  %v3489 = vlaneseq
  %v3490 = vshrl.u32 %v3489, 7
  %v3491 = vsub.s32 1, %v3490
  %v3492 = vrot.slane %v3469, %v3491
  %3494 = vbcast.lane.b32.xlu0 %v3492, 256
  %v3495 = vpop.permute.xlu0 %3494
  %s3497 = sor.u32 256, 8
  %3498 = vbcast.lane.b32.xlu0 %v3492, %s3497
  %v3499 = vpop.permute.xlu0 %3498
  %s3501 = sor.u32 256, 16
  %3502 = vbcast.lane.b32.xlu0 %v3492, %s3501
  %v3503 = vpop.permute.xlu0 %3502
  %s3505 = sor.u32 256, 24
  %3506 = vbcast.lane.b32.xlu0 %v3492, %s3505
  %v3507 = vpop.permute.xlu0 %3506
  %v3508 = vlaneseq
  %v3509 = vshrl.u32 %v3508, 7
  %v3510 = vsub.s32 2, %v3509
  %v3511 = vrot.slane %v3469, %v3510
  %3513 = vbcast.lane.b32.xlu0 %v3511, 256
  %v3514 = vpop.permute.xlu0 %3513
  %s3516 = sor.u32 256, 8
  %3517 = vbcast.lane.b32.xlu0 %v3511, %s3516
  %v3518 = vpop.permute.xlu0 %3517
  %s3520 = sor.u32 256, 16
  %3521 = vbcast.lane.b32.xlu0 %v3511, %s3520
  %v3522 = vpop.permute.xlu0 %3521
  %s3524 = sor.u32 256, 24
  %3525 = vbcast.lane.b32.xlu0 %v3511, %s3524
  %v3526 = vpop.permute.xlu0 %3525
  %v3527 = vlaneseq
  %v3528 = vshrl.u32 %v3527, 7
  %v3529 = vsub.s32 3, %v3528
  %v3530 = vrot.slane %v3469, %v3529
  %3532 = vbcast.lane.b32.xlu0 %v3530, 256
  %v3533 = vpop.permute.xlu0 %3532
  %s3535 = sor.u32 256, 8
  %3536 = vbcast.lane.b32.xlu0 %v3530, %s3535
  %v3537 = vpop.permute.xlu0 %3536
  %s3539 = sor.u32 256, 16
  %3540 = vbcast.lane.b32.xlu0 %v3530, %s3539
  %v3541 = vpop.permute.xlu0 %3540
  %s3543 = sor.u32 256, 24
  %3544 = vbcast.lane.b32.xlu0 %v3530, %s3543
  %v3545 = vpop.permute.xlu0 %3544
  %v3546 = vlaneseq
  %v3547 = vshrl.u32 %v3546, 7
  %v3548 = vsub.s32 4, %v3547
  %v3549 = vrot.slane %v3469, %v3548
  %3551 = vbcast.lane.b32.xlu0 %v3549, 256
  %v3552 = vpop.permute.xlu0 %3551
  %s3554 = sor.u32 256, 8
  %3555 = vbcast.lane.b32.xlu0 %v3549, %s3554
  %v3556 = vpop.permute.xlu0 %3555
  %s3558 = sor.u32 256, 16
  %3559 = vbcast.lane.b32.xlu0 %v3549, %s3558
  %v3560 = vpop.permute.xlu0 %3559
  %s3562 = sor.u32 256, 24
  %3563 = vbcast.lane.b32.xlu0 %v3549, %s3562
  %v3564 = vpop.permute.xlu0 %3563
  %v3565 = vlaneseq
  %v3566 = vshrl.u32 %v3565, 7
  %v3567 = vsub.s32 5, %v3566
  %v3568 = vrot.slane %v3469, %v3567
  %3570 = vbcast.lane.b32.xlu0 %v3568, 256
  %v3571 = vpop.permute.xlu0 %3570
  %s3573 = sor.u32 256, 8
  %3574 = vbcast.lane.b32.xlu0 %v3568, %s3573
  %v3575 = vpop.permute.xlu0 %3574
  %s3577 = sor.u32 256, 16
  %3578 = vbcast.lane.b32.xlu0 %v3568, %s3577
  %v3579 = vpop.permute.xlu0 %3578
  %s3581 = sor.u32 256, 24
  %3582 = vbcast.lane.b32.xlu0 %v3568, %s3581
  %v3583 = vpop.permute.xlu0 %3582
  %v3584 = vlaneseq
  %v3585 = vshrl.u32 %v3584, 7
  %v3586 = vsub.s32 6, %v3585
  %v3587 = vrot.slane %v3469, %v3586
  %3589 = vbcast.lane.b32.xlu0 %v3587, 256
  %v3590 = vpop.permute.xlu0 %3589
  %s3592 = sor.u32 256, 8
  %3593 = vbcast.lane.b32.xlu0 %v3587, %s3592
  %v3594 = vpop.permute.xlu0 %3593
  %s3596 = sor.u32 256, 16
  %3597 = vbcast.lane.b32.xlu0 %v3587, %s3596
  %v3598 = vpop.permute.xlu0 %3597
  %s3600 = sor.u32 256, 24
  %3601 = vbcast.lane.b32.xlu0 %v3587, %s3600
  %v3602 = vpop.permute.xlu0 %3601
  %v3603 = vlaneseq
  %v3604 = vshrl.u32 %v3603, 7
  %v3605 = vsub.s32 7, %v3604
  %v3606 = vrot.slane %v3469, %v3605
  %3608 = vbcast.lane.b32.xlu0 %v3606, 256
  %v3609 = vpop.permute.xlu0 %3608
  %s3611 = sor.u32 256, 8
  %3612 = vbcast.lane.b32.xlu0 %v3606, %s3611
  %v3613 = vpop.permute.xlu0 %3612
  %s3615 = sor.u32 256, 16
  %3616 = vbcast.lane.b32.xlu0 %v3606, %s3615
  %v3617 = vpop.permute.xlu0 %3616
  %s3619 = sor.u32 256, 24
  %3620 = vbcast.lane.b32.xlu0 %v3606, %s3619
  %v3621 = vpop.permute.xlu0 %3620
  %v3622 = vmul.f32 %v3476, %v3356
  %v3623 = vmul.f32 %v3480, %v3357
  %v3624 = vmul.f32 %v3484, %v3358
  %v3625 = vmul.f32 %v3488, %v3359
  %v3626 = vmul.f32 %v3495, %v3360
  %v3627 = vmul.f32 %v3499, %v3361
  %v3628 = vmul.f32 %v3503, %v3362
  %v3629 = vmul.f32 %v3507, %v3363
  %v3630 = vmul.f32 %v3514, %v3364
  %v3631 = vmul.f32 %v3518, %v3365
  %v3632 = vmul.f32 %v3522, %v3366
  %v3633 = vmul.f32 %v3526, %v3367
  %v3634 = vmul.f32 %v3533, %v3368
  %v3635 = vmul.f32 %v3537, %v3369
  %v3636 = vmul.f32 %v3541, %v3370
  %v3637 = vmul.f32 %v3545, %v3371
  %v3638 = vmul.f32 %v3552, %v3372
  %v3639 = vmul.f32 %v3556, %v3373
  %v3640 = vmul.f32 %v3560, %v3374
  %v3641 = vmul.f32 %v3564, %v3375
  %v3642 = vmul.f32 %v3571, %v3376
  %v3643 = vmul.f32 %v3575, %v3377
  %v3644 = vmul.f32 %v3579, %v3378
  %v3645 = vmul.f32 %v3583, %v3379
  %v3646 = vmul.f32 %v3590, %v3380
  %v3647 = vmul.f32 %v3594, %v3381
  %v3648 = vmul.f32 %v3598, %v3382
  %v3649 = vmul.f32 %v3602, %v3383
  %v3650 = vmul.f32 %v3609, %v3384
  %v3651 = vmul.f32 %v3613, %v3385
  %v3652 = vmul.f32 %v3617, %v3386
  %v3653 = vmul.f32 %v3621, %v3387
  %v3654 = vadd.f32 %v3622, %v3623
  %v3655 = vadd.f32 %v3654, %v3624
  %v3656 = vadd.f32 %v3655, %v3625
  %v3657 = vrot.slane %v3656, 4
  %v3658 = vadd.f32 %v3656, %v3657
  %v3659 = vrot.slane %v3658, 2
  %v3660 = vadd.f32 %v3658, %v3659
  %v3661 = vrot.slane %v3660, 1
  %v3662 = vadd.f32 %v3660, %v3661
  %v3663 = vadd.f32 %v3626, %v3627
  %v3664 = vadd.f32 %v3663, %v3628
  %v3665 = vadd.f32 %v3664, %v3629
  %v3666 = vrot.slane %v3665, 4
  %v3667 = vadd.f32 %v3665, %v3666
  %v3668 = vrot.slane %v3667, 2
  %v3669 = vadd.f32 %v3667, %v3668
  %v3670 = vrot.slane %v3669, 1
  %v3671 = vadd.f32 %v3669, %v3670
  %v3672 = vadd.f32 %v3630, %v3631
  %v3673 = vadd.f32 %v3672, %v3632
  %v3674 = vadd.f32 %v3673, %v3633
  %v3675 = vrot.slane %v3674, 4
  %v3676 = vadd.f32 %v3674, %v3675
  %v3677 = vrot.slane %v3676, 2
  %v3678 = vadd.f32 %v3676, %v3677
  %v3679 = vrot.slane %v3678, 1
  %v3680 = vadd.f32 %v3678, %v3679
  %v3681 = vadd.f32 %v3634, %v3635
  %v3682 = vadd.f32 %v3681, %v3636
  %v3683 = vadd.f32 %v3682, %v3637
  %v3684 = vrot.slane %v3683, 4
  %v3685 = vadd.f32 %v3683, %v3684
  %v3686 = vrot.slane %v3685, 2
  %v3687 = vadd.f32 %v3685, %v3686
  %v3688 = vrot.slane %v3687, 1
  %v3689 = vadd.f32 %v3687, %v3688
  %v3690 = vadd.f32 %v3638, %v3639
  %v3691 = vadd.f32 %v3690, %v3640
  %v3692 = vadd.f32 %v3691, %v3641
  %v3693 = vrot.slane %v3692, 4
  %v3694 = vadd.f32 %v3692, %v3693
  %v3695 = vrot.slane %v3694, 2
  %v3696 = vadd.f32 %v3694, %v3695
  %v3697 = vrot.slane %v3696, 1
  %v3698 = vadd.f32 %v3696, %v3697
  %v3699 = vadd.f32 %v3642, %v3643
  %v3700 = vadd.f32 %v3699, %v3644
  %v3701 = vadd.f32 %v3700, %v3645
  %v3702 = vrot.slane %v3701, 4
  %v3703 = vadd.f32 %v3701, %v3702
  %v3704 = vrot.slane %v3703, 2
  %v3705 = vadd.f32 %v3703, %v3704
  %v3706 = vrot.slane %v3705, 1
  %v3707 = vadd.f32 %v3705, %v3706
  %v3708 = vadd.f32 %v3646, %v3647
  %v3709 = vadd.f32 %v3708, %v3648
  %v3710 = vadd.f32 %v3709, %v3649
  %v3711 = vrot.slane %v3710, 4
  %v3712 = vadd.f32 %v3710, %v3711
  %v3713 = vrot.slane %v3712, 2
  %v3714 = vadd.f32 %v3712, %v3713
  %v3715 = vrot.slane %v3714, 1
  %v3716 = vadd.f32 %v3714, %v3715
  %v3717 = vadd.f32 %v3650, %v3651
  %v3718 = vadd.f32 %v3717, %v3652
  %v3719 = vadd.f32 %v3718, %v3653
  %v3720 = vrot.slane %v3719, 4
  %v3721 = vadd.f32 %v3719, %v3720
  %v3722 = vrot.slane %v3721, 2
  %v3723 = vadd.f32 %v3721, %v3722
  %v3724 = vrot.slane %v3723, 1
  %v3725 = vadd.f32 %v3723, %v3724
  %v3726 = vsub.f32 1.0, %v3138
  %v3727 = vmul.f32 %v3726, %v3027
  %v3728 = vlaneseq
  %v3729 = vshrl.u32 %v3728, 7
  %v3730 = vsub.s32 0, %v3729
  %v3731 = vrot.slane %v3727, %v3730
  %3733 = vbcast.lane.b32.xlu0 %v3731, 256
  %v3734 = vpop.permute.xlu0 %3733
  %v3735 = vlaneseq
  %v3736 = vshrl.u32 %v3735, 7
  %v3737 = vsub.s32 1, %v3736
  %v3738 = vrot.slane %v3727, %v3737
  %3740 = vbcast.lane.b32.xlu0 %v3738, 256
  %v3741 = vpop.permute.xlu0 %3740
  %v3742 = vlaneseq
  %v3743 = vshrl.u32 %v3742, 7
  %v3744 = vsub.s32 2, %v3743
  %v3745 = vrot.slane %v3727, %v3744
  %3747 = vbcast.lane.b32.xlu0 %v3745, 256
  %v3748 = vpop.permute.xlu0 %3747
  %v3749 = vlaneseq
  %v3750 = vshrl.u32 %v3749, 7
  %v3751 = vsub.s32 3, %v3750
  %v3752 = vrot.slane %v3727, %v3751
  %3754 = vbcast.lane.b32.xlu0 %v3752, 256
  %v3755 = vpop.permute.xlu0 %3754
  %v3756 = vlaneseq
  %v3757 = vshrl.u32 %v3756, 7
  %v3758 = vsub.s32 4, %v3757
  %v3759 = vrot.slane %v3727, %v3758
  %3761 = vbcast.lane.b32.xlu0 %v3759, 256
  %v3762 = vpop.permute.xlu0 %3761
  %v3763 = vlaneseq
  %v3764 = vshrl.u32 %v3763, 7
  %v3765 = vsub.s32 5, %v3764
  %v3766 = vrot.slane %v3727, %v3765
  %3768 = vbcast.lane.b32.xlu0 %v3766, 256
  %v3769 = vpop.permute.xlu0 %3768
  %v3770 = vlaneseq
  %v3771 = vshrl.u32 %v3770, 7
  %v3772 = vsub.s32 6, %v3771
  %v3773 = vrot.slane %v3727, %v3772
  %3775 = vbcast.lane.b32.xlu0 %v3773, 256
  %v3776 = vpop.permute.xlu0 %3775
  %v3777 = vlaneseq
  %v3778 = vshrl.u32 %v3777, 7
  %v3779 = vsub.s32 7, %v3778
  %v3780 = vrot.slane %v3727, %v3779
  %3782 = vbcast.lane.b32.xlu0 %v3780, 256
  %v3783 = vpop.permute.xlu0 %3782
  %v3784 = vmul.f32 %v3734, %v3461
  %v3785 = vmul.f32 %v3741, %v3462
  %v3786 = vmul.f32 %v3748, %v3463
  %v3787 = vmul.f32 %v3755, %v3464
  %v3788 = vmul.f32 %v3762, %v3465
  %v3789 = vmul.f32 %v3769, %v3466
  %v3790 = vmul.f32 %v3776, %v3467
  %v3791 = vmul.f32 %v3783, %v3468
  %v3792 = vrot.slane %v3784, 4
  %v3793 = vadd.f32 %v3784, %v3792
  %v3794 = vrot.slane %v3793, 2
  %v3795 = vadd.f32 %v3793, %v3794
  %v3796 = vrot.slane %v3795, 1
  %v3797 = vadd.f32 %v3795, %v3796
  %v3798 = vrot.slane %v3785, 4
  %v3799 = vadd.f32 %v3785, %v3798
  %v3800 = vrot.slane %v3799, 2
  %v3801 = vadd.f32 %v3799, %v3800
  %v3802 = vrot.slane %v3801, 1
  %v3803 = vadd.f32 %v3801, %v3802
  %v3804 = vrot.slane %v3786, 4
  %v3805 = vadd.f32 %v3786, %v3804
  %v3806 = vrot.slane %v3805, 2
  %v3807 = vadd.f32 %v3805, %v3806
  %v3808 = vrot.slane %v3807, 1
  %v3809 = vadd.f32 %v3807, %v3808
  %v3810 = vrot.slane %v3787, 4
  %v3811 = vadd.f32 %v3787, %v3810
  %v3812 = vrot.slane %v3811, 2
  %v3813 = vadd.f32 %v3811, %v3812
  %v3814 = vrot.slane %v3813, 1
  %v3815 = vadd.f32 %v3813, %v3814
  %v3816 = vrot.slane %v3788, 4
  %v3817 = vadd.f32 %v3788, %v3816
  %v3818 = vrot.slane %v3817, 2
  %v3819 = vadd.f32 %v3817, %v3818
  %v3820 = vrot.slane %v3819, 1
  %v3821 = vadd.f32 %v3819, %v3820
  %v3822 = vrot.slane %v3789, 4
  %v3823 = vadd.f32 %v3789, %v3822
  %v3824 = vrot.slane %v3823, 2
  %v3825 = vadd.f32 %v3823, %v3824
  %v3826 = vrot.slane %v3825, 1
  %v3827 = vadd.f32 %v3825, %v3826
  %v3828 = vrot.slane %v3790, 4
  %v3829 = vadd.f32 %v3790, %v3828
  %v3830 = vrot.slane %v3829, 2
  %v3831 = vadd.f32 %v3829, %v3830
  %v3832 = vrot.slane %v3831, 1
  %v3833 = vadd.f32 %v3831, %v3832
  %v3834 = vrot.slane %v3791, 4
  %v3835 = vadd.f32 %v3791, %v3834
  %v3836 = vrot.slane %v3835, 2
  %v3837 = vadd.f32 %v3835, %v3836
  %v3838 = vrot.slane %v3837, 1
  %v3839 = vadd.f32 %v3837, %v3838
  %v3840 = vadd.f32 %v3662, %v3797
  %v3841 = vadd.f32 %v3671, %v3803
  %v3842 = vadd.f32 %v3680, %v3809
  %v3843 = vadd.f32 %v3689, %v3815
  %v3844 = vadd.f32 %v3698, %v3821
  %v3845 = vadd.f32 %v3707, %v3827
  %v3846 = vadd.f32 %v3716, %v3833
  %v3847 = vadd.f32 %v3725, %v3839
  %v3856 = vsel %vm601, %v3841, %v3840
  %v3857 = vsel %vm603, %v3842, %v3856
  %v3858 = vsel %vm605, %v3843, %v3857
  %v3859 = vsel %vm607, %v3844, %v3858
  %v3860 = vsel %vm609, %v3845, %v3859
  %v3861 = vsel %vm611, %v3846, %v3860
  %v3862 = vsel %vm613, %v3847, %v3861
  %3864 = vst [vmem:[%s11] sm:$0xff] %v3862
  // Predicated region
  $region46: #{mem_reward_forward.1} parent=0 // pred_check
    _
  $region47: #{mem_reward_forward.1} parent=0 // pred_check_branch
    %3866 = sbr.rel (0) target = $region49
  $region48: #{mem_reward_forward.1} parent=0 // pred_region
    _
  $region49: #{mem_reward_forward.1} parent=0 // pred_fallthru
    _
  // Predicated region
  $region50: #{mem_reward_forward.1} parent=0 // pred_check
    _
  $region51: #{mem_reward_forward.1} parent=0 // pred_check_branch
    %3868 = sbr.rel (0) target = $region53
  $region52: #{mem_reward_forward.1} parent=0 // pred_region
    _
  $region53: #{mem_reward_forward.1} parent=0 // pred_fallthru
    _

</llo_original>
